<compile_context>
chip_gen: v7x
topology: tpu7x:2x2x1
jax: 0.10.0
libtpu: 0.0.40
codegen_flags: <defaults>
</compile_context>

<pallas_src>
import functools

import jax
import jax.numpy as jnp
from jax.experimental import pallas as pl
from jax.experimental.pallas import tpu as pltpu

EPS = 1e-5                      # nn.BatchNorm2d default eps
LANE = 128                      # pad channels to multiples of the 128-lane vreg
VMEM_LIMIT = 32 * 1024 * 1024   # explicit scoped-VMEM budget (safe on v5e/v6e/v7x)


def _round_up(n, m):
    return -(-n // m) * m


# ---------------------------------------------------------------------------
# In-kernel helpers
# ---------------------------------------------------------------------------
def _taps_matmul(get_slab, w_ref, ho, wo, cin, cout):
    """Sum of 9 shifted (Ho*Wo, Cin) @ (Cin, Cout) bf16 matmuls, f32 accumulator."""
    acc = jnp.zeros((ho * wo, cout), jnp.float32)
    for t in range(9):
        slab = get_slab(t).reshape(ho * wo, cin).astype(jnp.bfloat16)
        acc = acc + jnp.dot(slab, w_ref[t], preferred_element_type=jnp.float32)
    return acc


def _accumulate_stats(sb_ref, acc, g_ref, b_ref, n, nsteps, inv_count):
    """Accumulate per-channel sum/sumsq of `acc`; fold into (scale, bias) at the end."""
    @pl.when(n == 0)
    def _():
        sb_ref[...] = jnp.zeros(sb_ref.shape, sb_ref.dtype)

    sb_ref[0:1, :] += jnp.sum(acc, axis=0, keepdims=True)
    sb_ref[1:2, :] += jnp.sum(acc * acc, axis=0, keepdims=True)

    @pl.when(n == nsteps - 1)
    def _():
        mean = sb_ref[0:1, :] * inv_count
        var = sb_ref[1:2, :] * inv_count - mean * mean          # biased variance
        scale = g_ref[...] * jax.lax.rsqrt(var + EPS)
        sb_ref[0:1, :] = scale
        sb_ref[1:2, :] = b_ref[...] - mean * scale              # folded bias


# ---------------------------------------------------------------------------
# Kernels
# ---------------------------------------------------------------------------
def _conv1_bn_stats_kernel(x_ref, w_ref, g_ref, b_ref, y_ref, sb_ref, *,
                           stride, ho, wo, cin, cout, nsteps, inv_count):
    """3x3 conv (stride s) from a phase-decomposed input + BN1 stat accumulation."""
    n = pl.program_id(0)

    def slab(t):
        kh, kw = t // 3, t % 3
        ph = (kh % stride) * stride + (kw % stride)     # phase index
        i0, j0 = kh // stride, kw // stride
        return x_ref[ph, i0:i0 + ho, j0:j0 + wo, :]

    acc = _taps_matmul(slab, w_ref, ho, wo, cin, cout)
    y_ref[0] = acc.reshape(ho, wo, cout).astype(y_ref.dtype)
    _accumulate_stats(sb_ref, acc, g_ref, b_ref, n, nsteps, inv_count)


def _bn_relu_conv2_stats_kernel(y1_ref, sb1_ref, w_ref, g_ref, b_ref,
                                y2_ref, sb2_ref, pad_ref, *,
                                ho, wo, cout, nsteps, inv_count):
    """Fused BN1+ReLU -> zero-pad in VMEM -> 3x3 conv (stride 1) + BN2 stats."""
    n = pl.program_id(0)

    @pl.when(n == 0)
    def _():                                            # border stays zero afterwards
        pad_ref[...] = jnp.zeros(pad_ref.shape, pad_ref.dtype)

    scale = sb1_ref[0:1, :].reshape(1, 1, cout)
    bias = sb1_ref[1:2, :].reshape(1, 1, cout)
    act = jnp.maximum(y1_ref[0] * scale + bias, 0.0)    # BN1 + ReLU (f32 epilogue)
    pad_ref[1:1 + ho, 1:1 + wo, :] = act

    def slab(t):
        kh, kw = t // 3, t % 3
        return pad_ref[kh:kh + ho, kw:kw + wo, :]

    acc = _taps_matmul(slab, w_ref, ho, wo, cout, cout)
    y2_ref[0] = acc.reshape(ho, wo, cout).astype(y2_ref.dtype)
    _accumulate_stats(sb2_ref, acc, g_ref, b_ref, n, nsteps, inv_count)


def _bn_add_relu_kernel(y2_ref, sb2_ref, xs_ref, o_ref, *, cout):
    """BN2 + identity shortcut + ReLU (no shortcut matmul)."""
    scale = sb2_ref[0:1, :].reshape(1, 1, cout)
    bias = sb2_ref[1:2, :].reshape(1, 1, cout)
    o_ref[0] = jnp.maximum(y2_ref[0] * scale + bias + xs_ref[0], 0.0)


def _bn_convsc_add_relu_kernel(y2_ref, sb2_ref, xs_ref, ws_ref, o_ref, *,
                               ho, wo, cin, cout):
    """BN2 + projection shortcut (1x1 conv, no BN per spec) + ReLU."""
    scale = sb2_ref[0:1, :].reshape(1, 1, cout)
    bias = sb2_ref[1:2, :].reshape(1, 1, cout)
    y = y2_ref[0] * scale + bias
    xs = xs_ref[0].reshape(ho * wo, cin)
    sc = jnp.dot(xs, ws_ref[...], preferred_element_type=jnp.float32)
    o_ref[0] = jnp.maximum(y + sc.reshape(ho, wo, cout), 0.0)


# ---------------------------------------------------------------------------
# pallas_call wrappers
# ---------------------------------------------------------------------------
def _conv1_call(x_ph, w1, g1, b1, *, stride, n, hs, wsp, ho, wo, cin, cout):
    kern = functools.partial(_conv1_bn_stats_kernel, stride=stride, ho=ho, wo=wo,
                             cin=cin, cout=cout, nsteps=n,
                             inv_count=1.0 / float(n * ho * wo))
    return pl.pallas_call(
        kern,
        grid=(n,),
        in_specs=[
            pl.BlockSpec((stride * stride, hs, wsp, cin), lambda i: (i, 0, 0, 0)),
            pl.BlockSpec((9, cin, cout), lambda i: (0, 0, 0)),   # weights stay resident
            pl.BlockSpec((1, cout), lambda i: (0, 0)),
            pl.BlockSpec((1, cout), lambda i: (0, 0)),
        ],
        out_specs=[
            pl.BlockSpec((1, ho, wo, cout), lambda i: (i, 0, 0, 0)),
            pl.BlockSpec((2, cout), lambda i: (0, 0)),           # resident stats block
        ],
        out_shape=[
            jax.ShapeDtypeStruct((n, ho, wo, cout), jnp.bfloat16),
            jax.ShapeDtypeStruct((2, cout), jnp.float32),
        ],
        compiler_params=pltpu.CompilerParams(
            dimension_semantics=("arbitrary",),   # global BN stats accumulate over the grid
            vmem_limit_bytes=VMEM_LIMIT),
    )(x_ph, w1, g1, b1)


def _conv2_call(y1, sb1, w2, g2, b2, *, n, ho, wo, cout):
    kern = functools.partial(_bn_relu_conv2_stats_kernel, ho=ho, wo=wo, cout=cout,
                             nsteps=n, inv_count=1.0 / float(n * ho * wo))
    return pl.pallas_call(
        kern,
        grid=(n,),
        in_specs=[
            pl.BlockSpec((1, ho, wo, cout), lambda i: (i, 0, 0, 0)),
            pl.BlockSpec((2, cout), lambda i: (0, 0)),
            pl.BlockSpec((9, cout, cout), lambda i: (0, 0, 0)),
            pl.BlockSpec((1, cout), lambda i: (0, 0)),
            pl.BlockSpec((1, cout), lambda i: (0, 0)),
        ],
        out_specs=[
            pl.BlockSpec((1, ho, wo, cout), lambda i: (i, 0, 0, 0)),
            pl.BlockSpec((2, cout), lambda i: (0, 0)),
        ],
        out_shape=[
            jax.ShapeDtypeStruct((n, ho, wo, cout), jnp.bfloat16),
            jax.ShapeDtypeStruct((2, cout), jnp.float32),
        ],
        scratch_shapes=[pltpu.VMEM((ho + 2, wo + 2, cout), jnp.float32)],
        compiler_params=pltpu.CompilerParams(
            dimension_semantics=("arbitrary",),
            vmem_limit_bytes=VMEM_LIMIT),
    )(y1, sb1, w2, g2, b2)


def _finalize_identity_call(y2, sb2, x, *, n, ho, wo, cout):
    return pl.pallas_call(
        functools.partial(_bn_add_relu_kernel, cout=cout),
        grid=(n,),
        in_specs=[
            pl.BlockSpec((1, ho, wo, cout), lambda i: (i, 0, 0, 0)),
            pl.BlockSpec((2, cout), lambda i: (0, 0)),
            pl.BlockSpec((1, ho, wo, cout), lambda i: (i, 0, 0, 0)),
        ],
        out_specs=pl.BlockSpec((1, ho, wo, cout), lambda i: (i, 0, 0, 0)),
        out_shape=jax.ShapeDtypeStruct((n, ho, wo, cout), jnp.float32),
        compiler_params=pltpu.CompilerParams(
            dimension_semantics=("parallel",),    # no cross-step state -> megacore shardable
            vmem_limit_bytes=VMEM_LIMIT),
    )(y2, sb2, x)


def _finalize_convsc_call(y2, sb2, xs, wsc, *, n, ho, wo, cin, cout):
    return pl.pallas_call(
        functools.partial(_bn_convsc_add_relu_kernel, ho=ho, wo=wo, cin=cin, cout=cout),
        grid=(n,),
        in_specs=[
            pl.BlockSpec((1, ho, wo, cout), lambda i: (i, 0, 0, 0)),
            pl.BlockSpec((2, cout), lambda i: (0, 0)),
            pl.BlockSpec((1, ho, wo, cin), lambda i: (i, 0, 0, 0)),
            pl.BlockSpec((cin, cout), lambda i: (0, 0)),
        ],
        out_specs=pl.BlockSpec((1, ho, wo, cout), lambda i: (i, 0, 0, 0)),
        out_shape=jax.ShapeDtypeStruct((n, ho, wo, cout), jnp.float32),
        compiler_params=pltpu.CompilerParams(
            dimension_semantics=("parallel",),
            vmem_limit_bytes=VMEM_LIMIT),
    )(y2, sb2, xs, wsc)


# ---------------------------------------------------------------------------
# Glue: space-to-depth phase decomposition (makes strided taps stride-1 slices)
# ---------------------------------------------------------------------------
def _phase_decompose(xp, stride):
    n, hp, wp, c = xp.shape
    hp2, wp2 = _round_up(hp, stride), _round_up(wp, stride)
    xp = jnp.pad(xp, ((0, 0), (0, hp2 - hp), (0, wp2 - wp), (0, 0)))
    hs, wsp = hp2 // stride, wp2 // stride
    xph = xp.reshape(n, hs, stride, wsp, stride, c).transpose(0, 2, 4, 1, 3, 5)
    return xph.reshape(n * stride * stride, hs, wsp, c), hs, wsp


# ---------------------------------------------------------------------------
# Parameters + forward
# ---------------------------------------------------------------------------
def init_resblock_params(key, in_channels, out_channels, stride):
    cin_p = _round_up(in_channels, LANE)
    cout_p = _round_up(out_channels, LANE)
    ks = jax.random.split(key, 7)

    w1 = 0.1 * jax.random.normal(ks[0], (out_channels, in_channels, 3, 3), jnp.float32)
    w2 = 0.1 * jax.random.normal(ks[1], (out_channels, out_channels, 3, 3), jnp.float32)
    g1 = 1.0 + 0.1 * jax.random.normal(ks[2], (out_channels,), jnp.float32)
    b1 = 0.1 * jax.random.normal(ks[3], (out_channels,), jnp.float32)
    g2 = 1.0 + 0.1 * jax.random.normal(ks[4], (out_channels,), jnp.float32)
    b2 = 0.1 * jax.random.normal(ks[5], (out_channels,), jnp.float32)

    def taps(w_oihw, ci, co):          # OIHW -> (9, Cin_pad, Cout_pad) bf16
        k = jnp.transpose(w_oihw, (2, 3, 1, 0)).reshape(9, w_oihw.shape[1], w_oihw.shape[0])
        k = jnp.pad(k, ((0, 0), (0, ci - k.shape[1]), (0, co - k.shape[2])))
        return k.astype(jnp.bfloat16)

    def vec(v, co, fill):
        return jnp.pad(v, (0, co - v.shape[0]), constant_values=fill).reshape(1, co)

    p = {
        "w1_raw": w1, "w2_raw": w2,
        "g1_raw": g1, "b1_raw": b1, "g2_raw": g2, "b2_raw": b2,
        "w1": taps(w1, cin_p, cout_p), "w2": taps(w2, cout_p, cout_p),
        "g1": vec(g1, cout_p, 1.0), "b1": vec(b1, cout_p, 0.0),
        "g2": vec(g2, cout_p, 1.0), "b2": vec(b2, cout_p, 0.0),
    }
    if stride != 1 or in_channels != out_channels:
        wsc = 0.1 * jax.random.normal(ks[6], (out_channels, in_channels, 1, 1), jnp.float32)
        p["wsc_raw"] = wsc
        wmat = jnp.transpose(wsc[:, :, 0, 0])                          # (Cin, Cout)
        p["wsc"] = jnp.pad(wmat, ((0, cin_p - in_channels),
                                  (0, cout_p - out_channels))).astype(jnp.bfloat16)
    return p


def resblock_forward(x_nchw, params, *, stride, out_channels):
    x = jnp.transpose(x_nchw, (0, 2, 3, 1)).astype(jnp.float32)        # NCHW -> NHWC
    n, h, w, cin_raw = x.shape
    cin, cout = params["w1"].shape[1], params["w1"].shape[2]           # lane-padded dims
    x = jnp.pad(x, ((0, 0), (0, 0), (0, 0), (0, cin - cin_raw)))
    ho = (h - 1) // stride + 1
    wo = (w - 1) // stride + 1

    # conv1 (3x3, stride, pad=1) + BN1 statistics -> (scale, bias)
    xp = jnp.pad(x, ((0, 0), (1, 1), (1, 1), (0, 0)))
    x_ph, hs, wsp = _phase_decompose(xp, stride)
    y1, sb1 = _conv1_call(x_ph, params["w1"], params["g1"], params["b1"],
                          stride=stride, n=n, hs=hs, wsp=wsp, ho=ho, wo=wo,
                          cin=cin, cout=cout)

    # fused BN1+ReLU + conv2 (3x3, stride 1, pad=1) + BN2 statistics
    y2, sb2 = _conv2_call(y1, sb1, params["w2"], params["g2"], params["b2"],
                          n=n, ho=ho, wo=wo, cout=cout)

    # BN2 + shortcut + final ReLU
    if "wsc" in params:                       # projection shortcut (1x1 conv, stride)
        xs = x[:, ::stride, ::stride, :].astype(jnp.bfloat16)
        out = _finalize_convsc_call(y2, sb2, xs, params["wsc"],
                                    n=n, ho=ho, wo=wo, cin=cin, cout=cout)
    else:                                     # identity shortcut: plain add, no matmul
        out = _finalize_identity_call(y2, sb2, x, n=n, ho=ho, wo=wo, cout=cout)

    out = out[..., :out_channels]                                      # drop lane padding
    return jnp.transpose(out, (0, 3, 1, 2))                            # NHWC -> NCHW


# ---------------------------------------------------------------------------
# Pure-JAX f32 reference (for correctness sanity check)
# ---------------------------------------------------------------------------
def _ref_resblock(x_nchw, params, stride):
    x = jnp.transpose(x_nchw, (0, 2, 3, 1)).astype(jnp.float32)
    prec = jax.lax.Precision.HIGHEST

    def conv(v, w_oihw, s, pad):
        return jax.lax.conv_general_dilated(
            v, jnp.transpose(w_oihw, (2, 3, 1, 0)), (s, s), ((pad, pad), (pad, pad)),
            dimension_numbers=("NHWC", "HWIO", "NHWC"), precision=prec)

    def bn(v, g, b):
        m = jnp.mean(v, axis=(0, 1, 2), keepdims=True)
        var = jnp.mean((v - m) ** 2, axis=(0, 1, 2), keepdims=True)
        return g * (v - m) * jax.lax.rsqrt(var + EPS) + b

    y = jax.nn.relu(bn(conv(x, params["w1_raw"], stride, 1), params["g1_raw"], params["b1_raw"]))
    y = bn(conv(y, params["w2_raw"], 1, 1), params["g2_raw"], params["b2_raw"])
    sc = conv(x, params["wsc_raw"], stride, 0) if "wsc_raw" in params else x
    return jnp.transpose(jax.nn.relu(y + sc), (0, 3, 1, 2))


if __name__ == "__main__":
    root = jax.random.PRNGKey(0)
    configs = [
        dict(in_channels=4, out_channels=8, stride=2),    # projection-shortcut path
        dict(in_channels=4, out_channels=4, stride=1),    # identity-shortcut path
    ]
    for idx, cfg in enumerate(configs):
        kx, kp = jax.random.split(jax.random.fold_in(root, idx))
        x = jax.random.normal(kx, (2, cfg["in_channels"], 16, 16), jnp.float32)
        params = init_resblock_params(kp, **cfg)

        fwd = jax.jit(functools.partial(resblock_forward, stride=cfg["stride"],
                                        out_channels=cfg["out_channels"]))
        out = fwd(x, params)
        jax.block_until_ready(out)

        ho = (16 - 1) // cfg["stride"] + 1
        assert out.shape == (2, cfg["out_channels"], ho, ho), out.shape
        assert bool(jnp.all(out >= 0.0)), "ReLU output must be non-negative"

        ref = _ref_resblock(x, params, cfg["stride"])
        err = float(jnp.max(jnp.abs(out - ref)))
        assert err < 0.2, f"max |out - ref| too large: {err}"

    print("KERNEL_OK")
</pallas_src>

<mosaic_0001>
module attributes {stable_mosaic.version = 11 : i64} {
  func.func @_conv1_bn_stats_kernel(%arg0: i32, %arg1: memref<4x9x9x128xf32, #tpu.memory_space<vmem>>, %arg2: memref<9x128x128xbf16, #tpu.memory_space<vmem>>, %arg3: memref<1x128xf32, #tpu.memory_space<vmem>>, %arg4: memref<1x128xf32, #tpu.memory_space<vmem>>, %arg5: memref<1x8x8x128xbf16, #tpu.memory_space<vmem>>, %arg6: memref<2x128xf32, #tpu.memory_space<vmem>>) attributes {dimension_semantics = [#tpu.dimension_semantics<arbitrary>], iteration_bounds = array<i64: 2>, scalar_prefetch = 0 : i64, scratch_operands = 0 : i64, tpu.core_type = #tpu.core_type<tc>, window_params = [{transform_indices = @transform_0, window_bounds = array<i64: 4, 9, 9, 128>}, {pipeline_mode = #tpu.pipeline_mode<synchronous>, transform_indices = @transform_1, window_bounds = array<i64: 9, 128, 128>}, {pipeline_mode = #tpu.pipeline_mode<synchronous>, transform_indices = @transform_2, window_bounds = array<i64: 1, 128>}, {pipeline_mode = #tpu.pipeline_mode<synchronous>, transform_indices = @transform_3, window_bounds = array<i64: 1, 128>}, {transform_indices = @transform_4, window_bounds = array<i64: 1, 8, 8, 128>}, {pipeline_mode = #tpu.pipeline_mode<synchronous>, transform_indices = @transform_5, window_bounds = array<i64: 2, 128>}]} {
    %cst = arith.constant 0.000000e+00 : f32
    %0 = vector.broadcast %cst : f32 to vector<64x128xf32>
    %c0 = arith.constant 0 : index
    %c0_0 = arith.constant 0 : index
    %c0_1 = arith.constant 0 : index
    %c0_2 = arith.constant 0 : index
    %1 = vector.load %arg1[%c0, %c0_0, %c0_1, %c0_2] : memref<4x9x9x128xf32, #tpu.memory_space<vmem>>, vector<1x8x8x128xf32>
    %2 = vector.shape_cast %1 : vector<1x8x8x128xf32> to vector<8x8x128xf32>
    %3 = vector.shape_cast %2 : vector<8x8x128xf32> to vector<64x128xf32>
    %4 = arith.truncf %3 : vector<64x128xf32> to vector<64x128xbf16>
    %c0_3 = arith.constant 0 : index
    %c0_4 = arith.constant 0 : index
    %c0_5 = arith.constant 0 : index
    %5 = vector.load %arg2[%c0_3, %c0_4, %c0_5] : memref<9x128x128xbf16, #tpu.memory_space<vmem>>, vector<1x128x128xbf16>
    %6 = vector.shape_cast %5 : vector<1x128x128xbf16> to vector<128x128xbf16>
    %cst_6 = arith.constant dense<0.000000e+00> : vector<64x128xf32>
    %7 = tpu.matmul %4, %6, %cst_6 {dimension_numbers = #tpu.dot_dimension_numbers<[1], [0], [0], [1], [0, 0, 1, 1], [], []>} : vector<64x128xbf16>, vector<128x128xbf16>, vector<64x128xf32> -> vector<64x128xf32>
    %8 = arith.addf %0, %7 : vector<64x128xf32>
    %c1 = arith.constant 1 : index
    %c0_7 = arith.constant 0 : index
    %c0_8 = arith.constant 0 : index
    %c0_9 = arith.constant 0 : index
    %9 = vector.load %arg1[%c1, %c0_7, %c0_8, %c0_9] : memref<4x9x9x128xf32, #tpu.memory_space<vmem>>, vector<1x8x8x128xf32>
    %10 = vector.shape_cast %9 : vector<1x8x8x128xf32> to vector<8x8x128xf32>
    %11 = vector.shape_cast %10 : vector<8x8x128xf32> to vector<64x128xf32>
    %12 = arith.truncf %11 : vector<64x128xf32> to vector<64x128xbf16>
    %c1_10 = arith.constant 1 : index
    %c0_11 = arith.constant 0 : index
    %c0_12 = arith.constant 0 : index
    %13 = vector.load %arg2[%c1_10, %c0_11, %c0_12] : memref<9x128x128xbf16, #tpu.memory_space<vmem>>, vector<1x128x128xbf16>
    %14 = vector.shape_cast %13 : vector<1x128x128xbf16> to vector<128x128xbf16>
    %cst_13 = arith.constant dense<0.000000e+00> : vector<64x128xf32>
    %15 = tpu.matmul %12, %14, %cst_13 {dimension_numbers = #tpu.dot_dimension_numbers<[1], [0], [0], [1], [0, 0, 1, 1], [], []>} : vector<64x128xbf16>, vector<128x128xbf16>, vector<64x128xf32> -> vector<64x128xf32>
    %16 = arith.addf %8, %15 : vector<64x128xf32>
    %c0_14 = arith.constant 0 : index
    %c0_15 = arith.constant 0 : index
    %c1_16 = arith.constant 1 : index
    %c0_17 = arith.constant 0 : index
    %17 = vector.load %arg1[%c0_14, %c0_15, %c1_16, %c0_17] : memref<4x9x9x128xf32, #tpu.memory_space<vmem>>, vector<1x8x8x128xf32>
    %18 = vector.shape_cast %17 : vector<1x8x8x128xf32> to vector<8x8x128xf32>
    %19 = vector.shape_cast %18 : vector<8x8x128xf32> to vector<64x128xf32>
    %20 = arith.truncf %19 : vector<64x128xf32> to vector<64x128xbf16>
    %c2 = arith.constant 2 : index
    %c0_18 = arith.constant 0 : index
    %c0_19 = arith.constant 0 : index
    %21 = vector.load %arg2[%c2, %c0_18, %c0_19] : memref<9x128x128xbf16, #tpu.memory_space<vmem>>, vector<1x128x128xbf16>
    %22 = vector.shape_cast %21 : vector<1x128x128xbf16> to vector<128x128xbf16>
    %cst_20 = arith.constant dense<0.000000e+00> : vector<64x128xf32>
    %23 = tpu.matmul %20, %22, %cst_20 {dimension_numbers = #tpu.dot_dimension_numbers<[1], [0], [0], [1], [0, 0, 1, 1], [], []>} : vector<64x128xbf16>, vector<128x128xbf16>, vector<64x128xf32> -> vector<64x128xf32>
    %24 = arith.addf %16, %23 : vector<64x128xf32>
    %c2_21 = arith.constant 2 : index
    %c0_22 = arith.constant 0 : index
    %c0_23 = arith.constant 0 : index
    %c0_24 = arith.constant 0 : index
    %25 = vector.load %arg1[%c2_21, %c0_22, %c0_23, %c0_24] : memref<4x9x9x128xf32, #tpu.memory_space<vmem>>, vector<1x8x8x128xf32>
    %26 = vector.shape_cast %25 : vector<1x8x8x128xf32> to vector<8x8x128xf32>
    %27 = vector.shape_cast %26 : vector<8x8x128xf32> to vector<64x128xf32>
    %28 = arith.truncf %27 : vector<64x128xf32> to vector<64x128xbf16>
    %c3 = arith.constant 3 : index
    %c0_25 = arith.constant 0 : index
    %c0_26 = arith.constant 0 : index
    %29 = vector.load %arg2[%c3, %c0_25, %c0_26] : memref<9x128x128xbf16, #tpu.memory_space<vmem>>, vector<1x128x128xbf16>
    %30 = vector.shape_cast %29 : vector<1x128x128xbf16> to vector<128x128xbf16>
    %cst_27 = arith.constant dense<0.000000e+00> : vector<64x128xf32>
    %31 = tpu.matmul %28, %30, %cst_27 {dimension_numbers = #tpu.dot_dimension_numbers<[1], [0], [0], [1], [0, 0, 1, 1], [], []>} : vector<64x128xbf16>, vector<128x128xbf16>, vector<64x128xf32> -> vector<64x128xf32>
    %32 = arith.addf %24, %31 : vector<64x128xf32>
    %c3_28 = arith.constant 3 : index
    %c0_29 = arith.constant 0 : index
    %c0_30 = arith.constant 0 : index
    %c0_31 = arith.constant 0 : index
    %33 = vector.load %arg1[%c3_28, %c0_29, %c0_30, %c0_31] : memref<4x9x9x128xf32, #tpu.memory_space<vmem>>, vector<1x8x8x128xf32>
    %34 = vector.shape_cast %33 : vector<1x8x8x128xf32> to vector<8x8x128xf32>
    %35 = vector.shape_cast %34 : vector<8x8x128xf32> to vector<64x128xf32>
    %36 = arith.truncf %35 : vector<64x128xf32> to vector<64x128xbf16>
    %c4 = arith.constant 4 : index
    %c0_32 = arith.constant 0 : index
    %c0_33 = arith.constant 0 : index
    %37 = vector.load %arg2[%c4, %c0_32, %c0_33] : memref<9x128x128xbf16, #tpu.memory_space<vmem>>, vector<1x128x128xbf16>
    %38 = vector.shape_cast %37 : vector<1x128x128xbf16> to vector<128x128xbf16>
    %cst_34 = arith.constant dense<0.000000e+00> : vector<64x128xf32>
    %39 = tpu.matmul %36, %38, %cst_34 {dimension_numbers = #tpu.dot_dimension_numbers<[1], [0], [0], [1], [0, 0, 1, 1], [], []>} : vector<64x128xbf16>, vector<128x128xbf16>, vector<64x128xf32> -> vector<64x128xf32>
    %40 = arith.addf %32, %39 : vector<64x128xf32>
    %c2_35 = arith.constant 2 : index
    %c0_36 = arith.constant 0 : index
    %c1_37 = arith.constant 1 : index
    %c0_38 = arith.constant 0 : index
    %41 = vector.load %arg1[%c2_35, %c0_36, %c1_37, %c0_38] : memref<4x9x9x128xf32, #tpu.memory_space<vmem>>, vector<1x8x8x128xf32>
    %42 = vector.shape_cast %41 : vector<1x8x8x128xf32> to vector<8x8x128xf32>
    %43 = vector.shape_cast %42 : vector<8x8x128xf32> to vector<64x128xf32>
    %44 = arith.truncf %43 : vector<64x128xf32> to vector<64x128xbf16>
    %c5 = arith.constant 5 : index
    %c0_39 = arith.constant 0 : index
    %c0_40 = arith.constant 0 : index
    %45 = vector.load %arg2[%c5, %c0_39, %c0_40] : memref<9x128x128xbf16, #tpu.memory_space<vmem>>, vector<1x128x128xbf16>
    %46 = vector.shape_cast %45 : vector<1x128x128xbf16> to vector<128x128xbf16>
    %cst_41 = arith.constant dense<0.000000e+00> : vector<64x128xf32>
    %47 = tpu.matmul %44, %46, %cst_41 {dimension_numbers = #tpu.dot_dimension_numbers<[1], [0], [0], [1], [0, 0, 1, 1], [], []>} : vector<64x128xbf16>, vector<128x128xbf16>, vector<64x128xf32> -> vector<64x128xf32>
    %48 = arith.addf %40, %47 : vector<64x128xf32>
    %c0_42 = arith.constant 0 : index
    %c1_43 = arith.constant 1 : index
    %c0_44 = arith.constant 0 : index
    %c0_45 = arith.constant 0 : index
    %49 = vector.load %arg1[%c0_42, %c1_43, %c0_44, %c0_45] : memref<4x9x9x128xf32, #tpu.memory_space<vmem>>, vector<1x8x8x128xf32>
    %50 = vector.shape_cast %49 : vector<1x8x8x128xf32> to vector<8x8x128xf32>
    %51 = vector.shape_cast %50 : vector<8x8x128xf32> to vector<64x128xf32>
    %52 = arith.truncf %51 : vector<64x128xf32> to vector<64x128xbf16>
    %c6 = arith.constant 6 : index
    %c0_46 = arith.constant 0 : index
    %c0_47 = arith.constant 0 : index
    %53 = vector.load %arg2[%c6, %c0_46, %c0_47] : memref<9x128x128xbf16, #tpu.memory_space<vmem>>, vector<1x128x128xbf16>
    %54 = vector.shape_cast %53 : vector<1x128x128xbf16> to vector<128x128xbf16>
    %cst_48 = arith.constant dense<0.000000e+00> : vector<64x128xf32>
    %55 = tpu.matmul %52, %54, %cst_48 {dimension_numbers = #tpu.dot_dimension_numbers<[1], [0], [0], [1], [0, 0, 1, 1], [], []>} : vector<64x128xbf16>, vector<128x128xbf16>, vector<64x128xf32> -> vector<64x128xf32>
    %56 = arith.addf %48, %55 : vector<64x128xf32>
    %c1_49 = arith.constant 1 : index
    %c1_50 = arith.constant 1 : index
    %c0_51 = arith.constant 0 : index
    %c0_52 = arith.constant 0 : index
    %57 = vector.load %arg1[%c1_49, %c1_50, %c0_51, %c0_52] : memref<4x9x9x128xf32, #tpu.memory_space<vmem>>, vector<1x8x8x128xf32>
    %58 = vector.shape_cast %57 : vector<1x8x8x128xf32> to vector<8x8x128xf32>
    %59 = vector.shape_cast %58 : vector<8x8x128xf32> to vector<64x128xf32>
    %60 = arith.truncf %59 : vector<64x128xf32> to vector<64x128xbf16>
    %c7 = arith.constant 7 : index
    %c0_53 = arith.constant 0 : index
    %c0_54 = arith.constant 0 : index
    %61 = vector.load %arg2[%c7, %c0_53, %c0_54] : memref<9x128x128xbf16, #tpu.memory_space<vmem>>, vector<1x128x128xbf16>
    %62 = vector.shape_cast %61 : vector<1x128x128xbf16> to vector<128x128xbf16>
    %cst_55 = arith.constant dense<0.000000e+00> : vector<64x128xf32>
    %63 = tpu.matmul %60, %62, %cst_55 {dimension_numbers = #tpu.dot_dimension_numbers<[1], [0], [0], [1], [0, 0, 1, 1], [], []>} : vector<64x128xbf16>, vector<128x128xbf16>, vector<64x128xf32> -> vector<64x128xf32>
    %64 = arith.addf %56, %63 : vector<64x128xf32>
    %c0_56 = arith.constant 0 : index
    %c1_57 = arith.constant 1 : index
    %c1_58 = arith.constant 1 : index
    %c0_59 = arith.constant 0 : index
    %65 = vector.load %arg1[%c0_56, %c1_57, %c1_58, %c0_59] : memref<4x9x9x128xf32, #tpu.memory_space<vmem>>, vector<1x8x8x128xf32>
    %66 = vector.shape_cast %65 : vector<1x8x8x128xf32> to vector<8x8x128xf32>
    %67 = vector.shape_cast %66 : vector<8x8x128xf32> to vector<64x128xf32>
    %68 = arith.truncf %67 : vector<64x128xf32> to vector<64x128xbf16>
    %c8 = arith.constant 8 : index
    %c0_60 = arith.constant 0 : index
    %c0_61 = arith.constant 0 : index
    %69 = vector.load %arg2[%c8, %c0_60, %c0_61] : memref<9x128x128xbf16, #tpu.memory_space<vmem>>, vector<1x128x128xbf16>
    %70 = vector.shape_cast %69 : vector<1x128x128xbf16> to vector<128x128xbf16>
    %cst_62 = arith.constant dense<0.000000e+00> : vector<64x128xf32>
    %71 = tpu.matmul %68, %70, %cst_62 {dimension_numbers = #tpu.dot_dimension_numbers<[1], [0], [0], [1], [0, 0, 1, 1], [], []>} : vector<64x128xbf16>, vector<128x128xbf16>, vector<64x128xf32> -> vector<64x128xf32>
    %72 = arith.addf %64, %71 : vector<64x128xf32>
    %73 = vector.shape_cast %72 : vector<64x128xf32> to vector<8x8x128xf32>
    %74 = arith.truncf %73 : vector<8x8x128xf32> to vector<8x8x128xbf16>
    %c0_63 = arith.constant 0 : index
    %c0_64 = arith.constant 0 : index
    %c0_65 = arith.constant 0 : index
    %c0_66 = arith.constant 0 : index
    %75 = vector.load %arg5[%c0_63, %c0_64, %c0_65, %c0_66] : memref<1x8x8x128xbf16, #tpu.memory_space<vmem>>, vector<1x8x8x128xbf16>
    %76 = vector.shape_cast %75 : vector<1x8x8x128xbf16> to vector<8x8x128xbf16>
    %77 = vector.shape_cast %74 : vector<8x8x128xbf16> to vector<1x8x8x128xbf16>
    tpu.vector_store %arg5[%c0_63, %c0_64, %c0_65, %c0_66], %77 {strides = array<i32>} : memref<1x8x8x128xbf16, #tpu.memory_space<vmem>>, vector<1x8x8x128xbf16>,
    %c0_i32 = arith.constant 0 : i32
    %78 = arith.cmpi eq, %arg0, %c0_i32 : i32
    %79 = arith.extui %78 : i1 to i32
    %c0_i32_67 = arith.constant 0 : i32
    %80 = arith.cmpi ne, %79, %c0_i32_67 : i32
    scf.if %80 {
      %cst_79 = arith.constant 0.000000e+00 : f32
      %95 = vector.broadcast %cst_79 : f32 to vector<2x128xf32>
      %c0_80 = arith.constant 0 : index
      %c0_81 = arith.constant 0 : index
      %96 = vector.load %arg6[%c0_80, %c0_81] : memref<2x128xf32, #tpu.memory_space<vmem>>, vector<2x128xf32>
      tpu.vector_store %arg6[%c0_80, %c0_81], %95 {strides = array<i32>} : memref<2x128xf32, #tpu.memory_space<vmem>>, vector<2x128xf32>,
    } else {
    }
    %c0_68 = arith.constant 0 : index
    %c0_69 = arith.constant 0 : index
    %81 = vector.load %arg6[%c0_68, %c0_69] : memref<2x128xf32, #tpu.memory_space<vmem>>, vector<1x128xf32>
    %cst_70 = arith.constant dense<0.000000e+00> : vector<128xf32>
    %82 = vector.multi_reduction <add>, %72, %cst_70 [0] : vector<64x128xf32> to vector<128xf32>
    %83 = vector.shape_cast %82 : vector<128xf32> to vector<1x128xf32>
    %84 = arith.addf %81, %83 : vector<1x128xf32>
    %c0_71 = arith.constant 0 : index
    %c0_72 = arith.constant 0 : index
    %85 = vector.load %arg6[%c0_71, %c0_72] : memref<2x128xf32, #tpu.memory_space<vmem>>, vector<1x128xf32>
    tpu.vector_store %arg6[%c0_71, %c0_72], %84 {strides = array<i32>} : memref<2x128xf32, #tpu.memory_space<vmem>>, vector<1x128xf32>,
    %c1_73 = arith.constant 1 : index
    %c0_74 = arith.constant 0 : index
    %86 = vector.load %arg6[%c1_73, %c0_74] : memref<2x128xf32, #tpu.memory_space<vmem>>, vector<1x128xf32>
    %87 = arith.mulf %72, %72 : vector<64x128xf32>
    %cst_75 = arith.constant dense<0.000000e+00> : vector<128xf32>
    %88 = vector.multi_reduction <add>, %87, %cst_75 [0] : vector<64x128xf32> to vector<128xf32>
    %89 = vector.shape_cast %88 : vector<128xf32> to vector<1x128xf32>
    %90 = arith.addf %86, %89 : vector<1x128xf32>
    %c1_76 = arith.constant 1 : index
    %c0_77 = arith.constant 0 : index
    %91 = vector.load %arg6[%c1_76, %c0_77] : memref<2x128xf32, #tpu.memory_space<vmem>>, vector<1x128xf32>
    tpu.vector_store %arg6[%c1_76, %c0_77], %90 {strides = array<i32>} : memref<2x128xf32, #tpu.memory_space<vmem>>, vector<1x128xf32>,
    %c1_i32 = arith.constant 1 : i32
    %92 = arith.cmpi eq, %arg0, %c1_i32 : i32
    %93 = arith.extui %92 : i1 to i32
    %c0_i32_78 = arith.constant 0 : i32
    %94 = arith.cmpi ne, %93, %c0_i32_78 : i32
    scf.if %94 {
      %c0_79 = arith.constant 0 : index
      %c0_80 = arith.constant 0 : index
      %95 = vector.load %arg6[%c0_79, %c0_80] : memref<2x128xf32, #tpu.memory_space<vmem>>, vector<1x128xf32>
      %cst_81 = arith.constant 7.812500e-03 : f32
      %96 = vector.broadcast %cst_81 : f32 to vector<1x128xf32>
      %97 = arith.mulf %95, %96 : vector<1x128xf32>
      %c1_82 = arith.constant 1 : index
      %c0_83 = arith.constant 0 : index
      %98 = vector.load %arg6[%c1_82, %c0_83] : memref<2x128xf32, #tpu.memory_space<vmem>>, vector<1x128xf32>
      %cst_84 = arith.constant 7.812500e-03 : f32
      %99 = vector.broadcast %cst_84 : f32 to vector<1x128xf32>
      %100 = arith.mulf %98, %99 : vector<1x128xf32>
      %101 = arith.mulf %97, %97 : vector<1x128xf32>
      %102 = arith.subf %100, %101 : vector<1x128xf32>
      %c0_85 = arith.constant 0 : index
      %c0_86 = arith.constant 0 : index
      %103 = vector.load %arg3[%c0_85, %c0_86] : memref<1x128xf32, #tpu.memory_space<vmem>>, vector<1x128xf32>
      %cst_87 = arith.constant 9.99999974E-6 : f32
      %104 = vector.broadcast %cst_87 : f32 to vector<1x128xf32>
      %105 = arith.addf %102, %104 : vector<1x128xf32>
      %106 = math.rsqrt %105 : vector<1x128xf32>
      %107 = arith.mulf %103, %106 : vector<1x128xf32>
      %c0_88 = arith.constant 0 : index
      %c0_89 = arith.constant 0 : index
      %108 = vector.load %arg6[%c0_88, %c0_89] : memref<2x128xf32, #tpu.memory_space<vmem>>, vector<1x128xf32>
      tpu.vector_store %arg6[%c0_88, %c0_89], %107 {strides = array<i32>} : memref<2x128xf32, #tpu.memory_space<vmem>>, vector<1x128xf32>,
      %c0_90 = arith.constant 0 : index
      %c0_91 = arith.constant 0 : index
      %109 = vector.load %arg4[%c0_90, %c0_91] : memref<1x128xf32, #tpu.memory_space<vmem>>, vector<1x128xf32>
      %110 = arith.mulf %97, %107 : vector<1x128xf32>
      %111 = arith.subf %109, %110 : vector<1x128xf32>
      %c1_92 = arith.constant 1 : index
      %c0_93 = arith.constant 0 : index
      %112 = vector.load %arg6[%c1_92, %c0_93] : memref<2x128xf32, #tpu.memory_space<vmem>>, vector<1x128xf32>
      tpu.vector_store %arg6[%c1_92, %c0_93], %111 {strides = array<i32>} : memref<2x128xf32, #tpu.memory_space<vmem>>, vector<1x128xf32>,
    } else {
    }
    return
  }
  func.func @transform_0(%arg0: i32) -> (i32, i32, i32, i32) {
    %c0_i32 = arith.constant 0 : i32
    %c0_i32_0 = arith.constant 0 : i32
    %c0_i32_1 = arith.constant 0 : i32
    %c0_i32_2 = arith.constant 0 : i32
    return %arg0, %c0_i32, %c0_i32_0, %c0_i32_1 : i32, i32, i32, i32
  }
  func.func @transform_1(%arg0: i32) -> (i32, i32, i32) {
    %c0_i32 = arith.constant 0 : i32
    %c0_i32_0 = arith.constant 0 : i32
    %c0_i32_1 = arith.constant 0 : i32
    %c0_i32_2 = arith.constant 0 : i32
    return %c0_i32, %c0_i32_0, %c0_i32_1 : i32, i32, i32
  }
  func.func @transform_2(%arg0: i32) -> (i32, i32) {
    %c0_i32 = arith.constant 0 : i32
    %c0_i32_0 = arith.constant 0 : i32
    %c0_i32_1 = arith.constant 0 : i32
    return %c0_i32, %c0_i32_0 : i32, i32
  }
  func.func @transform_3(%arg0: i32) -> (i32, i32) {
    %c0_i32 = arith.constant 0 : i32
    %c0_i32_0 = arith.constant 0 : i32
    %c0_i32_1 = arith.constant 0 : i32
    return %c0_i32, %c0_i32_0 : i32, i32
  }
  func.func @transform_4(%arg0: i32) -> (i32, i32, i32, i32) {
    %c0_i32 = arith.constant 0 : i32
    %c0_i32_0 = arith.constant 0 : i32
    %c0_i32_1 = arith.constant 0 : i32
    %c0_i32_2 = arith.constant 0 : i32
    return %arg0, %c0_i32, %c0_i32_0, %c0_i32_1 : i32, i32, i32, i32
  }
  func.func @transform_5(%arg0: i32) -> (i32, i32) {
    %c0_i32 = arith.constant 0 : i32
    %c0_i32_0 = arith.constant 0 : i32
    %c0_i32_1 = arith.constant 0 : i32
    return %c0_i32, %c0_i32_0 : i32, i32
  }
}

module attributes {stable_mosaic.version = 11 : i64} {
  func.func @_bn_relu_conv2_stats_kernel(%arg0: i32, %arg1: memref<1x8x8x128xbf16, #tpu.memory_space<vmem>>, %arg2: memref<2x128xf32, #tpu.memory_space<vmem>>, %arg3: memref<9x128x128xbf16, #tpu.memory_space<vmem>>, %arg4: memref<1x128xf32, #tpu.memory_space<vmem>>, %arg5: memref<1x128xf32, #tpu.memory_space<vmem>>, %arg6: memref<1x8x8x128xbf16, #tpu.memory_space<vmem>>, %arg7: memref<2x128xf32, #tpu.memory_space<vmem>>, %arg8: memref<10x10x128xf32, #tpu.memory_space<vmem>>) attributes {dimension_semantics = [#tpu.dimension_semantics<arbitrary>], iteration_bounds = array<i64: 2>, scalar_prefetch = 0 : i64, scratch_operands = 1 : i64, tpu.core_type = #tpu.core_type<tc>, window_params = [{transform_indices = @transform_0, window_bounds = array<i64: 1, 8, 8, 128>}, {pipeline_mode = #tpu.pipeline_mode<synchronous>, transform_indices = @transform_1, window_bounds = array<i64: 2, 128>}, {pipeline_mode = #tpu.pipeline_mode<synchronous>, transform_indices = @transform_2, window_bounds = array<i64: 9, 128, 128>}, {pipeline_mode = #tpu.pipeline_mode<synchronous>, transform_indices = @transform_3, window_bounds = array<i64: 1, 128>}, {pipeline_mode = #tpu.pipeline_mode<synchronous>, transform_indices = @transform_4, window_bounds = array<i64: 1, 128>}, {transform_indices = @transform_5, window_bounds = array<i64: 1, 8, 8, 128>}, {pipeline_mode = #tpu.pipeline_mode<synchronous>, transform_indices = @transform_6, window_bounds = array<i64: 2, 128>}]} {
    %c0_i32 = arith.constant 0 : i32
    %0 = arith.cmpi eq, %arg0, %c0_i32 : i32
    %1 = arith.extui %0 : i1 to i32
    %c0_i32_0 = arith.constant 0 : i32
    %2 = arith.cmpi ne, %1, %c0_i32_0 : i32
    scf.if %2 {
      %cst_84 = arith.constant 0.000000e+00 : f32
      %103 = vector.broadcast %cst_84 : f32 to vector<10x10x128xf32>
      %c0_85 = arith.constant 0 : index
      %c0_86 = arith.constant 0 : index
      %c0_87 = arith.constant 0 : index
      %104 = vector.load %arg8[%c0_85, %c0_86, %c0_87] : memref<10x10x128xf32, #tpu.memory_space<vmem>>, vector<10x10x128xf32>
      tpu.vector_store %arg8[%c0_85, %c0_86, %c0_87], %103 {strides = array<i32>} : memref<10x10x128xf32, #tpu.memory_space<vmem>>, vector<10x10x128xf32>,
    } else {
    }
    %c0 = arith.constant 0 : index
    %c0_1 = arith.constant 0 : index
    %3 = vector.load %arg2[%c0, %c0_1] : memref<2x128xf32, #tpu.memory_space<vmem>>, vector<1x128xf32>
    %4 = vector.shape_cast %3 : vector<1x128xf32> to vector<1x1x128xf32>
    %c1 = arith.constant 1 : index
    %c0_2 = arith.constant 0 : index
    %5 = vector.load %arg2[%c1, %c0_2] : memref<2x128xf32, #tpu.memory_space<vmem>>, vector<1x128xf32>
    %6 = vector.shape_cast %5 : vector<1x128xf32> to vector<1x1x128xf32>
    %c0_3 = arith.constant 0 : index
    %c0_4 = arith.constant 0 : index
    %c0_5 = arith.constant 0 : index
    %c0_6 = arith.constant 0 : index
    %7 = vector.load %arg1[%c0_3, %c0_4, %c0_5, %c0_6] : memref<1x8x8x128xbf16, #tpu.memory_space<vmem>>, vector<1x8x8x128xbf16>
    %8 = vector.shape_cast %7 : vector<1x8x8x128xbf16> to vector<8x8x128xbf16>
    %9 = arith.extf %8 : vector<8x8x128xbf16> to vector<8x8x128xf32>
    %10 = vector.broadcast %4 : vector<1x1x128xf32> to vector<8x8x128xf32>
    %11 = arith.mulf %9, %10 : vector<8x8x128xf32>
    %12 = vector.broadcast %6 : vector<1x1x128xf32> to vector<8x8x128xf32>
    %13 = arith.addf %11, %12 : vector<8x8x128xf32>
    %cst = arith.constant 0.000000e+00 : f32
    %14 = vector.broadcast %cst : f32 to vector<8x8x128xf32>
    %15 = arith.maximumf %13, %14 : vector<8x8x128xf32>
    %c1_7 = arith.constant 1 : index
    %c1_8 = arith.constant 1 : index
    %c0_9 = arith.constant 0 : index
    %16 = vector.load %arg8[%c1_7, %c1_8, %c0_9] : memref<10x10x128xf32, #tpu.memory_space<vmem>>, vector<8x8x128xf32>
    tpu.vector_store %arg8[%c1_7, %c1_8, %c0_9], %15 {strides = array<i32>} : memref<10x10x128xf32, #tpu.memory_space<vmem>>, vector<8x8x128xf32>,
    %cst_10 = arith.constant 0.000000e+00 : f32
    %17 = vector.broadcast %cst_10 : f32 to vector<64x128xf32>
    %c0_11 = arith.constant 0 : index
    %c0_12 = arith.constant 0 : index
    %c0_13 = arith.constant 0 : index
    %18 = vector.load %arg8[%c0_11, %c0_12, %c0_13] : memref<10x10x128xf32, #tpu.memory_space<vmem>>, vector<8x8x128xf32>
    %19 = vector.shape_cast %18 : vector<8x8x128xf32> to vector<64x128xf32>
    %20 = arith.truncf %19 : vector<64x128xf32> to vector<64x128xbf16>
    %c0_14 = arith.constant 0 : index
    %c0_15 = arith.constant 0 : index
    %c0_16 = arith.constant 0 : index
    %21 = vector.load %arg3[%c0_14, %c0_15, %c0_16] : memref<9x128x128xbf16, #tpu.memory_space<vmem>>, vector<1x128x128xbf16>
    %22 = vector.shape_cast %21 : vector<1x128x128xbf16> to vector<128x128xbf16>
    %cst_17 = arith.constant dense<0.000000e+00> : vector<64x128xf32>
    %23 = tpu.matmul %20, %22, %cst_17 {dimension_numbers = #tpu.dot_dimension_numbers<[1], [0], [0], [1], [0, 0, 1, 1], [], []>} : vector<64x128xbf16>, vector<128x128xbf16>, vector<64x128xf32> -> vector<64x128xf32>
    %24 = arith.addf %17, %23 : vector<64x128xf32>
    %c0_18 = arith.constant 0 : index
    %c1_19 = arith.constant 1 : index
    %c0_20 = arith.constant 0 : index
    %25 = vector.load %arg8[%c0_18, %c1_19, %c0_20] : memref<10x10x128xf32, #tpu.memory_space<vmem>>, vector<8x8x128xf32>
    %26 = vector.shape_cast %25 : vector<8x8x128xf32> to vector<64x128xf32>
    %27 = arith.truncf %26 : vector<64x128xf32> to vector<64x128xbf16>
    %c1_21 = arith.constant 1 : index
    %c0_22 = arith.constant 0 : index
    %c0_23 = arith.constant 0 : index
    %28 = vector.load %arg3[%c1_21, %c0_22, %c0_23] : memref<9x128x128xbf16, #tpu.memory_space<vmem>>, vector<1x128x128xbf16>
    %29 = vector.shape_cast %28 : vector<1x128x128xbf16> to vector<128x128xbf16>
    %cst_24 = arith.constant dense<0.000000e+00> : vector<64x128xf32>
    %30 = tpu.matmul %27, %29, %cst_24 {dimension_numbers = #tpu.dot_dimension_numbers<[1], [0], [0], [1], [0, 0, 1, 1], [], []>} : vector<64x128xbf16>, vector<128x128xbf16>, vector<64x128xf32> -> vector<64x128xf32>
    %31 = arith.addf %24, %30 : vector<64x128xf32>
    %c0_25 = arith.constant 0 : index
    %c2 = arith.constant 2 : index
    %c0_26 = arith.constant 0 : index
    %32 = vector.load %arg8[%c0_25, %c2, %c0_26] : memref<10x10x128xf32, #tpu.memory_space<vmem>>, vector<8x8x128xf32>
    %33 = vector.shape_cast %32 : vector<8x8x128xf32> to vector<64x128xf32>
    %34 = arith.truncf %33 : vector<64x128xf32> to vector<64x128xbf16>
    %c2_27 = arith.constant 2 : index
    %c0_28 = arith.constant 0 : index
    %c0_29 = arith.constant 0 : index
    %35 = vector.load %arg3[%c2_27, %c0_28, %c0_29] : memref<9x128x128xbf16, #tpu.memory_space<vmem>>, vector<1x128x128xbf16>
    %36 = vector.shape_cast %35 : vector<1x128x128xbf16> to vector<128x128xbf16>
    %cst_30 = arith.constant dense<0.000000e+00> : vector<64x128xf32>
    %37 = tpu.matmul %34, %36, %cst_30 {dimension_numbers = #tpu.dot_dimension_numbers<[1], [0], [0], [1], [0, 0, 1, 1], [], []>} : vector<64x128xbf16>, vector<128x128xbf16>, vector<64x128xf32> -> vector<64x128xf32>
    %38 = arith.addf %31, %37 : vector<64x128xf32>
    %c1_31 = arith.constant 1 : index
    %c0_32 = arith.constant 0 : index
    %c0_33 = arith.constant 0 : index
    %39 = vector.load %arg8[%c1_31, %c0_32, %c0_33] : memref<10x10x128xf32, #tpu.memory_space<vmem>>, vector<8x8x128xf32>
    %40 = vector.shape_cast %39 : vector<8x8x128xf32> to vector<64x128xf32>
    %41 = arith.truncf %40 : vector<64x128xf32> to vector<64x128xbf16>
    %c3 = arith.constant 3 : index
    %c0_34 = arith.constant 0 : index
    %c0_35 = arith.constant 0 : index
    %42 = vector.load %arg3[%c3, %c0_34, %c0_35] : memref<9x128x128xbf16, #tpu.memory_space<vmem>>, vector<1x128x128xbf16>
    %43 = vector.shape_cast %42 : vector<1x128x128xbf16> to vector<128x128xbf16>
    %cst_36 = arith.constant dense<0.000000e+00> : vector<64x128xf32>
    %44 = tpu.matmul %41, %43, %cst_36 {dimension_numbers = #tpu.dot_dimension_numbers<[1], [0], [0], [1], [0, 0, 1, 1], [], []>} : vector<64x128xbf16>, vector<128x128xbf16>, vector<64x128xf32> -> vector<64x128xf32>
    %45 = arith.addf %38, %44 : vector<64x128xf32>
    %c1_37 = arith.constant 1 : index
    %c1_38 = arith.constant 1 : index
    %c0_39 = arith.constant 0 : index
    %46 = vector.load %arg8[%c1_37, %c1_38, %c0_39] : memref<10x10x128xf32, #tpu.memory_space<vmem>>, vector<8x8x128xf32>
    %47 = vector.shape_cast %46 : vector<8x8x128xf32> to vector<64x128xf32>
    %48 = arith.truncf %47 : vector<64x128xf32> to vector<64x128xbf16>
    %c4 = arith.constant 4 : index
    %c0_40 = arith.constant 0 : index
    %c0_41 = arith.constant 0 : index
    %49 = vector.load %arg3[%c4, %c0_40, %c0_41] : memref<9x128x128xbf16, #tpu.memory_space<vmem>>, vector<1x128x128xbf16>
    %50 = vector.shape_cast %49 : vector<1x128x128xbf16> to vector<128x128xbf16>
    %cst_42 = arith.constant dense<0.000000e+00> : vector<64x128xf32>
    %51 = tpu.matmul %48, %50, %cst_42 {dimension_numbers = #tpu.dot_dimension_numbers<[1], [0], [0], [1], [0, 0, 1, 1], [], []>} : vector<64x128xbf16>, vector<128x128xbf16>, vector<64x128xf32> -> vector<64x128xf32>
    %52 = arith.addf %45, %51 : vector<64x128xf32>
    %c1_43 = arith.constant 1 : index
    %c2_44 = arith.constant 2 : index
    %c0_45 = arith.constant 0 : index
    %53 = vector.load %arg8[%c1_43, %c2_44, %c0_45] : memref<10x10x128xf32, #tpu.memory_space<vmem>>, vector<8x8x128xf32>
    %54 = vector.shape_cast %53 : vector<8x8x128xf32> to vector<64x128xf32>
    %55 = arith.truncf %54 : vector<64x128xf32> to vector<64x128xbf16>
    %c5 = arith.constant 5 : index
    %c0_46 = arith.constant 0 : index
    %c0_47 = arith.constant 0 : index
    %56 = vector.load %arg3[%c5, %c0_46, %c0_47] : memref<9x128x128xbf16, #tpu.memory_space<vmem>>, vector<1x128x128xbf16>
    %57 = vector.shape_cast %56 : vector<1x128x128xbf16> to vector<128x128xbf16>
    %cst_48 = arith.constant dense<0.000000e+00> : vector<64x128xf32>
    %58 = tpu.matmul %55, %57, %cst_48 {dimension_numbers = #tpu.dot_dimension_numbers<[1], [0], [0], [1], [0, 0, 1, 1], [], []>} : vector<64x128xbf16>, vector<128x128xbf16>, vector<64x128xf32> -> vector<64x128xf32>
    %59 = arith.addf %52, %58 : vector<64x128xf32>
    %c2_49 = arith.constant 2 : index
    %c0_50 = arith.constant 0 : index
    %c0_51 = arith.constant 0 : index
    %60 = vector.load %arg8[%c2_49, %c0_50, %c0_51] : memref<10x10x128xf32, #tpu.memory_space<vmem>>, vector<8x8x128xf32>
    %61 = vector.shape_cast %60 : vector<8x8x128xf32> to vector<64x128xf32>
    %62 = arith.truncf %61 : vector<64x128xf32> to vector<64x128xbf16>
    %c6 = arith.constant 6 : index
    %c0_52 = arith.constant 0 : index
    %c0_53 = arith.constant 0 : index
    %63 = vector.load %arg3[%c6, %c0_52, %c0_53] : memref<9x128x128xbf16, #tpu.memory_space<vmem>>, vector<1x128x128xbf16>
    %64 = vector.shape_cast %63 : vector<1x128x128xbf16> to vector<128x128xbf16>
    %cst_54 = arith.constant dense<0.000000e+00> : vector<64x128xf32>
    %65 = tpu.matmul %62, %64, %cst_54 {dimension_numbers = #tpu.dot_dimension_numbers<[1], [0], [0], [1], [0, 0, 1, 1], [], []>} : vector<64x128xbf16>, vector<128x128xbf16>, vector<64x128xf32> -> vector<64x128xf32>
    %66 = arith.addf %59, %65 : vector<64x128xf32>
    %c2_55 = arith.constant 2 : index
    %c1_56 = arith.constant 1 : index
    %c0_57 = arith.constant 0 : index
    %67 = vector.load %arg8[%c2_55, %c1_56, %c0_57] : memref<10x10x128xf32, #tpu.memory_space<vmem>>, vector<8x8x128xf32>
    %68 = vector.shape_cast %67 : vector<8x8x128xf32> to vector<64x128xf32>
    %69 = arith.truncf %68 : vector<64x128xf32> to vector<64x128xbf16>
    %c7 = arith.constant 7 : index
    %c0_58 = arith.constant 0 : index
    %c0_59 = arith.constant 0 : index
    %70 = vector.load %arg3[%c7, %c0_58, %c0_59] : memref<9x128x128xbf16, #tpu.memory_space<vmem>>, vector<1x128x128xbf16>
    %71 = vector.shape_cast %70 : vector<1x128x128xbf16> to vector<128x128xbf16>
    %cst_60 = arith.constant dense<0.000000e+00> : vector<64x128xf32>
    %72 = tpu.matmul %69, %71, %cst_60 {dimension_numbers = #tpu.dot_dimension_numbers<[1], [0], [0], [1], [0, 0, 1, 1], [], []>} : vector<64x128xbf16>, vector<128x128xbf16>, vector<64x128xf32> -> vector<64x128xf32>
    %73 = arith.addf %66, %72 : vector<64x128xf32>
    %c2_61 = arith.constant 2 : index
    %c2_62 = arith.constant 2 : index
    %c0_63 = arith.constant 0 : index
    %74 = vector.load %arg8[%c2_61, %c2_62, %c0_63] : memref<10x10x128xf32, #tpu.memory_space<vmem>>, vector<8x8x128xf32>
    %75 = vector.shape_cast %74 : vector<8x8x128xf32> to vector<64x128xf32>
    %76 = arith.truncf %75 : vector<64x128xf32> to vector<64x128xbf16>
    %c8 = arith.constant 8 : index
    %c0_64 = arith.constant 0 : index
    %c0_65 = arith.constant 0 : index
    %77 = vector.load %arg3[%c8, %c0_64, %c0_65] : memref<9x128x128xbf16, #tpu.memory_space<vmem>>, vector<1x128x128xbf16>
    %78 = vector.shape_cast %77 : vector<1x128x128xbf16> to vector<128x128xbf16>
    %cst_66 = arith.constant dense<0.000000e+00> : vector<64x128xf32>
    %79 = tpu.matmul %76, %78, %cst_66 {dimension_numbers = #tpu.dot_dimension_numbers<[1], [0], [0], [1], [0, 0, 1, 1], [], []>} : vector<64x128xbf16>, vector<128x128xbf16>, vector<64x128xf32> -> vector<64x128xf32>
    %80 = arith.addf %73, %79 : vector<64x128xf32>
    %81 = vector.shape_cast %80 : vector<64x128xf32> to vector<8x8x128xf32>
    %82 = arith.truncf %81 : vector<8x8x128xf32> to vector<8x8x128xbf16>
    %c0_67 = arith.constant 0 : index
    %c0_68 = arith.constant 0 : index
    %c0_69 = arith.constant 0 : index
    %c0_70 = arith.constant 0 : index
    %83 = vector.load %arg6[%c0_67, %c0_68, %c0_69, %c0_70] : memref<1x8x8x128xbf16, #tpu.memory_space<vmem>>, vector<1x8x8x128xbf16>
    %84 = vector.shape_cast %83 : vector<1x8x8x128xbf16> to vector<8x8x128xbf16>
    %85 = vector.shape_cast %82 : vector<8x8x128xbf16> to vector<1x8x8x128xbf16>
    tpu.vector_store %arg6[%c0_67, %c0_68, %c0_69, %c0_70], %85 {strides = array<i32>} : memref<1x8x8x128xbf16, #tpu.memory_space<vmem>>, vector<1x8x8x128xbf16>,
    %c0_i32_71 = arith.constant 0 : i32
    %86 = arith.cmpi eq, %arg0, %c0_i32_71 : i32
    %87 = arith.extui %86 : i1 to i32
    %c0_i32_72 = arith.constant 0 : i32
    %88 = arith.cmpi ne, %87, %c0_i32_72 : i32
    scf.if %88 {
      %cst_84 = arith.constant 0.000000e+00 : f32
      %103 = vector.broadcast %cst_84 : f32 to vector<2x128xf32>
      %c0_85 = arith.constant 0 : index
      %c0_86 = arith.constant 0 : index
      %104 = vector.load %arg7[%c0_85, %c0_86] : memref<2x128xf32, #tpu.memory_space<vmem>>, vector<2x128xf32>
      tpu.vector_store %arg7[%c0_85, %c0_86], %103 {strides = array<i32>} : memref<2x128xf32, #tpu.memory_space<vmem>>, vector<2x128xf32>,
    } else {
    }
    %c0_73 = arith.constant 0 : index
    %c0_74 = arith.constant 0 : index
    %89 = vector.load %arg7[%c0_73, %c0_74] : memref<2x128xf32, #tpu.memory_space<vmem>>, vector<1x128xf32>
    %cst_75 = arith.constant dense<0.000000e+00> : vector<128xf32>
    %90 = vector.multi_reduction <add>, %80, %cst_75 [0] : vector<64x128xf32> to vector<128xf32>
    %91 = vector.shape_cast %90 : vector<128xf32> to vector<1x128xf32>
    %92 = arith.addf %89, %91 : vector<1x128xf32>
    %c0_76 = arith.constant 0 : index
    %c0_77 = arith.constant 0 : index
    %93 = vector.load %arg7[%c0_76, %c0_77] : memref<2x128xf32, #tpu.memory_space<vmem>>, vector<1x128xf32>
    tpu.vector_store %arg7[%c0_76, %c0_77], %92 {strides = array<i32>} : memref<2x128xf32, #tpu.memory_space<vmem>>, vector<1x128xf32>,
    %c1_78 = arith.constant 1 : index
    %c0_79 = arith.constant 0 : index
    %94 = vector.load %arg7[%c1_78, %c0_79] : memref<2x128xf32, #tpu.memory_space<vmem>>, vector<1x128xf32>
    %95 = arith.mulf %80, %80 : vector<64x128xf32>
    %cst_80 = arith.constant dense<0.000000e+00> : vector<128xf32>
    %96 = vector.multi_reduction <add>, %95, %cst_80 [0] : vector<64x128xf32> to vector<128xf32>
    %97 = vector.shape_cast %96 : vector<128xf32> to vector<1x128xf32>
    %98 = arith.addf %94, %97 : vector<1x128xf32>
    %c1_81 = arith.constant 1 : index
    %c0_82 = arith.constant 0 : index
    %99 = vector.load %arg7[%c1_81, %c0_82] : memref<2x128xf32, #tpu.memory_space<vmem>>, vector<1x128xf32>
    tpu.vector_store %arg7[%c1_81, %c0_82], %98 {strides = array<i32>} : memref<2x128xf32, #tpu.memory_space<vmem>>, vector<1x128xf32>,
    %c1_i32 = arith.constant 1 : i32
    %100 = arith.cmpi eq, %arg0, %c1_i32 : i32
    %101 = arith.extui %100 : i1 to i32
    %c0_i32_83 = arith.constant 0 : i32
    %102 = arith.cmpi ne, %101, %c0_i32_83 : i32
    scf.if %102 {
      %c0_84 = arith.constant 0 : index
      %c0_85 = arith.constant 0 : index
      %103 = vector.load %arg7[%c0_84, %c0_85] : memref<2x128xf32, #tpu.memory_space<vmem>>, vector<1x128xf32>
      %cst_86 = arith.constant 7.812500e-03 : f32
      %104 = vector.broadcast %cst_86 : f32 to vector<1x128xf32>
      %105 = arith.mulf %103, %104 : vector<1x128xf32>
      %c1_87 = arith.constant 1 : index
      %c0_88 = arith.constant 0 : index
      %106 = vector.load %arg7[%c1_87, %c0_88] : memref<2x128xf32, #tpu.memory_space<vmem>>, vector<1x128xf32>
      %cst_89 = arith.constant 7.812500e-03 : f32
      %107 = vector.broadcast %cst_89 : f32 to vector<1x128xf32>
      %108 = arith.mulf %106, %107 : vector<1x128xf32>
      %109 = arith.mulf %105, %105 : vector<1x128xf32>
      %110 = arith.subf %108, %109 : vector<1x128xf32>
      %c0_90 = arith.constant 0 : index
      %c0_91 = arith.constant 0 : index
      %111 = vector.load %arg4[%c0_90, %c0_91] : memref<1x128xf32, #tpu.memory_space<vmem>>, vector<1x128xf32>
      %cst_92 = arith.constant 9.99999974E-6 : f32
      %112 = vector.broadcast %cst_92 : f32 to vector<1x128xf32>
      %113 = arith.addf %110, %112 : vector<1x128xf32>
      %114 = math.rsqrt %113 : vector<1x128xf32>
      %115 = arith.mulf %111, %114 : vector<1x128xf32>
      %c0_93 = arith.constant 0 : index
      %c0_94 = arith.constant 0 : index
      %116 = vector.load %arg7[%c0_93, %c0_94] : memref<2x128xf32, #tpu.memory_space<vmem>>, vector<1x128xf32>
      tpu.vector_store %arg7[%c0_93, %c0_94], %115 {strides = array<i32>} : memref<2x128xf32, #tpu.memory_space<vmem>>, vector<1x128xf32>,
      %c0_95 = arith.constant 0 : index
      %c0_96 = arith.constant 0 : index
      %117 = vector.load %arg5[%c0_95, %c0_96] : memref<1x128xf32, #tpu.memory_space<vmem>>, vector<1x128xf32>
      %118 = arith.mulf %105, %115 : vector<1x128xf32>
      %119 = arith.subf %117, %118 : vector<1x128xf32>
      %c1_97 = arith.constant 1 : index
      %c0_98 = arith.constant 0 : index
      %120 = vector.load %arg7[%c1_97, %c0_98] : memref<2x128xf32, #tpu.memory_space<vmem>>, vector<1x128xf32>
      tpu.vector_store %arg7[%c1_97, %c0_98], %119 {strides = array<i32>} : memref<2x128xf32, #tpu.memory_space<vmem>>, vector<1x128xf32>,
    } else {
    }
    return
  }
  func.func @transform_0(%arg0: i32) -> (i32, i32, i32, i32) {
    %c0_i32 = arith.constant 0 : i32
    %c0_i32_0 = arith.constant 0 : i32
    %c0_i32_1 = arith.constant 0 : i32
    %c0_i32_2 = arith.constant 0 : i32
    return %arg0, %c0_i32, %c0_i32_0, %c0_i32_1 : i32, i32, i32, i32
  }
  func.func @transform_1(%arg0: i32) -> (i32, i32) {
    %c0_i32 = arith.constant 0 : i32
    %c0_i32_0 = arith.constant 0 : i32
    %c0_i32_1 = arith.constant 0 : i32
    return %c0_i32, %c0_i32_0 : i32, i32
  }
  func.func @transform_2(%arg0: i32) -> (i32, i32, i32) {
    %c0_i32 = arith.constant 0 : i32
    %c0_i32_0 = arith.constant 0 : i32
    %c0_i32_1 = arith.constant 0 : i32
    %c0_i32_2 = arith.constant 0 : i32
    return %c0_i32, %c0_i32_0, %c0_i32_1 : i32, i32, i32
  }
  func.func @transform_3(%arg0: i32) -> (i32, i32) {
    %c0_i32 = arith.constant 0 : i32
    %c0_i32_0 = arith.constant 0 : i32
    %c0_i32_1 = arith.constant 0 : i32
    return %c0_i32, %c0_i32_0 : i32, i32
  }
  func.func @transform_4(%arg0: i32) -> (i32, i32) {
    %c0_i32 = arith.constant 0 : i32
    %c0_i32_0 = arith.constant 0 : i32
    %c0_i32_1 = arith.constant 0 : i32
    return %c0_i32, %c0_i32_0 : i32, i32
  }
  func.func @transform_5(%arg0: i32) -> (i32, i32, i32, i32) {
    %c0_i32 = arith.constant 0 : i32
    %c0_i32_0 = arith.constant 0 : i32
    %c0_i32_1 = arith.constant 0 : i32
    %c0_i32_2 = arith.constant 0 : i32
    return %arg0, %c0_i32, %c0_i32_0, %c0_i32_1 : i32, i32, i32, i32
  }
  func.func @transform_6(%arg0: i32) -> (i32, i32) {
    %c0_i32 = arith.constant 0 : i32
    %c0_i32_0 = arith.constant 0 : i32
    %c0_i32_1 = arith.constant 0 : i32
    return %c0_i32, %c0_i32_0 : i32, i32
  }
}

module attributes {stable_mosaic.version = 11 : i64} {
  func.func @_bn_convsc_add_relu_kernel(%arg0: i32, %arg1: memref<1x8x8x128xbf16, #tpu.memory_space<vmem>>, %arg2: memref<2x128xf32, #tpu.memory_space<vmem>>, %arg3: memref<1x8x8x128xbf16, #tpu.memory_space<vmem>>, %arg4: memref<128x128xbf16, #tpu.memory_space<vmem>>, %arg5: memref<1x8x8x128xf32, #tpu.memory_space<vmem>>) attributes {dimension_semantics = [#tpu.dimension_semantics<parallel>], iteration_bounds = array<i64: 2>, scalar_prefetch = 0 : i64, scratch_operands = 0 : i64, tpu.core_type = #tpu.core_type<tc>, window_params = [{transform_indices = @transform_0, window_bounds = array<i64: 1, 8, 8, 128>}, {pipeline_mode = #tpu.pipeline_mode<synchronous>, transform_indices = @transform_1, window_bounds = array<i64: 2, 128>}, {transform_indices = @transform_2, window_bounds = array<i64: 1, 8, 8, 128>}, {pipeline_mode = #tpu.pipeline_mode<synchronous>, transform_indices = @transform_3, window_bounds = array<i64: 128, 128>}, {transform_indices = @transform_4, window_bounds = array<i64: 1, 8, 8, 128>}]} {
    %c0 = arith.constant 0 : index
    %c0_0 = arith.constant 0 : index
    %0 = vector.load %arg2[%c0, %c0_0] : memref<2x128xf32, #tpu.memory_space<vmem>>, vector<1x128xf32>
    %1 = vector.shape_cast %0 : vector<1x128xf32> to vector<1x1x128xf32>
    %c1 = arith.constant 1 : index
    %c0_1 = arith.constant 0 : index
    %2 = vector.load %arg2[%c1, %c0_1] : memref<2x128xf32, #tpu.memory_space<vmem>>, vector<1x128xf32>
    %3 = vector.shape_cast %2 : vector<1x128xf32> to vector<1x1x128xf32>
    %c0_2 = arith.constant 0 : index
    %c0_3 = arith.constant 0 : index
    %c0_4 = arith.constant 0 : index
    %c0_5 = arith.constant 0 : index
    %4 = vector.load %arg1[%c0_2, %c0_3, %c0_4, %c0_5] : memref<1x8x8x128xbf16, #tpu.memory_space<vmem>>, vector<1x8x8x128xbf16>
    %5 = vector.shape_cast %4 : vector<1x8x8x128xbf16> to vector<8x8x128xbf16>
    %6 = arith.extf %5 : vector<8x8x128xbf16> to vector<8x8x128xf32>
    %7 = vector.broadcast %1 : vector<1x1x128xf32> to vector<8x8x128xf32>
    %8 = arith.mulf %6, %7 : vector<8x8x128xf32>
    %9 = vector.broadcast %3 : vector<1x1x128xf32> to vector<8x8x128xf32>
    %10 = arith.addf %8, %9 : vector<8x8x128xf32>
    %c0_6 = arith.constant 0 : index
    %c0_7 = arith.constant 0 : index
    %c0_8 = arith.constant 0 : index
    %c0_9 = arith.constant 0 : index
    %11 = vector.load %arg3[%c0_6, %c0_7, %c0_8, %c0_9] : memref<1x8x8x128xbf16, #tpu.memory_space<vmem>>, vector<1x8x8x128xbf16>
    %12 = vector.shape_cast %11 : vector<1x8x8x128xbf16> to vector<8x8x128xbf16>
    %13 = vector.shape_cast %12 : vector<8x8x128xbf16> to vector<64x128xbf16>
    %c0_10 = arith.constant 0 : index
    %c0_11 = arith.constant 0 : index
    %14 = vector.load %arg4[%c0_10, %c0_11] : memref<128x128xbf16, #tpu.memory_space<vmem>>, vector<128x128xbf16>
    %cst = arith.constant dense<0.000000e+00> : vector<64x128xf32>
    %15 = tpu.matmul %13, %14, %cst {dimension_numbers = #tpu.dot_dimension_numbers<[1], [0], [0], [1], [0, 0, 1, 1], [], []>} : vector<64x128xbf16>, vector<128x128xbf16>, vector<64x128xf32> -> vector<64x128xf32>
    %16 = vector.shape_cast %15 : vector<64x128xf32> to vector<8x8x128xf32>
    %17 = arith.addf %10, %16 : vector<8x8x128xf32>
    %cst_12 = arith.constant 0.000000e+00 : f32
    %18 = vector.broadcast %cst_12 : f32 to vector<8x8x128xf32>
    %19 = arith.maximumf %17, %18 : vector<8x8x128xf32>
    %c0_13 = arith.constant 0 : index
    %c0_14 = arith.constant 0 : index
    %c0_15 = arith.constant 0 : index
    %c0_16 = arith.constant 0 : index
    %20 = vector.load %arg5[%c0_13, %c0_14, %c0_15, %c0_16] : memref<1x8x8x128xf32, #tpu.memory_space<vmem>>, vector<1x8x8x128xf32>
    %21 = vector.shape_cast %20 : vector<1x8x8x128xf32> to vector<8x8x128xf32>
    %22 = vector.shape_cast %19 : vector<8x8x128xf32> to vector<1x8x8x128xf32>
    tpu.vector_store %arg5[%c0_13, %c0_14, %c0_15, %c0_16], %22 {strides = array<i32>} : memref<1x8x8x128xf32, #tpu.memory_space<vmem>>, vector<1x8x8x128xf32>,
    return
  }
  func.func @transform_0(%arg0: i32) -> (i32, i32, i32, i32) {
    %c0_i32 = arith.constant 0 : i32
    %c0_i32_0 = arith.constant 0 : i32
    %c0_i32_1 = arith.constant 0 : i32
    %c0_i32_2 = arith.constant 0 : i32
    return %arg0, %c0_i32, %c0_i32_0, %c0_i32_1 : i32, i32, i32, i32
  }
  func.func @transform_1(%arg0: i32) -> (i32, i32) {
    %c0_i32 = arith.constant 0 : i32
    %c0_i32_0 = arith.constant 0 : i32
    %c0_i32_1 = arith.constant 0 : i32
    return %c0_i32, %c0_i32_0 : i32, i32
  }
  func.func @transform_2(%arg0: i32) -> (i32, i32, i32, i32) {
    %c0_i32 = arith.constant 0 : i32
    %c0_i32_0 = arith.constant 0 : i32
    %c0_i32_1 = arith.constant 0 : i32
    %c0_i32_2 = arith.constant 0 : i32
    return %arg0, %c0_i32, %c0_i32_0, %c0_i32_1 : i32, i32, i32, i32
  }
  func.func @transform_3(%arg0: i32) -> (i32, i32) {
    %c0_i32 = arith.constant 0 : i32
    %c0_i32_0 = arith.constant 0 : i32
    %c0_i32_1 = arith.constant 0 : i32
    return %c0_i32, %c0_i32_0 : i32, i32
  }
  func.func @transform_4(%arg0: i32) -> (i32, i32, i32, i32) {
    %c0_i32 = arith.constant 0 : i32
    %c0_i32_0 = arith.constant 0 : i32
    %c0_i32_1 = arith.constant 0 : i32
    %c0_i32_2 = arith.constant 0 : i32
    return %arg0, %c0_i32, %c0_i32_0, %c0_i32_1 : i32, i32, i32, i32
  }
}

</mosaic_0001>

<llo_original>
// kernel: resblock_forward.5
$region0: #{resblock_forward.5}
  #allocation0 [shape = 'u32[]', space=smem, size = 0x4, offset = 0x4, fixed_abs, tag = 'smem constant byte address 0x4 - core index']
  #allocation1 [shape = 'u32[144,128]{1,0:T(1,128)}', space=vmem, size = 0x12000, scoped, tag = 'internal scratch']
  %s0 = inlined_call_operand.vmem [shape: bf16[2,8,8,128], index: 0, kind: input, shape index: {}]
  %s1 = inlined_call_operand.vmem [shape: f32[2,128], index: 1, kind: input, shape index: {}]
  %s2 = inlined_call_operand.vmem [shape: bf16[2,8,8,128], index: 2, kind: input, shape index: {}]
  %s3 = inlined_call_operand.vmem [shape: bf16[128,128], index: 3, kind: input, shape index: {}]
  %s4 = inlined_call_operand.vmem [shape: f32[2,8,8,128], index: 4, kind: output, shape index: {}]
  %s5 = sld [smem:[#allocation0]]
  $region49: #{resblock_forward.5} parent=0
    _
  %s7 = ssub.s32 1, %s5
  %s8 = scalar_select 0, %s7, %s5
  loop: start=0, step=1, limit=4
  $region2: #{resblock_forward.5} parent=0 // loop_pre_header
    _
  $region3: #{resblock_forward.5} parent=0 // loop_header
    %s10 = sphi 0, %s14
    %p11 = scmp.ge.s32.totalorder %s10, 4
    %s20 = sphi 0, %s22
    %s23 = sphi 0, %s20
    %s24 = sphi 0, %s23
    %s40 = sphi 0, %s24
    %s44 = sphi 0, %s44
    %s46 = sphi 0, %s44
    %s47 = sphi 0, %s46
    %s61 = sphi 0, %s47
    %s67 = sphi 0, %s69
    %s70 = sphi 0, %s67
    %s71 = sphi 0, %s70
    %s87 = sphi 0, %s71
    %s91 = sphi 0, %s91
    %s93 = sphi 0, %s91
    %s94 = sphi 0, %s93
    %s108 = sphi 0, %s94
    %s114 = sphi 0, %s116
    %s117 = sphi 0, %s114
    %s118 = sphi 0, %s117
    %s134 = sphi 0, %s118
  $region4: #{resblock_forward.5} parent=0 // loop_header_branch
    %13 = sbr.rel (%p11) target = $region8
  $region5: #{resblock_forward.5} parent=0 // loop_body
    %s15 = ssub.s32 %s10, 1
    %s16 = ssub.s32 %s10, 2
    %s17 = sadd.s32 %s10, 1
    %s18 = ssub.s32 %s10, %s17
    %p19 = scmp.eq.s32.totalorder %s18, 0
    %s21 = sadd.s32 %s20, 1
    %s22 = scalar_select %p19, %s20, %s21
    %p25 = pneg %p19
    %p26 = scmp.eq.s32.totalorder %s10, 1
    %p27 = por %p25, %p26
    %p28 = scmp.ne.s32.totalorder %s20, %s23
    %p29 = scmp.eq.s32.totalorder %s10, 0
    %p30 = por %p28, %p29
    %p31 = scmp.ne.s32.totalorder %s20, %s23
    %p32 = scmp.eq.s32.totalorder %s15, 1
    %p33 = por %p31, %p32
    %p34 = scmp.ne.s32.totalorder %s23, %s24
    %p35 = scmp.eq.s32.totalorder %s15, 0
    %p36 = por %p34, %p35
    %p37 = scmp.ne.s32.totalorder %s23, %s24
    %p38 = scmp.eq.s32.totalorder %s16, 1
    %p39 = por %p37, %p38
    %p41 = scmp.ne.s32.totalorder %s24, %s40
    %p42 = scmp.eq.s32.totalorder %s16, 0
    %p43 = por %p41, %p42
    %s45 = sadd.s32 %s44, 1
    %p48 = scmp.eq.s32.totalorder %s10, 1
    %p49 = scmp.ne.s32.totalorder %s44, %s46
    %p50 = scmp.eq.s32.totalorder %s10, 0
    %p51 = por %p49, %p50
    %p52 = scmp.ne.s32.totalorder %s44, %s46
    %p53 = scmp.eq.s32.totalorder %s15, 1
    %p54 = por %p52, %p53
    %p55 = scmp.ne.s32.totalorder %s46, %s47
    %p56 = scmp.eq.s32.totalorder %s15, 0
    %p57 = por %p55, %p56
    %p58 = scmp.ne.s32.totalorder %s46, %s47
    %p59 = scmp.eq.s32.totalorder %s16, 1
    %p60 = por %p58, %p59
    %p62 = scmp.ne.s32.totalorder %s47, %s61
    %p63 = scmp.eq.s32.totalorder %s16, 0
    %p64 = por %p62, %p63
    %s65 = ssub.s32 %s10, %s17
    %p66 = scmp.eq.s32.totalorder %s65, 0
    %s68 = sadd.s32 %s67, 1
    %s69 = scalar_select %p66, %s67, %s68
    %p72 = pneg %p66
    %p73 = scmp.eq.s32.totalorder %s10, 1
    %p74 = por %p72, %p73
    %p75 = scmp.ne.s32.totalorder %s67, %s70
    %p76 = scmp.eq.s32.totalorder %s10, 0
    %p77 = por %p75, %p76
    %p78 = scmp.ne.s32.totalorder %s67, %s70
    %p79 = scmp.eq.s32.totalorder %s15, 1
    %p80 = por %p78, %p79
    %p81 = scmp.ne.s32.totalorder %s70, %s71
    %p82 = scmp.eq.s32.totalorder %s15, 0
    %p83 = por %p81, %p82
    %p84 = scmp.ne.s32.totalorder %s70, %s71
    %p85 = scmp.eq.s32.totalorder %s16, 1
    %p86 = por %p84, %p85
    %p88 = scmp.ne.s32.totalorder %s71, %s87
    %p89 = scmp.eq.s32.totalorder %s16, 0
    %p90 = por %p88, %p89
    %s92 = sadd.s32 %s91, 1
    %p95 = scmp.eq.s32.totalorder %s10, 1
    %p96 = scmp.ne.s32.totalorder %s91, %s93
    %p97 = scmp.eq.s32.totalorder %s10, 0
    %p98 = por %p96, %p97
    %p99 = scmp.ne.s32.totalorder %s91, %s93
    %p100 = scmp.eq.s32.totalorder %s15, 1
    %p101 = por %p99, %p100
    %p102 = scmp.ne.s32.totalorder %s93, %s94
    %p103 = scmp.eq.s32.totalorder %s15, 0
    %p104 = por %p102, %p103
    %p105 = scmp.ne.s32.totalorder %s93, %s94
    %p106 = scmp.eq.s32.totalorder %s16, 1
    %p107 = por %p105, %p106
    %p109 = scmp.ne.s32.totalorder %s94, %s108
    %p110 = scmp.eq.s32.totalorder %s16, 0
    %p111 = por %p109, %p110
    %s112 = ssub.s32 %s10, %s17
    %p113 = scmp.eq.s32.totalorder %s112, 0
    %s115 = sadd.s32 %s114, 1
    %s116 = scalar_select %p113, %s114, %s115
    %p119 = pneg %p113
    %p120 = scmp.eq.s32.totalorder %s10, 1
    %p121 = por %p119, %p120
    %p122 = scmp.ne.s32.totalorder %s114, %s117
    %p123 = scmp.eq.s32.totalorder %s10, 0
    %p124 = por %p122, %p123
    %p125 = scmp.ne.s32.totalorder %s114, %s117
    %p126 = scmp.eq.s32.totalorder %s15, 1
    %p127 = por %p125, %p126
    %p128 = scmp.ne.s32.totalorder %s117, %s118
    %p129 = scmp.eq.s32.totalorder %s15, 0
    %p130 = por %p128, %p129
    %p131 = scmp.ne.s32.totalorder %s117, %s118
    %p132 = scmp.eq.s32.totalorder %s16, 1
    %p133 = por %p131, %p132
    %p135 = scmp.ne.s32.totalorder %s118, %s134
    %p136 = scmp.eq.s32.totalorder %s16, 0
    %p137 = por %p135, %p136
    %p138 = scmp.le.s32.totalorder 1, %s10
    %p139 = scmp.lt.s32.totalorder %s10, 3
    %p140 = pnand %p138, %p139
    %p141 = pneg %p140
    // Predicated region
    $region9: #{resblock_forward.5} parent=5 // pred_check
      _
    $region10: #{resblock_forward.5} parent=5 // pred_check_branch
      %143 = sbr.rel (%p140) target = $region12
    $region11: #{resblock_forward.5} parent=5 // pred_region
      %s144 = ssub.s32 %s10, 1
      // Predicated region
      $region13: #{resblock_forward.5} parent=11 // pred_check
        %p145 = pneg %p57
      $region14: #{resblock_forward.5} parent=11 // pred_check_branch
        %147 = sbr.rel (%p145) target = $region16
      $region15: #{resblock_forward.5} parent=11 // pred_region
        _
      $region16: #{resblock_forward.5} parent=11 // pred_fallthru
        _
      // Predicated region
      $region17: #{resblock_forward.5} parent=11 // pred_check
        %p148 = pneg %p104
      $region18: #{resblock_forward.5} parent=11 // pred_check_branch
        %150 = sbr.rel (%p148) target = $region20
      $region19: #{resblock_forward.5} parent=11 // pred_region
        _
      $region20: #{resblock_forward.5} parent=11 // pred_fallthru
        _
    $region12: #{resblock_forward.5} parent=5 // pred_fallthru
      _
    %p151 = scmp.lt.s32.totalorder %s10, 2
    // Predicated region
    $region21: #{resblock_forward.5} parent=5 // pred_check
      %p152 = pneg %p151
    $region22: #{resblock_forward.5} parent=5 // pred_check_branch
      %154 = sbr.rel (%p152) target = $region24
    $region23: #{resblock_forward.5} parent=5 // pred_region
      // Predicated region
      $region25: #{resblock_forward.5} parent=23 // pred_check
        %p155 = pneg %p30
      $region26: #{resblock_forward.5} parent=23 // pred_check_branch
        %157 = sbr.rel (%p155) target = $region28
      $region27: #{resblock_forward.5} parent=23 // pred_region
        %p158 = scmp.lt.s32.totalorder %s10, 1
        %s159 = scalar_select %p158, %s10, 1
        %s160 = smul.addr %s159, 8
        %s161 = smul.addr %s160, 4
        %s162 = scalar_lea.vmem %s0, %s161
      $region28: #{resblock_forward.5} parent=23 // pred_fallthru
        _
      // Predicated region
      $region29: #{resblock_forward.5} parent=23 // pred_check
        %p163 = pneg %p77
      $region30: #{resblock_forward.5} parent=23 // pred_check_branch
        %165 = sbr.rel (%p163) target = $region32
      $region31: #{resblock_forward.5} parent=23 // pred_region
        %p166 = scmp.lt.s32.totalorder %s10, 1
        %s167 = scalar_select %p166, %s10, 1
        %s168 = smul.addr %s167, 8
        %s169 = smul.addr %s168, 4
        %s170 = scalar_lea.vmem %s2, %s169
      $region32: #{resblock_forward.5} parent=23 // pred_fallthru
        _
    $region24: #{resblock_forward.5} parent=5 // pred_fallthru
      _
    %p171 = scmp.le.s32.totalorder 1, %s10
    %p172 = scmp.lt.s32.totalorder %s10, 3
    %p173 = pnand %p171, %p172
    %p174 = pneg %p173
    // Predicated region
    $region33: #{resblock_forward.5} parent=5 // pred_check
      _
    $region34: #{resblock_forward.5} parent=5 // pred_check_branch
      %176 = sbr.rel (%p173) target = $region36
    $region35: #{resblock_forward.5} parent=5 // pred_region
      %s177 = ssub.s32 %s10, 1
      %p178 = scmp.lt.s32.totalorder %s15, 1
      %s179 = scalar_select %p178, %s15, 1
      %s180 = smul.addr %s179, 8
      %s181 = smul.addr %s180, 4
      %s182 = scalar_lea.vmem %s0, %s181
      %p183 = pneg %p36
      %p184 = pneg %p33
      %p185 = pneg %p57
      %p186 = pneg %p54
      %p187 = scmp.lt.s32.totalorder %s15, 1
      %s188 = scalar_select %p187, %s15, 1
      %s189 = smul.addr %s188, 8
      %s190 = smul.addr %s189, 4
      %s191 = scalar_lea.vmem %s2, %s190
      %p192 = pneg %p83
      %p193 = pneg %p80
      %p194 = pneg %p104
      %p195 = pneg %p101
      %p196 = pneg %p130
      %p197 = pneg %p127
      %p198 = scmp.lt.s32.totalorder %s15, 1
      %s199 = scalar_select %p198, %s15, 1
      %s200 = smul.addr %s199, 8
      %s201 = smul.addr %s200, 8
      %s202 = scalar_lea.vmem %s4, %s201
      %p203 = scmp.lt.s32.totalorder %s15, 1
      %s204 = scalar_select %p203, %s15, 1
      %s205 = smul.addr %s204, 8
      %s206 = smul.addr %s205, 4
      %s207 = scalar_lea.vmem %s0, %s206
      %p208 = scmp.lt.s32.totalorder %s15, 1
      %s209 = scalar_select %p208, %s15, 1
      %s210 = smul.addr %s209, 8
      %s211 = smul.addr %s210, 4
      %s212 = scalar_lea.vmem %s2, %s211
      %p213 = scmp.lt.s32.totalorder %s15, 1
      %s214 = scalar_select %p213, %s15, 1
      %s215 = smul.addr %s214, 8
      %s216 = smul.addr %s215, 8
      %s217 = scalar_lea.vmem %s4, %s216
      %v219 = vld [vmem:[%s1] sm:$0x1]
      %v220 = vld [vmem:[%s1 + $0x1] sm:$0x1]
      %v221 = vld [vmem:[%s207] sm:$0xf]
      %v222 = vld [vmem:[%s207 + $0x4] sm:$0xf]
      %v223 = vld [vmem:[%s207 + $0x8] sm:$0xf]
      %v224 = vld [vmem:[%s207 + $0xc] sm:$0xf]
      %v225 = vld [vmem:[%s207 + $0x10] sm:$0xf]
      %v226 = vld [vmem:[%s207 + $0x14] sm:$0xf]
      %v227 = vld [vmem:[%s207 + $0x18] sm:$0xf]
      %v228 = vld [vmem:[%s207 + $0x1c] sm:$0xf]
      %v229 = vunpack.c.l.bf16 %v221
      %v230 = vunpack.c.l.bf16 %v222
      %v231 = vunpack.c.l.bf16 %v223
      %v232 = vunpack.c.l.bf16 %v224
      %v233 = vunpack.c.l.bf16 %v225
      %v234 = vunpack.c.l.bf16 %v226
      %v235 = vunpack.c.l.bf16 %v227
      %v236 = vunpack.c.l.bf16 %v228
      %v237 = vlaneseq
      %v238 = vshrl.u32 %v237, 7
      %v239 = vsub.s32 0, %v238
      %v240 = vrot.slane %v219, %v239
      %v241 = vmul.f32 %v229, %v240
      %v242 = vmul.f32 %v230, %v240
      %v243 = vmul.f32 %v231, %v240
      %v244 = vmul.f32 %v232, %v240
      %v245 = vmul.f32 %v233, %v240
      %v246 = vmul.f32 %v234, %v240
      %v247 = vmul.f32 %v235, %v240
      %v248 = vmul.f32 %v236, %v240
      %v249 = vlaneseq
      %v250 = vshrl.u32 %v249, 7
      %v251 = vsub.s32 0, %v250
      %v252 = vrot.slane %v220, %v251
      %v253 = vadd.f32 %v241, %v252
      %v254 = vadd.f32 %v242, %v252
      %v255 = vadd.f32 %v243, %v252
      %v256 = vadd.f32 %v244, %v252
      %v257 = vadd.f32 %v245, %v252
      %v258 = vadd.f32 %v246, %v252
      %v259 = vadd.f32 %v247, %v252
      %v260 = vadd.f32 %v248, %v252
      %v261 = vld [vmem:[%s212] sm:$0xf]
      %v262 = vld [vmem:[%s212 + $0x4] sm:$0xf]
      %v263 = vld [vmem:[%s212 + $0x8] sm:$0xf]
      %v264 = vld [vmem:[%s212 + $0xc] sm:$0xf]
      %v265 = vld [vmem:[%s212 + $0x10] sm:$0xf]
      %v266 = vld [vmem:[%s212 + $0x14] sm:$0xf]
      %v267 = vld [vmem:[%s212 + $0x18] sm:$0xf]
      %v268 = vld [vmem:[%s212 + $0x1c] sm:$0xf]
      %v269 = vld [vmem:[%s3] sm:$0xf]
      %v270 = vld [vmem:[%s3 + $0x4] sm:$0xf]
      %v271 = vld [vmem:[%s3 + $0x8] sm:$0xf]
      %v272 = vld [vmem:[%s3 + $0xc] sm:$0xf]
      %v273 = vld [vmem:[%s3 + $0x10] sm:$0xf]
      %v274 = vld [vmem:[%s3 + $0x14] sm:$0xf]
      %v275 = vld [vmem:[%s3 + $0x18] sm:$0xf]
      %v276 = vld [vmem:[%s3 + $0x1c] sm:$0xf]
      %v277 = vld [vmem:[%s3 + $0x20] sm:$0xf]
      %v278 = vld [vmem:[%s3 + $0x24] sm:$0xf]
      %v279 = vld [vmem:[%s3 + $0x28] sm:$0xf]
      %v280 = vld [vmem:[%s3 + $0x2c] sm:$0xf]
      %v281 = vld [vmem:[%s3 + $0x30] sm:$0xf]
      %v282 = vld [vmem:[%s3 + $0x34] sm:$0xf]
      %v283 = vld [vmem:[%s3 + $0x38] sm:$0xf]
      %v284 = vld [vmem:[%s3 + $0x3c] sm:$0xf]
      %v293 = vunpack.c.l.b16 %v261
      %v294 = vunpack.c.l.b16 %v262
      %v295 = vunpack.c.l.b16 %v263
      %v296 = vunpack.c.l.b16 %v264
      %v297 = vunpack.c.l.b16 %v265
      %v298 = vunpack.c.l.b16 %v266
      %v299 = vunpack.c.l.b16 %v267
      %v300 = vunpack.c.l.b16 %v268
      %v301 = vpack.c.b16 %v294, %v293
      %v302 = vpack.c.b16 %v296, %v295
      %v303 = vpack.c.b16 %v298, %v297
      %v304 = vpack.c.b16 %v300, %v299
      %v325 = vunpack.c.l.b16 %v269
      %v326 = vunpack.c.l.b16 %v270
      %v327 = vunpack.c.l.b16 %v271
      %v328 = vunpack.c.l.b16 %v272
      %v329 = vunpack.c.l.b16 %v273
      %v330 = vunpack.c.l.b16 %v274
      %v331 = vunpack.c.l.b16 %v275
      %v332 = vunpack.c.l.b16 %v276
      %v333 = vunpack.c.l.b16 %v277
      %v334 = vunpack.c.l.b16 %v278
      %v335 = vunpack.c.l.b16 %v279
      %v336 = vunpack.c.l.b16 %v280
      %v337 = vunpack.c.l.b16 %v281
      %v338 = vunpack.c.l.b16 %v282
      %v339 = vunpack.c.l.b16 %v283
      %v340 = vunpack.c.l.b16 %v284
      %v341 = vpack.c.b16 %v326, %v325
      %v342 = vpack.c.b16 %v328, %v327
      %v343 = vpack.c.b16 %v330, %v329
      %v344 = vpack.c.b16 %v332, %v331
      %v345 = vpack.c.b16 %v334, %v333
      %v346 = vpack.c.b16 %v336, %v335
      %v347 = vpack.c.b16 %v338, %v337
      %v348 = vpack.c.b16 %v340, %v339
      %357 = vmatprep.subr.bf16.mxu0 0
      %358 = vmatpush1.bf16.msra.mxu0 %v341
      %359 = vmatprep.subr.bf16.mxu0 0
      %360 = vmatpush1.bf16.msra.mxu0 %v342
      %361 = vmatprep.subr.bf16.mxu0 0
      %362 = vmatpush1.bf16.msra.mxu0 %v343
      %363 = vmatprep.subr.bf16.mxu0 0
      %364 = vmatpush1.bf16.msra.mxu0 %v344
      %365 = vmatprep.subr.bf16.mxu0 0
      %366 = vmatpush1.bf16.msra.mxu0 %v345
      %367 = vmatprep.subr.bf16.mxu0 0
      %368 = vmatpush1.bf16.msra.mxu0 %v346
      %369 = vmatprep.subr.bf16.mxu0 0
      %370 = vmatpush1.bf16.msra.mxu0 %v347
      %371 = vmatprep.subr.bf16.mxu0 0
      %372 = vmatpush1.bf16.msra.mxu0 %v348
      %373 = vmatprep.subr.bf16.mxu0 0
      %374 = vmatpush1.bf16.msra.mxu0 0
      %375 = vmatprep.subr.bf16.mxu0 0
      %376 = vmatpush1.bf16.msra.mxu0 0
      %377 = vmatprep.subr.bf16.mxu0 0
      %378 = vmatpush1.bf16.msra.mxu0 0
      %379 = vmatprep.subr.bf16.mxu0 0
      %380 = vmatpush1.bf16.msra.mxu0 0
      %381 = vmatprep.subr.bf16.mxu0 0
      %382 = vmatpush1.bf16.msra.mxu0 0
      %383 = vmatprep.subr.bf16.mxu0 0
      %384 = vmatpush1.bf16.msra.mxu0 0
      %385 = vmatprep.subr.bf16.mxu0 0
      %386 = vmatpush1.bf16.msra.mxu0 0
      %387 = vmatprep.subr.bf16.mxu0 0
      %388 = vmatpush1.bf16.msra.mxu0 0
      %389 = vmatprep.mubr.bf16.mxu0 0
      %390 = vmatmul.mubr.bf16.gmra.mrb[0].mxu0 %v301
      %v391 = vpop.f32.mrb[0].mxu0
      %v392 = vadd.f32 0.0, %v391
      %v393 = vpop.f32.mrb[0].mxu0
      %v394 = vpop.f32.mrb[0].mxu0
      %v395 = vadd.f32 0.0, %v394
      %v396 = vpop.f32.mrb[0].mxu0
      %397 = vmatprep.mubr.bf16.mxu0 0
      %398 = vmatmul.mubr.bf16.gmra.mrb[0].mxu0 %v302
      %v399 = vpop.f32.mrb[0].mxu0
      %v400 = vadd.f32 0.0, %v399
      %v401 = vpop.f32.mrb[0].mxu0
      %v402 = vpop.f32.mrb[0].mxu0
      %v403 = vadd.f32 0.0, %v402
      %v404 = vpop.f32.mrb[0].mxu0
      %405 = vmatprep.mubr.bf16.mxu0 0
      %406 = vmatmul.mubr.bf16.gmra.mrb[0].mxu0 %v303
      %v407 = vpop.f32.mrb[0].mxu0
      %v408 = vadd.f32 0.0, %v407
      %v409 = vpop.f32.mrb[0].mxu0
      %v410 = vpop.f32.mrb[0].mxu0
      %v411 = vadd.f32 0.0, %v410
      %v412 = vpop.f32.mrb[0].mxu0
      %413 = vmatprep.mubr.bf16.mxu0 0
      %414 = vmatmul.mubr.bf16.gmra.mrb[0].mxu0 %v304
      %v415 = vpop.f32.mrb[0].mxu0
      %v416 = vadd.f32 0.0, %v415
      %v417 = vpop.f32.mrb[0].mxu0
      %v418 = vpop.f32.mrb[0].mxu0
      %v419 = vadd.f32 0.0, %v418
      %v420 = vpop.f32.mrb[0].mxu0
      %421 = vdwg.mxu0
      %v422 = vadd.f32 %v253, %v392
      %v423 = vadd.f32 %v254, %v395
      %v424 = vadd.f32 %v255, %v400
      %v425 = vadd.f32 %v256, %v403
      %v426 = vadd.f32 %v257, %v408
      %v427 = vadd.f32 %v258, %v411
      %v428 = vadd.f32 %v259, %v416
      %v429 = vadd.f32 %v260, %v419
      %v430 = vmax.f32 %v422, 0.0
      %v431 = vmax.f32 %v423, 0.0
      %v432 = vmax.f32 %v424, 0.0
      %v433 = vmax.f32 %v425, 0.0
      %v434 = vmax.f32 %v426, 0.0
      %v435 = vmax.f32 %v427, 0.0
      %v436 = vmax.f32 %v428, 0.0
      %v437 = vmax.f32 %v429, 0.0
      %438 = vst [vmem:[%s217] sm:$0xff] %v430
      %439 = vst [vmem:[%s217 + $0x8] sm:$0xff] %v431
      %440 = vst [vmem:[%s217 + $0x10] sm:$0xff] %v432
      %441 = vst [vmem:[%s217 + $0x18] sm:$0xff] %v433
      %442 = vst [vmem:[%s217 + $0x20] sm:$0xff] %v434
      %443 = vst [vmem:[%s217 + $0x28] sm:$0xff] %v435
      %444 = vst [vmem:[%s217 + $0x30] sm:$0xff] %v436
      %445 = vst [vmem:[%s217 + $0x38] sm:$0xff] %v437
      %p446 = scmp.lt.s32.totalorder %s15, 1
      %s447 = scalar_select %p446, %s15, 1
      %s448 = smul.addr %s447, 8
      %s449 = smul.addr %s448, 8
      %s450 = scalar_lea.vmem %s4, %s449
      // Predicated region
      $region37: #{resblock_forward.5} parent=35 // pred_check
        %p451 = pneg %p127
      $region38: #{resblock_forward.5} parent=35 // pred_check_branch
        %453 = sbr.rel (%p451) target = $region40
      $region39: #{resblock_forward.5} parent=35 // pred_region
        _
      $region40: #{resblock_forward.5} parent=35 // pred_fallthru
        _
    $region36: #{resblock_forward.5} parent=5 // pred_fallthru
      _
    %p454 = scmp.le.s32.totalorder 2, %s10
    // Predicated region
    $region41: #{resblock_forward.5} parent=5 // pred_check
      %p455 = pneg %p454
    $region42: #{resblock_forward.5} parent=5 // pred_check_branch
      %457 = sbr.rel (%p455) target = $region44
    $region43: #{resblock_forward.5} parent=5 // pred_region
      %s458 = ssub.s32 %s10, 2
      // Predicated region
      $region45: #{resblock_forward.5} parent=43 // pred_check
        %p459 = pneg %p133
      $region46: #{resblock_forward.5} parent=43 // pred_check_branch
        %461 = sbr.rel (%p459) target = $region48
      $region47: #{resblock_forward.5} parent=43 // pred_region
        %p462 = scmp.lt.s32.totalorder %s16, 1
        %s463 = scalar_select %p462, %s16, 1
        %s464 = smul.addr %s463, 8
        %s465 = smul.addr %s464, 8
        %s466 = scalar_lea.vmem %s4, %s465
      $region48: #{resblock_forward.5} parent=43 // pred_fallthru
        _
    $region44: #{resblock_forward.5} parent=5 // pred_fallthru
      _
  $region6: #{resblock_forward.5} parent=0 // loop_footer
    %s14 = sadd.s32 1, %s10
  $region7: #{resblock_forward.5} parent=0 // loop_footer_branch
    %9 = sbr.rel target = $region3
  $region8: #{resblock_forward.5} parent=0 // loop_exit
    _

// kernel: resblock_forward.3
$region0: #{resblock_forward.3}
  #allocation0 [shape = 'u32[]', space=smem, size = 0x4, offset = 0x4, fixed_abs, tag = 'smem constant byte address 0x4 - core index']
  #allocation1 [shape = 'u32[144,128]{1,0:T(1,128)}', space=vmem, size = 0x12000, scoped, tag = 'internal scratch']
  %s0 = inlined_call_operand.vmem [shape: f32[8,9,9,128], index: 0, kind: input, shape index: {}]
  %s1 = inlined_call_operand.vmem [shape: bf16[9,128,128], index: 1, kind: input, shape index: {}]
  %s2 = inlined_call_operand.vmem [shape: f32[1,128], index: 2, kind: input, shape index: {}]
  %s3 = inlined_call_operand.vmem [shape: f32[1,128], index: 3, kind: input, shape index: {}]
  %s4 = inlined_call_operand.vmem [shape: bf16[2,8,8,128], index: 4, kind: output, shape index: {0}]
  %s5 = inlined_call_operand.vmem [shape: f32[2,128], index: 5, kind: output, shape index: {1}]
  %6 = xla_tuple %s4, %s5
  %s7 = sld [smem:[#allocation0]]
  $region65: #{resblock_forward.3} parent=0
    _
  %s9 = ssub.s32 1, %s7
  %s10 = scalar_select 0, %s9, %s7
  loop: start=0, step=1, limit=4
  $region2: #{resblock_forward.3} parent=0 // loop_pre_header
    _
  $region3: #{resblock_forward.3} parent=0 // loop_header
    %s12 = sphi 0, %s16
    %p13 = scmp.ge.s32.totalorder %s12, 4
    %s22 = sphi 0, %s24
    %s25 = sphi 0, %s22
    %s26 = sphi 0, %s25
    %s42 = sphi 0, %s26
    %s46 = sphi 0, %s46
    %s48 = sphi 0, %s46
    %s49 = sphi 0, %s48
    %s63 = sphi 0, %s49
    %s67 = sphi 0, %s67
    %s69 = sphi 0, %s67
    %s70 = sphi 0, %s69
    %s84 = sphi 0, %s70
    %s88 = sphi 0, %s88
    %s90 = sphi 0, %s88
    %s91 = sphi 0, %s90
    %s105 = sphi 0, %s91
    %s111 = sphi 0, %s113
    %s114 = sphi 0, %s111
    %s115 = sphi 0, %s114
    %s131 = sphi 0, %s115
    %s135 = sphi 0, %s135
    %s137 = sphi 0, %s135
    %s138 = sphi 0, %s137
    %s152 = sphi 0, %s138
  $region4: #{resblock_forward.3} parent=0 // loop_header_branch
    %15 = sbr.rel (%p13) target = $region8
  $region5: #{resblock_forward.3} parent=0 // loop_body
    %s17 = ssub.s32 %s12, 1
    %s18 = ssub.s32 %s12, 2
    %s19 = sadd.s32 %s12, 1
    %s20 = ssub.s32 %s12, %s19
    %p21 = scmp.eq.s32.totalorder %s20, 0
    %s23 = sadd.s32 %s22, 1
    %s24 = scalar_select %p21, %s22, %s23
    %p27 = pneg %p21
    %p28 = scmp.eq.s32.totalorder %s12, 1
    %p29 = por %p27, %p28
    %p30 = scmp.ne.s32.totalorder %s22, %s25
    %p31 = scmp.eq.s32.totalorder %s12, 0
    %p32 = por %p30, %p31
    %p33 = scmp.ne.s32.totalorder %s22, %s25
    %p34 = scmp.eq.s32.totalorder %s17, 1
    %p35 = por %p33, %p34
    %p36 = scmp.ne.s32.totalorder %s25, %s26
    %p37 = scmp.eq.s32.totalorder %s17, 0
    %p38 = por %p36, %p37
    %p39 = scmp.ne.s32.totalorder %s25, %s26
    %p40 = scmp.eq.s32.totalorder %s18, 1
    %p41 = por %p39, %p40
    %p43 = scmp.ne.s32.totalorder %s26, %s42
    %p44 = scmp.eq.s32.totalorder %s18, 0
    %p45 = por %p43, %p44
    %s47 = sadd.s32 %s46, 1
    %p50 = scmp.eq.s32.totalorder %s12, 1
    %p51 = scmp.ne.s32.totalorder %s46, %s48
    %p52 = scmp.eq.s32.totalorder %s12, 0
    %p53 = por %p51, %p52
    %p54 = scmp.ne.s32.totalorder %s46, %s48
    %p55 = scmp.eq.s32.totalorder %s17, 1
    %p56 = por %p54, %p55
    %p57 = scmp.ne.s32.totalorder %s48, %s49
    %p58 = scmp.eq.s32.totalorder %s17, 0
    %p59 = por %p57, %p58
    %p60 = scmp.ne.s32.totalorder %s48, %s49
    %p61 = scmp.eq.s32.totalorder %s18, 1
    %p62 = por %p60, %p61
    %p64 = scmp.ne.s32.totalorder %s49, %s63
    %p65 = scmp.eq.s32.totalorder %s18, 0
    %p66 = por %p64, %p65
    %s68 = sadd.s32 %s67, 1
    %p71 = scmp.eq.s32.totalorder %s12, 1
    %p72 = scmp.ne.s32.totalorder %s67, %s69
    %p73 = scmp.eq.s32.totalorder %s12, 0
    %p74 = por %p72, %p73
    %p75 = scmp.ne.s32.totalorder %s67, %s69
    %p76 = scmp.eq.s32.totalorder %s17, 1
    %p77 = por %p75, %p76
    %p78 = scmp.ne.s32.totalorder %s69, %s70
    %p79 = scmp.eq.s32.totalorder %s17, 0
    %p80 = por %p78, %p79
    %p81 = scmp.ne.s32.totalorder %s69, %s70
    %p82 = scmp.eq.s32.totalorder %s18, 1
    %p83 = por %p81, %p82
    %p85 = scmp.ne.s32.totalorder %s70, %s84
    %p86 = scmp.eq.s32.totalorder %s18, 0
    %p87 = por %p85, %p86
    %s89 = sadd.s32 %s88, 1
    %p92 = scmp.eq.s32.totalorder %s12, 1
    %p93 = scmp.ne.s32.totalorder %s88, %s90
    %p94 = scmp.eq.s32.totalorder %s12, 0
    %p95 = por %p93, %p94
    %p96 = scmp.ne.s32.totalorder %s88, %s90
    %p97 = scmp.eq.s32.totalorder %s17, 1
    %p98 = por %p96, %p97
    %p99 = scmp.ne.s32.totalorder %s90, %s91
    %p100 = scmp.eq.s32.totalorder %s17, 0
    %p101 = por %p99, %p100
    %p102 = scmp.ne.s32.totalorder %s90, %s91
    %p103 = scmp.eq.s32.totalorder %s18, 1
    %p104 = por %p102, %p103
    %p106 = scmp.ne.s32.totalorder %s91, %s105
    %p107 = scmp.eq.s32.totalorder %s18, 0
    %p108 = por %p106, %p107
    %s109 = ssub.s32 %s12, %s19
    %p110 = scmp.eq.s32.totalorder %s109, 0
    %s112 = sadd.s32 %s111, 1
    %s113 = scalar_select %p110, %s111, %s112
    %p116 = pneg %p110
    %p117 = scmp.eq.s32.totalorder %s12, 1
    %p118 = por %p116, %p117
    %p119 = scmp.ne.s32.totalorder %s111, %s114
    %p120 = scmp.eq.s32.totalorder %s12, 0
    %p121 = por %p119, %p120
    %p122 = scmp.ne.s32.totalorder %s111, %s114
    %p123 = scmp.eq.s32.totalorder %s17, 1
    %p124 = por %p122, %p123
    %p125 = scmp.ne.s32.totalorder %s114, %s115
    %p126 = scmp.eq.s32.totalorder %s17, 0
    %p127 = por %p125, %p126
    %p128 = scmp.ne.s32.totalorder %s114, %s115
    %p129 = scmp.eq.s32.totalorder %s18, 1
    %p130 = por %p128, %p129
    %p132 = scmp.ne.s32.totalorder %s115, %s131
    %p133 = scmp.eq.s32.totalorder %s18, 0
    %p134 = por %p132, %p133
    %s136 = sadd.s32 %s135, 1
    %p139 = scmp.eq.s32.totalorder %s12, 1
    %p140 = scmp.ne.s32.totalorder %s135, %s137
    %p141 = scmp.eq.s32.totalorder %s12, 0
    %p142 = por %p140, %p141
    %p143 = scmp.ne.s32.totalorder %s135, %s137
    %p144 = scmp.eq.s32.totalorder %s17, 1
    %p145 = por %p143, %p144
    %p146 = scmp.ne.s32.totalorder %s137, %s138
    %p147 = scmp.eq.s32.totalorder %s17, 0
    %p148 = por %p146, %p147
    %p149 = scmp.ne.s32.totalorder %s137, %s138
    %p150 = scmp.eq.s32.totalorder %s18, 1
    %p151 = por %p149, %p150
    %p153 = scmp.ne.s32.totalorder %s138, %s152
    %p154 = scmp.eq.s32.totalorder %s18, 0
    %p155 = por %p153, %p154
    %p156 = scmp.le.s32.totalorder 1, %s12
    %p157 = scmp.lt.s32.totalorder %s12, 3
    %p158 = pnand %p156, %p157
    %p159 = pneg %p158
    // Predicated region
    $region9: #{resblock_forward.3} parent=5 // pred_check
      _
    $region10: #{resblock_forward.3} parent=5 // pred_check_branch
      %161 = sbr.rel (%p158) target = $region12
    $region11: #{resblock_forward.3} parent=5 // pred_region
      %s162 = ssub.s32 %s12, 1
      // Predicated region
      $region13: #{resblock_forward.3} parent=11 // pred_check
        %p163 = pneg %p59
      $region14: #{resblock_forward.3} parent=11 // pred_check_branch
        %165 = sbr.rel (%p163) target = $region16
      $region15: #{resblock_forward.3} parent=11 // pred_region
        _
      $region16: #{resblock_forward.3} parent=11 // pred_fallthru
        _
      // Predicated region
      $region17: #{resblock_forward.3} parent=11 // pred_check
        %p166 = pneg %p80
      $region18: #{resblock_forward.3} parent=11 // pred_check_branch
        %168 = sbr.rel (%p166) target = $region20
      $region19: #{resblock_forward.3} parent=11 // pred_region
        _
      $region20: #{resblock_forward.3} parent=11 // pred_fallthru
        _
      // Predicated region
      $region21: #{resblock_forward.3} parent=11 // pred_check
        %p169 = pneg %p101
      $region22: #{resblock_forward.3} parent=11 // pred_check_branch
        %171 = sbr.rel (%p169) target = $region24
      $region23: #{resblock_forward.3} parent=11 // pred_region
        _
      $region24: #{resblock_forward.3} parent=11 // pred_fallthru
        _
    $region12: #{resblock_forward.3} parent=5 // pred_fallthru
      _
    %p172 = scmp.lt.s32.totalorder %s12, 2
    // Predicated region
    $region25: #{resblock_forward.3} parent=5 // pred_check
      %p173 = pneg %p172
    $region26: #{resblock_forward.3} parent=5 // pred_check_branch
      %175 = sbr.rel (%p173) target = $region28
    $region27: #{resblock_forward.3} parent=5 // pred_region
      // Predicated region
      $region29: #{resblock_forward.3} parent=27 // pred_check
        %p176 = pneg %p32
      $region30: #{resblock_forward.3} parent=27 // pred_check_branch
        %178 = sbr.rel (%p176) target = $region32
      $region31: #{resblock_forward.3} parent=27 // pred_region
        %s179 = smul.u32 4, %s12
        %p180 = scmp.lt.s32.totalorder %s179, 7
        %s181 = scalar_select %p180, %s179, 7
        %s182 = smul.addr %s181, 18
        %s183 = smul.addr %s182, 8
        %s184 = scalar_lea.vmem %s0, %s183
        %s185 = smul.u32 4, %s12
      $region32: #{resblock_forward.3} parent=27 // pred_fallthru
        _
    $region28: #{resblock_forward.3} parent=5 // pred_fallthru
      _
    %p186 = scmp.le.s32.totalorder 1, %s12
    %p187 = scmp.lt.s32.totalorder %s12, 3
    %p188 = pnand %p186, %p187
    %p189 = pneg %p188
    // Predicated region
    $region33: #{resblock_forward.3} parent=5 // pred_check
      _
    $region34: #{resblock_forward.3} parent=5 // pred_check_branch
      %191 = sbr.rel (%p188) target = $region36
    $region35: #{resblock_forward.3} parent=5 // pred_region
      %s192 = ssub.s32 %s12, 1
      %s193 = smul.u32 4, %s17
      %p194 = scmp.lt.s32.totalorder %s193, 7
      %s195 = scalar_select %p194, %s193, 7
      %s196 = smul.addr %s195, 18
      %s197 = smul.addr %s196, 8
      %s198 = scalar_lea.vmem %s0, %s197
      %p199 = pneg %p38
      %p200 = pneg %p35
      %p201 = pneg %p59
      %p202 = pneg %p56
      %p203 = pneg %p80
      %p204 = pneg %p77
      %p205 = pneg %p101
      %p206 = pneg %p98
      %p207 = pneg %p127
      %p208 = pneg %p124
      %p209 = scmp.lt.s32.totalorder %s17, 1
      %s210 = scalar_select %p209, %s17, 1
      %s211 = smul.addr %s210, 8
      %s212 = smul.addr %s211, 4
      %s213 = scalar_lea.vmem %s4, %s212
      %p214 = pneg %p148
      %p215 = pneg %p145
      %s216 = smul.u32 4, %s17
      %p217 = scmp.lt.s32.totalorder %s216, 7
      %s218 = scalar_select %p217, %s216, 7
      %s219 = smul.addr %s218, 18
      %s220 = smul.addr %s219, 8
      %s221 = scalar_lea.vmem %s0, %s220
      %s222 = smul.u32 4, %s17
      %p223 = scmp.lt.s32.totalorder %s17, 1
      %s224 = scalar_select %p223, %s17, 1
      %s225 = smul.addr %s224, 8
      %s226 = smul.addr %s225, 4
      %s227 = scalar_lea.vmem %s4, %s226
      %v229 = vld [vmem:[%s221] sm:$0xff]
      %v230 = vld [vmem:[%s221 + $0x10] sm:$0xff]
      %v231 = vld [vmem:[%s221 + $0x20] sm:$0xff]
      %v232 = vld [vmem:[%s221 + $0x30] sm:$0xff]
      %v233 = vld [vmem:[%s221 + $0x40] sm:$0xff]
      %v234 = vld [vmem:[%s221 + $0x50] sm:$0xff]
      %v235 = vld [vmem:[%s221 + $0x60] sm:$0xff]
      %v236 = vld [vmem:[%s221 + $0x70] sm:$0xff]
      %v237 = vpack.c.bf16 %v230, %v229
      %v238 = vpack.c.bf16 %v232, %v231
      %v239 = vpack.c.bf16 %v234, %v233
      %v240 = vpack.c.bf16 %v236, %v235
      %v241 = vld [vmem:[%s1] sm:$0xf]
      %v242 = vld [vmem:[%s1 + $0x4] sm:$0xf]
      %v243 = vld [vmem:[%s1 + $0x8] sm:$0xf]
      %v244 = vld [vmem:[%s1 + $0xc] sm:$0xf]
      %v245 = vld [vmem:[%s1 + $0x10] sm:$0xf]
      %v246 = vld [vmem:[%s1 + $0x14] sm:$0xf]
      %v247 = vld [vmem:[%s1 + $0x18] sm:$0xf]
      %v248 = vld [vmem:[%s1 + $0x1c] sm:$0xf]
      %v249 = vld [vmem:[%s1 + $0x20] sm:$0xf]
      %v250 = vld [vmem:[%s1 + $0x24] sm:$0xf]
      %v251 = vld [vmem:[%s1 + $0x28] sm:$0xf]
      %v252 = vld [vmem:[%s1 + $0x2c] sm:$0xf]
      %v253 = vld [vmem:[%s1 + $0x30] sm:$0xf]
      %v254 = vld [vmem:[%s1 + $0x34] sm:$0xf]
      %v255 = vld [vmem:[%s1 + $0x38] sm:$0xf]
      %v256 = vld [vmem:[%s1 + $0x3c] sm:$0xf]
      %s257 = scalar_lea.vmem %s221, 144
      %v258 = vld [vmem:[%s257] sm:$0xff]
      %v259 = vld [vmem:[%s257 + $0x10] sm:$0xff]
      %v260 = vld [vmem:[%s257 + $0x20] sm:$0xff]
      %v261 = vld [vmem:[%s257 + $0x30] sm:$0xff]
      %v262 = vld [vmem:[%s257 + $0x40] sm:$0xff]
      %v263 = vld [vmem:[%s257 + $0x50] sm:$0xff]
      %v264 = vld [vmem:[%s257 + $0x60] sm:$0xff]
      %v265 = vld [vmem:[%s257 + $0x70] sm:$0xff]
      %v266 = vpack.c.bf16 %v259, %v258
      %v267 = vpack.c.bf16 %v261, %v260
      %v268 = vpack.c.bf16 %v263, %v262
      %v269 = vpack.c.bf16 %v265, %v264
      %s270 = scalar_lea.vmem %s1, 64
      %v271 = vld [vmem:[%s270] sm:$0xf]
      %v272 = vld [vmem:[%s270 + $0x4] sm:$0xf]
      %v273 = vld [vmem:[%s270 + $0x8] sm:$0xf]
      %v274 = vld [vmem:[%s270 + $0xc] sm:$0xf]
      %v275 = vld [vmem:[%s270 + $0x10] sm:$0xf]
      %v276 = vld [vmem:[%s270 + $0x14] sm:$0xf]
      %v277 = vld [vmem:[%s270 + $0x18] sm:$0xf]
      %v278 = vld [vmem:[%s270 + $0x1c] sm:$0xf]
      %v279 = vld [vmem:[%s270 + $0x20] sm:$0xf]
      %v280 = vld [vmem:[%s270 + $0x24] sm:$0xf]
      %v281 = vld [vmem:[%s270 + $0x28] sm:$0xf]
      %v282 = vld [vmem:[%s270 + $0x2c] sm:$0xf]
      %v283 = vld [vmem:[%s270 + $0x30] sm:$0xf]
      %v284 = vld [vmem:[%s270 + $0x34] sm:$0xf]
      %v285 = vld [vmem:[%s270 + $0x38] sm:$0xf]
      %v286 = vld [vmem:[%s270 + $0x3c] sm:$0xf]
      %v303 = vunpack.c.l.b16 %v271
      %v304 = vunpack.c.l.b16 %v272
      %v305 = vunpack.c.l.b16 %v273
      %v306 = vunpack.c.l.b16 %v274
      %v307 = vunpack.c.l.b16 %v275
      %v308 = vunpack.c.l.b16 %v276
      %v309 = vunpack.c.l.b16 %v277
      %v310 = vunpack.c.l.b16 %v278
      %v311 = vunpack.c.l.b16 %v279
      %v312 = vunpack.c.l.b16 %v280
      %v313 = vunpack.c.l.b16 %v281
      %v314 = vunpack.c.l.b16 %v282
      %v315 = vunpack.c.l.b16 %v283
      %v316 = vunpack.c.l.b16 %v284
      %v317 = vunpack.c.l.b16 %v285
      %v318 = vunpack.c.l.b16 %v286
      %v319 = vpack.c.b16 %v304, %v303
      %v320 = vpack.c.b16 %v306, %v305
      %v321 = vpack.c.b16 %v308, %v307
      %v322 = vpack.c.b16 %v310, %v309
      %v323 = vpack.c.b16 %v312, %v311
      %v324 = vpack.c.b16 %v314, %v313
      %v325 = vpack.c.b16 %v316, %v315
      %v326 = vpack.c.b16 %v318, %v317
      %335 = vmatprep.subr.bf16.mxu0 0
      %336 = vmatpush1.bf16.msra.mxu0 %v319
      %337 = vmatprep.subr.bf16.mxu0 0
      %338 = vmatpush1.bf16.msra.mxu0 %v320
      %339 = vmatprep.subr.bf16.mxu0 0
      %340 = vmatpush1.bf16.msra.mxu0 %v321
      %341 = vmatprep.subr.bf16.mxu0 0
      %342 = vmatpush1.bf16.msra.mxu0 %v322
      %343 = vmatprep.subr.bf16.mxu0 0
      %344 = vmatpush1.bf16.msra.mxu0 %v323
      %345 = vmatprep.subr.bf16.mxu0 0
      %346 = vmatpush1.bf16.msra.mxu0 %v324
      %347 = vmatprep.subr.bf16.mxu0 0
      %348 = vmatpush1.bf16.msra.mxu0 %v325
      %349 = vmatprep.subr.bf16.mxu0 0
      %350 = vmatpush1.bf16.msra.mxu0 %v326
      %351 = vmatprep.subr.bf16.mxu0 0
      %352 = vmatpush1.bf16.msra.mxu0 0
      %353 = vmatprep.subr.bf16.mxu0 0
      %354 = vmatpush1.bf16.msra.mxu0 0
      %355 = vmatprep.subr.bf16.mxu0 0
      %356 = vmatpush1.bf16.msra.mxu0 0
      %357 = vmatprep.subr.bf16.mxu0 0
      %358 = vmatpush1.bf16.msra.mxu0 0
      %359 = vmatprep.subr.bf16.mxu0 0
      %360 = vmatpush1.bf16.msra.mxu0 0
      %361 = vmatprep.subr.bf16.mxu0 0
      %362 = vmatpush1.bf16.msra.mxu0 0
      %363 = vmatprep.subr.bf16.mxu0 0
      %364 = vmatpush1.bf16.msra.mxu0 0
      %365 = vmatprep.subr.bf16.mxu0 0
      %366 = vmatpush1.bf16.msra.mxu0 0
      %367 = vmatprep.mubr.bf16.mxu0 0
      %368 = vmatmul.mubr.bf16.gmra.mrb[0].mxu0 %v266
      %v369 = vpop.f32.mrb[0].mxu0
      %v370 = vadd.f32 0.0, %v369
      %v371 = vpop.f32.mrb[0].mxu0
      %v372 = vpop.f32.mrb[0].mxu0
      %v373 = vadd.f32 0.0, %v372
      %v374 = vpop.f32.mrb[0].mxu0
      %375 = vmatprep.mubr.bf16.mxu0 0
      %376 = vmatmul.mubr.bf16.gmra.mrb[0].mxu0 %v267
      %v377 = vpop.f32.mrb[0].mxu0
      %v378 = vadd.f32 0.0, %v377
      %v379 = vpop.f32.mrb[0].mxu0
      %v380 = vpop.f32.mrb[0].mxu0
      %v381 = vadd.f32 0.0, %v380
      %v382 = vpop.f32.mrb[0].mxu0
      %383 = vmatprep.mubr.bf16.mxu0 0
      %384 = vmatmul.mubr.bf16.gmra.mrb[0].mxu0 %v268
      %v385 = vpop.f32.mrb[0].mxu0
      %v386 = vadd.f32 0.0, %v385
      %v387 = vpop.f32.mrb[0].mxu0
      %v388 = vpop.f32.mrb[0].mxu0
      %v389 = vadd.f32 0.0, %v388
      %v390 = vpop.f32.mrb[0].mxu0
      %391 = vmatprep.mubr.bf16.mxu0 0
      %392 = vmatmul.mubr.bf16.gmra.mrb[0].mxu0 %v269
      %v393 = vpop.f32.mrb[0].mxu0
      %v394 = vadd.f32 0.0, %v393
      %v395 = vpop.f32.mrb[0].mxu0
      %v396 = vpop.f32.mrb[0].mxu0
      %v397 = vadd.f32 0.0, %v396
      %v398 = vpop.f32.mrb[0].mxu0
      %399 = vdwg.mxu0
      %v416 = vunpack.c.l.b16 %v241
      %v417 = vunpack.c.l.b16 %v242
      %v418 = vunpack.c.l.b16 %v243
      %v419 = vunpack.c.l.b16 %v244
      %v420 = vunpack.c.l.b16 %v245
      %v421 = vunpack.c.l.b16 %v246
      %v422 = vunpack.c.l.b16 %v247
      %v423 = vunpack.c.l.b16 %v248
      %v424 = vunpack.c.l.b16 %v249
      %v425 = vunpack.c.l.b16 %v250
      %v426 = vunpack.c.l.b16 %v251
      %v427 = vunpack.c.l.b16 %v252
      %v428 = vunpack.c.l.b16 %v253
      %v429 = vunpack.c.l.b16 %v254
      %v430 = vunpack.c.l.b16 %v255
      %v431 = vunpack.c.l.b16 %v256
      %v432 = vpack.c.b16 %v417, %v416
      %v433 = vpack.c.b16 %v419, %v418
      %v434 = vpack.c.b16 %v421, %v420
      %v435 = vpack.c.b16 %v423, %v422
      %v436 = vpack.c.b16 %v425, %v424
      %v437 = vpack.c.b16 %v427, %v426
      %v438 = vpack.c.b16 %v429, %v428
      %v439 = vpack.c.b16 %v431, %v430
      %448 = vmatprep.subr.bf16.mxu0 0
      %449 = vmatpush1.bf16.msra.mxu0 %v432
      %450 = vmatprep.subr.bf16.mxu0 0
      %451 = vmatpush1.bf16.msra.mxu0 %v433
      %452 = vmatprep.subr.bf16.mxu0 0
      %453 = vmatpush1.bf16.msra.mxu0 %v434
      %454 = vmatprep.subr.bf16.mxu0 0
      %455 = vmatpush1.bf16.msra.mxu0 %v435
      %456 = vmatprep.subr.bf16.mxu0 0
      %457 = vmatpush1.bf16.msra.mxu0 %v436
      %458 = vmatprep.subr.bf16.mxu0 0
      %459 = vmatpush1.bf16.msra.mxu0 %v437
      %460 = vmatprep.subr.bf16.mxu0 0
      %461 = vmatpush1.bf16.msra.mxu0 %v438
      %462 = vmatprep.subr.bf16.mxu0 0
      %463 = vmatpush1.bf16.msra.mxu0 %v439
      %464 = vmatprep.subr.bf16.mxu0 0
      %465 = vmatpush1.bf16.msra.mxu0 0
      %466 = vmatprep.subr.bf16.mxu0 0
      %467 = vmatpush1.bf16.msra.mxu0 0
      %468 = vmatprep.subr.bf16.mxu0 0
      %469 = vmatpush1.bf16.msra.mxu0 0
      %470 = vmatprep.subr.bf16.mxu0 0
      %471 = vmatpush1.bf16.msra.mxu0 0
      %472 = vmatprep.subr.bf16.mxu0 0
      %473 = vmatpush1.bf16.msra.mxu0 0
      %474 = vmatprep.subr.bf16.mxu0 0
      %475 = vmatpush1.bf16.msra.mxu0 0
      %476 = vmatprep.subr.bf16.mxu0 0
      %477 = vmatpush1.bf16.msra.mxu0 0
      %478 = vmatprep.subr.bf16.mxu0 0
      %479 = vmatpush1.bf16.msra.mxu0 0
      %480 = vmatprep.mubr.bf16.mxu0 0
      %481 = vmatmul.mubr.bf16.gmra.mrb[0].mxu0 %v237
      %v482 = vpop.f32.mrb[0].mxu0
      %v483 = vadd.f32 %v370, %v482
      %v484 = vpop.f32.mrb[0].mxu0
      %v485 = vpop.f32.mrb[0].mxu0
      %v486 = vadd.f32 %v373, %v485
      %v487 = vpop.f32.mrb[0].mxu0
      %488 = vmatprep.mubr.bf16.mxu0 0
      %489 = vmatmul.mubr.bf16.gmra.mrb[0].mxu0 %v238
      %v490 = vpop.f32.mrb[0].mxu0
      %v491 = vadd.f32 %v378, %v490
      %v492 = vpop.f32.mrb[0].mxu0
      %v493 = vpop.f32.mrb[0].mxu0
      %v494 = vadd.f32 %v381, %v493
      %v495 = vpop.f32.mrb[0].mxu0
      %496 = vmatprep.mubr.bf16.mxu0 0
      %497 = vmatmul.mubr.bf16.gmra.mrb[0].mxu0 %v239
      %v498 = vpop.f32.mrb[0].mxu0
      %v499 = vadd.f32 %v386, %v498
      %v500 = vpop.f32.mrb[0].mxu0
      %v501 = vpop.f32.mrb[0].mxu0
      %v502 = vadd.f32 %v389, %v501
      %v503 = vpop.f32.mrb[0].mxu0
      %504 = vmatprep.mubr.bf16.mxu0 0
      %505 = vmatmul.mubr.bf16.gmra.mrb[0].mxu0 %v240
      %v506 = vpop.f32.mrb[0].mxu0
      %v507 = vadd.f32 %v394, %v506
      %v508 = vpop.f32.mrb[0].mxu0
      %v509 = vpop.f32.mrb[0].mxu0
      %v510 = vadd.f32 %v397, %v509
      %v511 = vpop.f32.mrb[0].mxu0
      %512 = vdwg.mxu0
      %v513 = vld [vmem:[%s221 + $0x1] sm:$0xff]
      %v514 = vld [vmem:[%s221 + $0x11] sm:$0xff]
      %v515 = vld [vmem:[%s221 + $0x21] sm:$0xff]
      %v516 = vld [vmem:[%s221 + $0x31] sm:$0xff]
      %v517 = vld [vmem:[%s221 + $0x41] sm:$0xff]
      %v518 = vld [vmem:[%s221 + $0x51] sm:$0xff]
      %v519 = vld [vmem:[%s221 + $0x61] sm:$0xff]
      %v520 = vld [vmem:[%s221 + $0x71] sm:$0xff]
      %v521 = vpack.c.bf16 %v514, %v513
      %v522 = vpack.c.bf16 %v516, %v515
      %v523 = vpack.c.bf16 %v518, %v517
      %v524 = vpack.c.bf16 %v520, %v519
      %s525 = scalar_lea.vmem %s1, 128
      %v526 = vld [vmem:[%s525] sm:$0xf]
      %v527 = vld [vmem:[%s525 + $0x4] sm:$0xf]
      %v528 = vld [vmem:[%s525 + $0x8] sm:$0xf]
      %v529 = vld [vmem:[%s525 + $0xc] sm:$0xf]
      %v530 = vld [vmem:[%s525 + $0x10] sm:$0xf]
      %v531 = vld [vmem:[%s525 + $0x14] sm:$0xf]
      %v532 = vld [vmem:[%s525 + $0x18] sm:$0xf]
      %v533 = vld [vmem:[%s525 + $0x1c] sm:$0xf]
      %v534 = vld [vmem:[%s525 + $0x20] sm:$0xf]
      %v535 = vld [vmem:[%s525 + $0x24] sm:$0xf]
      %v536 = vld [vmem:[%s525 + $0x28] sm:$0xf]
      %v537 = vld [vmem:[%s525 + $0x2c] sm:$0xf]
      %v538 = vld [vmem:[%s525 + $0x30] sm:$0xf]
      %v539 = vld [vmem:[%s525 + $0x34] sm:$0xf]
      %v540 = vld [vmem:[%s525 + $0x38] sm:$0xf]
      %v541 = vld [vmem:[%s525 + $0x3c] sm:$0xf]
      %v558 = vunpack.c.l.b16 %v526
      %v559 = vunpack.c.l.b16 %v527
      %v560 = vunpack.c.l.b16 %v528
      %v561 = vunpack.c.l.b16 %v529
      %v562 = vunpack.c.l.b16 %v530
      %v563 = vunpack.c.l.b16 %v531
      %v564 = vunpack.c.l.b16 %v532
      %v565 = vunpack.c.l.b16 %v533
      %v566 = vunpack.c.l.b16 %v534
      %v567 = vunpack.c.l.b16 %v535
      %v568 = vunpack.c.l.b16 %v536
      %v569 = vunpack.c.l.b16 %v537
      %v570 = vunpack.c.l.b16 %v538
      %v571 = vunpack.c.l.b16 %v539
      %v572 = vunpack.c.l.b16 %v540
      %v573 = vunpack.c.l.b16 %v541
      %v574 = vpack.c.b16 %v559, %v558
      %v575 = vpack.c.b16 %v561, %v560
      %v576 = vpack.c.b16 %v563, %v562
      %v577 = vpack.c.b16 %v565, %v564
      %v578 = vpack.c.b16 %v567, %v566
      %v579 = vpack.c.b16 %v569, %v568
      %v580 = vpack.c.b16 %v571, %v570
      %v581 = vpack.c.b16 %v573, %v572
      %590 = vmatprep.subr.bf16.mxu0 0
      %591 = vmatpush1.bf16.msra.mxu0 %v574
      %592 = vmatprep.subr.bf16.mxu0 0
      %593 = vmatpush1.bf16.msra.mxu0 %v575
      %594 = vmatprep.subr.bf16.mxu0 0
      %595 = vmatpush1.bf16.msra.mxu0 %v576
      %596 = vmatprep.subr.bf16.mxu0 0
      %597 = vmatpush1.bf16.msra.mxu0 %v577
      %598 = vmatprep.subr.bf16.mxu0 0
      %599 = vmatpush1.bf16.msra.mxu0 %v578
      %600 = vmatprep.subr.bf16.mxu0 0
      %601 = vmatpush1.bf16.msra.mxu0 %v579
      %602 = vmatprep.subr.bf16.mxu0 0
      %603 = vmatpush1.bf16.msra.mxu0 %v580
      %604 = vmatprep.subr.bf16.mxu0 0
      %605 = vmatpush1.bf16.msra.mxu0 %v581
      %606 = vmatprep.subr.bf16.mxu0 0
      %607 = vmatpush1.bf16.msra.mxu0 0
      %608 = vmatprep.subr.bf16.mxu0 0
      %609 = vmatpush1.bf16.msra.mxu0 0
      %610 = vmatprep.subr.bf16.mxu0 0
      %611 = vmatpush1.bf16.msra.mxu0 0
      %612 = vmatprep.subr.bf16.mxu0 0
      %613 = vmatpush1.bf16.msra.mxu0 0
      %614 = vmatprep.subr.bf16.mxu0 0
      %615 = vmatpush1.bf16.msra.mxu0 0
      %616 = vmatprep.subr.bf16.mxu0 0
      %617 = vmatpush1.bf16.msra.mxu0 0
      %618 = vmatprep.subr.bf16.mxu0 0
      %619 = vmatpush1.bf16.msra.mxu0 0
      %620 = vmatprep.subr.bf16.mxu0 0
      %621 = vmatpush1.bf16.msra.mxu0 0
      %622 = vmatprep.mubr.bf16.mxu0 0
      %623 = vmatmul.mubr.bf16.gmra.mrb[0].mxu0 %v521
      %v624 = vpop.f32.mrb[0].mxu0
      %v625 = vadd.f32 0.0, %v624
      %v626 = vpop.f32.mrb[0].mxu0
      %v627 = vpop.f32.mrb[0].mxu0
      %v628 = vadd.f32 0.0, %v627
      %v629 = vpop.f32.mrb[0].mxu0
      %630 = vmatprep.mubr.bf16.mxu0 0
      %631 = vmatmul.mubr.bf16.gmra.mrb[0].mxu0 %v522
      %v632 = vpop.f32.mrb[0].mxu0
      %v633 = vadd.f32 0.0, %v632
      %v634 = vpop.f32.mrb[0].mxu0
      %v635 = vpop.f32.mrb[0].mxu0
      %v636 = vadd.f32 0.0, %v635
      %v637 = vpop.f32.mrb[0].mxu0
      %638 = vmatprep.mubr.bf16.mxu0 0
      %639 = vmatmul.mubr.bf16.gmra.mrb[0].mxu0 %v523
      %v640 = vpop.f32.mrb[0].mxu0
      %v641 = vadd.f32 0.0, %v640
      %v642 = vpop.f32.mrb[0].mxu0
      %v643 = vpop.f32.mrb[0].mxu0
      %v644 = vadd.f32 0.0, %v643
      %v645 = vpop.f32.mrb[0].mxu0
      %646 = vmatprep.mubr.bf16.mxu0 0
      %647 = vmatmul.mubr.bf16.gmra.mrb[0].mxu0 %v524
      %v648 = vpop.f32.mrb[0].mxu0
      %v649 = vadd.f32 0.0, %v648
      %v650 = vpop.f32.mrb[0].mxu0
      %v651 = vpop.f32.mrb[0].mxu0
      %v652 = vadd.f32 0.0, %v651
      %v653 = vpop.f32.mrb[0].mxu0
      %654 = vdwg.mxu0
      %v655 = vadd.f32 %v483, %v625
      %v656 = vadd.f32 %v486, %v628
      %v657 = vadd.f32 %v491, %v633
      %v658 = vadd.f32 %v494, %v636
      %v659 = vadd.f32 %v499, %v641
      %v660 = vadd.f32 %v502, %v644
      %v661 = vadd.f32 %v507, %v649
      %v662 = vadd.f32 %v510, %v652
      %s663 = scalar_lea.vmem %s221, 288
      %v664 = vld [vmem:[%s663] sm:$0xff]
      %v665 = vld [vmem:[%s663 + $0x10] sm:$0xff]
      %v666 = vld [vmem:[%s663 + $0x20] sm:$0xff]
      %v667 = vld [vmem:[%s663 + $0x30] sm:$0xff]
      %v668 = vld [vmem:[%s663 + $0x40] sm:$0xff]
      %v669 = vld [vmem:[%s663 + $0x50] sm:$0xff]
      %v670 = vld [vmem:[%s663 + $0x60] sm:$0xff]
      %v671 = vld [vmem:[%s663 + $0x70] sm:$0xff]
      %v672 = vpack.c.bf16 %v665, %v664
      %v673 = vpack.c.bf16 %v667, %v666
      %v674 = vpack.c.bf16 %v669, %v668
      %v675 = vpack.c.bf16 %v671, %v670
      %s676 = scalar_lea.vmem %s1, 192
      %v677 = vld [vmem:[%s676] sm:$0xf]
      %v678 = vld [vmem:[%s676 + $0x4] sm:$0xf]
      %v679 = vld [vmem:[%s676 + $0x8] sm:$0xf]
      %v680 = vld [vmem:[%s676 + $0xc] sm:$0xf]
      %v681 = vld [vmem:[%s676 + $0x10] sm:$0xf]
      %v682 = vld [vmem:[%s676 + $0x14] sm:$0xf]
      %v683 = vld [vmem:[%s676 + $0x18] sm:$0xf]
      %v684 = vld [vmem:[%s676 + $0x1c] sm:$0xf]
      %v685 = vld [vmem:[%s676 + $0x20] sm:$0xf]
      %v686 = vld [vmem:[%s676 + $0x24] sm:$0xf]
      %v687 = vld [vmem:[%s676 + $0x28] sm:$0xf]
      %v688 = vld [vmem:[%s676 + $0x2c] sm:$0xf]
      %v689 = vld [vmem:[%s676 + $0x30] sm:$0xf]
      %v690 = vld [vmem:[%s676 + $0x34] sm:$0xf]
      %v691 = vld [vmem:[%s676 + $0x38] sm:$0xf]
      %v692 = vld [vmem:[%s676 + $0x3c] sm:$0xf]
      %v709 = vunpack.c.l.b16 %v677
      %v710 = vunpack.c.l.b16 %v678
      %v711 = vunpack.c.l.b16 %v679
      %v712 = vunpack.c.l.b16 %v680
      %v713 = vunpack.c.l.b16 %v681
      %v714 = vunpack.c.l.b16 %v682
      %v715 = vunpack.c.l.b16 %v683
      %v716 = vunpack.c.l.b16 %v684
      %v717 = vunpack.c.l.b16 %v685
      %v718 = vunpack.c.l.b16 %v686
      %v719 = vunpack.c.l.b16 %v687
      %v720 = vunpack.c.l.b16 %v688
      %v721 = vunpack.c.l.b16 %v689
      %v722 = vunpack.c.l.b16 %v690
      %v723 = vunpack.c.l.b16 %v691
      %v724 = vunpack.c.l.b16 %v692
      %v725 = vpack.c.b16 %v710, %v709
      %v726 = vpack.c.b16 %v712, %v711
      %v727 = vpack.c.b16 %v714, %v713
      %v728 = vpack.c.b16 %v716, %v715
      %v729 = vpack.c.b16 %v718, %v717
      %v730 = vpack.c.b16 %v720, %v719
      %v731 = vpack.c.b16 %v722, %v721
      %v732 = vpack.c.b16 %v724, %v723
      %741 = vmatprep.subr.bf16.mxu0 0
      %742 = vmatpush1.bf16.msra.mxu0 %v725
      %743 = vmatprep.subr.bf16.mxu0 0
      %744 = vmatpush1.bf16.msra.mxu0 %v726
      %745 = vmatprep.subr.bf16.mxu0 0
      %746 = vmatpush1.bf16.msra.mxu0 %v727
      %747 = vmatprep.subr.bf16.mxu0 0
      %748 = vmatpush1.bf16.msra.mxu0 %v728
      %749 = vmatprep.subr.bf16.mxu0 0
      %750 = vmatpush1.bf16.msra.mxu0 %v729
      %751 = vmatprep.subr.bf16.mxu0 0
      %752 = vmatpush1.bf16.msra.mxu0 %v730
      %753 = vmatprep.subr.bf16.mxu0 0
      %754 = vmatpush1.bf16.msra.mxu0 %v731
      %755 = vmatprep.subr.bf16.mxu0 0
      %756 = vmatpush1.bf16.msra.mxu0 %v732
      %757 = vmatprep.subr.bf16.mxu0 0
      %758 = vmatpush1.bf16.msra.mxu0 0
      %759 = vmatprep.subr.bf16.mxu0 0
      %760 = vmatpush1.bf16.msra.mxu0 0
      %761 = vmatprep.subr.bf16.mxu0 0
      %762 = vmatpush1.bf16.msra.mxu0 0
      %763 = vmatprep.subr.bf16.mxu0 0
      %764 = vmatpush1.bf16.msra.mxu0 0
      %765 = vmatprep.subr.bf16.mxu0 0
      %766 = vmatpush1.bf16.msra.mxu0 0
      %767 = vmatprep.subr.bf16.mxu0 0
      %768 = vmatpush1.bf16.msra.mxu0 0
      %769 = vmatprep.subr.bf16.mxu0 0
      %770 = vmatpush1.bf16.msra.mxu0 0
      %771 = vmatprep.subr.bf16.mxu0 0
      %772 = vmatpush1.bf16.msra.mxu0 0
      %773 = vmatprep.mubr.bf16.mxu0 0
      %774 = vmatmul.mubr.bf16.gmra.mrb[0].mxu0 %v672
      %v775 = vpop.f32.mrb[0].mxu0
      %v776 = vadd.f32 0.0, %v775
      %v777 = vpop.f32.mrb[0].mxu0
      %v778 = vpop.f32.mrb[0].mxu0
      %v779 = vadd.f32 0.0, %v778
      %v780 = vpop.f32.mrb[0].mxu0
      %781 = vmatprep.mubr.bf16.mxu0 0
      %782 = vmatmul.mubr.bf16.gmra.mrb[0].mxu0 %v673
      %v783 = vpop.f32.mrb[0].mxu0
      %v784 = vadd.f32 0.0, %v783
      %v785 = vpop.f32.mrb[0].mxu0
      %v786 = vpop.f32.mrb[0].mxu0
      %v787 = vadd.f32 0.0, %v786
      %v788 = vpop.f32.mrb[0].mxu0
      %789 = vmatprep.mubr.bf16.mxu0 0
      %790 = vmatmul.mubr.bf16.gmra.mrb[0].mxu0 %v674
      %v791 = vpop.f32.mrb[0].mxu0
      %v792 = vadd.f32 0.0, %v791
      %v793 = vpop.f32.mrb[0].mxu0
      %v794 = vpop.f32.mrb[0].mxu0
      %v795 = vadd.f32 0.0, %v794
      %v796 = vpop.f32.mrb[0].mxu0
      %797 = vmatprep.mubr.bf16.mxu0 0
      %798 = vmatmul.mubr.bf16.gmra.mrb[0].mxu0 %v675
      %v799 = vpop.f32.mrb[0].mxu0
      %v800 = vadd.f32 0.0, %v799
      %v801 = vpop.f32.mrb[0].mxu0
      %v802 = vpop.f32.mrb[0].mxu0
      %v803 = vadd.f32 0.0, %v802
      %v804 = vpop.f32.mrb[0].mxu0
      %805 = vdwg.mxu0
      %v806 = vadd.f32 %v655, %v776
      %v807 = vadd.f32 %v656, %v779
      %v808 = vadd.f32 %v657, %v784
      %v809 = vadd.f32 %v658, %v787
      %v810 = vadd.f32 %v659, %v792
      %v811 = vadd.f32 %v660, %v795
      %v812 = vadd.f32 %v661, %v800
      %v813 = vadd.f32 %v662, %v803
      %s814 = scalar_lea.vmem %s221, 432
      %v815 = vld [vmem:[%s814] sm:$0xff]
      %v816 = vld [vmem:[%s814 + $0x10] sm:$0xff]
      %v817 = vld [vmem:[%s814 + $0x20] sm:$0xff]
      %v818 = vld [vmem:[%s814 + $0x30] sm:$0xff]
      %v819 = vld [vmem:[%s814 + $0x40] sm:$0xff]
      %v820 = vld [vmem:[%s814 + $0x50] sm:$0xff]
      %v821 = vld [vmem:[%s814 + $0x60] sm:$0xff]
      %v822 = vld [vmem:[%s814 + $0x70] sm:$0xff]
      %v823 = vpack.c.bf16 %v816, %v815
      %v824 = vpack.c.bf16 %v818, %v817
      %v825 = vpack.c.bf16 %v820, %v819
      %v826 = vpack.c.bf16 %v822, %v821
      %s827 = scalar_lea.vmem %s1, 256
      %v828 = vld [vmem:[%s827] sm:$0xf]
      %v829 = vld [vmem:[%s827 + $0x4] sm:$0xf]
      %v830 = vld [vmem:[%s827 + $0x8] sm:$0xf]
      %v831 = vld [vmem:[%s827 + $0xc] sm:$0xf]
      %v832 = vld [vmem:[%s827 + $0x10] sm:$0xf]
      %v833 = vld [vmem:[%s827 + $0x14] sm:$0xf]
      %v834 = vld [vmem:[%s827 + $0x18] sm:$0xf]
      %v835 = vld [vmem:[%s827 + $0x1c] sm:$0xf]
      %v836 = vld [vmem:[%s827 + $0x20] sm:$0xf]
      %v837 = vld [vmem:[%s827 + $0x24] sm:$0xf]
      %v838 = vld [vmem:[%s827 + $0x28] sm:$0xf]
      %v839 = vld [vmem:[%s827 + $0x2c] sm:$0xf]
      %v840 = vld [vmem:[%s827 + $0x30] sm:$0xf]
      %v841 = vld [vmem:[%s827 + $0x34] sm:$0xf]
      %v842 = vld [vmem:[%s827 + $0x38] sm:$0xf]
      %v843 = vld [vmem:[%s827 + $0x3c] sm:$0xf]
      %v860 = vunpack.c.l.b16 %v828
      %v861 = vunpack.c.l.b16 %v829
      %v862 = vunpack.c.l.b16 %v830
      %v863 = vunpack.c.l.b16 %v831
      %v864 = vunpack.c.l.b16 %v832
      %v865 = vunpack.c.l.b16 %v833
      %v866 = vunpack.c.l.b16 %v834
      %v867 = vunpack.c.l.b16 %v835
      %v868 = vunpack.c.l.b16 %v836
      %v869 = vunpack.c.l.b16 %v837
      %v870 = vunpack.c.l.b16 %v838
      %v871 = vunpack.c.l.b16 %v839
      %v872 = vunpack.c.l.b16 %v840
      %v873 = vunpack.c.l.b16 %v841
      %v874 = vunpack.c.l.b16 %v842
      %v875 = vunpack.c.l.b16 %v843
      %v876 = vpack.c.b16 %v861, %v860
      %v877 = vpack.c.b16 %v863, %v862
      %v878 = vpack.c.b16 %v865, %v864
      %v879 = vpack.c.b16 %v867, %v866
      %v880 = vpack.c.b16 %v869, %v868
      %v881 = vpack.c.b16 %v871, %v870
      %v882 = vpack.c.b16 %v873, %v872
      %v883 = vpack.c.b16 %v875, %v874
      %892 = vmatprep.subr.bf16.mxu0 0
      %893 = vmatpush1.bf16.msra.mxu0 %v876
      %894 = vmatprep.subr.bf16.mxu0 0
      %895 = vmatpush1.bf16.msra.mxu0 %v877
      %896 = vmatprep.subr.bf16.mxu0 0
      %897 = vmatpush1.bf16.msra.mxu0 %v878
      %898 = vmatprep.subr.bf16.mxu0 0
      %899 = vmatpush1.bf16.msra.mxu0 %v879
      %900 = vmatprep.subr.bf16.mxu0 0
      %901 = vmatpush1.bf16.msra.mxu0 %v880
      %902 = vmatprep.subr.bf16.mxu0 0
      %903 = vmatpush1.bf16.msra.mxu0 %v881
      %904 = vmatprep.subr.bf16.mxu0 0
      %905 = vmatpush1.bf16.msra.mxu0 %v882
      %906 = vmatprep.subr.bf16.mxu0 0
      %907 = vmatpush1.bf16.msra.mxu0 %v883
      %908 = vmatprep.subr.bf16.mxu0 0
      %909 = vmatpush1.bf16.msra.mxu0 0
      %910 = vmatprep.subr.bf16.mxu0 0
      %911 = vmatpush1.bf16.msra.mxu0 0
      %912 = vmatprep.subr.bf16.mxu0 0
      %913 = vmatpush1.bf16.msra.mxu0 0
      %914 = vmatprep.subr.bf16.mxu0 0
      %915 = vmatpush1.bf16.msra.mxu0 0
      %916 = vmatprep.subr.bf16.mxu0 0
      %917 = vmatpush1.bf16.msra.mxu0 0
      %918 = vmatprep.subr.bf16.mxu0 0
      %919 = vmatpush1.bf16.msra.mxu0 0
      %920 = vmatprep.subr.bf16.mxu0 0
      %921 = vmatpush1.bf16.msra.mxu0 0
      %922 = vmatprep.subr.bf16.mxu0 0
      %923 = vmatpush1.bf16.msra.mxu0 0
      %924 = vmatprep.mubr.bf16.mxu0 0
      %925 = vmatmul.mubr.bf16.gmra.mrb[0].mxu0 %v823
      %v926 = vpop.f32.mrb[0].mxu0
      %v927 = vadd.f32 0.0, %v926
      %v928 = vpop.f32.mrb[0].mxu0
      %v929 = vpop.f32.mrb[0].mxu0
      %v930 = vadd.f32 0.0, %v929
      %v931 = vpop.f32.mrb[0].mxu0
      %932 = vmatprep.mubr.bf16.mxu0 0
      %933 = vmatmul.mubr.bf16.gmra.mrb[0].mxu0 %v824
      %v934 = vpop.f32.mrb[0].mxu0
      %v935 = vadd.f32 0.0, %v934
      %v936 = vpop.f32.mrb[0].mxu0
      %v937 = vpop.f32.mrb[0].mxu0
      %v938 = vadd.f32 0.0, %v937
      %v939 = vpop.f32.mrb[0].mxu0
      %940 = vmatprep.mubr.bf16.mxu0 0
      %941 = vmatmul.mubr.bf16.gmra.mrb[0].mxu0 %v825
      %v942 = vpop.f32.mrb[0].mxu0
      %v943 = vadd.f32 0.0, %v942
      %v944 = vpop.f32.mrb[0].mxu0
      %v945 = vpop.f32.mrb[0].mxu0
      %v946 = vadd.f32 0.0, %v945
      %v947 = vpop.f32.mrb[0].mxu0
      %948 = vmatprep.mubr.bf16.mxu0 0
      %949 = vmatmul.mubr.bf16.gmra.mrb[0].mxu0 %v826
      %v950 = vpop.f32.mrb[0].mxu0
      %v951 = vadd.f32 0.0, %v950
      %v952 = vpop.f32.mrb[0].mxu0
      %v953 = vpop.f32.mrb[0].mxu0
      %v954 = vadd.f32 0.0, %v953
      %v955 = vpop.f32.mrb[0].mxu0
      %956 = vdwg.mxu0
      %v957 = vadd.f32 %v806, %v927
      %v958 = vadd.f32 %v807, %v930
      %v959 = vadd.f32 %v808, %v935
      %v960 = vadd.f32 %v809, %v938
      %v961 = vadd.f32 %v810, %v943
      %v962 = vadd.f32 %v811, %v946
      %v963 = vadd.f32 %v812, %v951
      %v964 = vadd.f32 %v813, %v954
      %v965 = vld [vmem:[%s663 + $0x1] sm:$0xff]
      %v966 = vld [vmem:[%s663 + $0x11] sm:$0xff]
      %v967 = vld [vmem:[%s663 + $0x21] sm:$0xff]
      %v968 = vld [vmem:[%s663 + $0x31] sm:$0xff]
      %v969 = vld [vmem:[%s663 + $0x41] sm:$0xff]
      %v970 = vld [vmem:[%s663 + $0x51] sm:$0xff]
      %v971 = vld [vmem:[%s663 + $0x61] sm:$0xff]
      %v972 = vld [vmem:[%s663 + $0x71] sm:$0xff]
      %v973 = vpack.c.bf16 %v966, %v965
      %v974 = vpack.c.bf16 %v968, %v967
      %v975 = vpack.c.bf16 %v970, %v969
      %v976 = vpack.c.bf16 %v972, %v971
      %s977 = scalar_lea.vmem %s1, 320
      %v978 = vld [vmem:[%s977] sm:$0xf]
      %v979 = vld [vmem:[%s977 + $0x4] sm:$0xf]
      %v980 = vld [vmem:[%s977 + $0x8] sm:$0xf]
      %v981 = vld [vmem:[%s977 + $0xc] sm:$0xf]
      %v982 = vld [vmem:[%s977 + $0x10] sm:$0xf]
      %v983 = vld [vmem:[%s977 + $0x14] sm:$0xf]
      %v984 = vld [vmem:[%s977 + $0x18] sm:$0xf]
      %v985 = vld [vmem:[%s977 + $0x1c] sm:$0xf]
      %v986 = vld [vmem:[%s977 + $0x20] sm:$0xf]
      %v987 = vld [vmem:[%s977 + $0x24] sm:$0xf]
      %v988 = vld [vmem:[%s977 + $0x28] sm:$0xf]
      %v989 = vld [vmem:[%s977 + $0x2c] sm:$0xf]
      %v990 = vld [vmem:[%s977 + $0x30] sm:$0xf]
      %v991 = vld [vmem:[%s977 + $0x34] sm:$0xf]
      %v992 = vld [vmem:[%s977 + $0x38] sm:$0xf]
      %v993 = vld [vmem:[%s977 + $0x3c] sm:$0xf]
      %v1010 = vunpack.c.l.b16 %v978
      %v1011 = vunpack.c.l.b16 %v979
      %v1012 = vunpack.c.l.b16 %v980
      %v1013 = vunpack.c.l.b16 %v981
      %v1014 = vunpack.c.l.b16 %v982
      %v1015 = vunpack.c.l.b16 %v983
      %v1016 = vunpack.c.l.b16 %v984
      %v1017 = vunpack.c.l.b16 %v985
      %v1018 = vunpack.c.l.b16 %v986
      %v1019 = vunpack.c.l.b16 %v987
      %v1020 = vunpack.c.l.b16 %v988
      %v1021 = vunpack.c.l.b16 %v989
      %v1022 = vunpack.c.l.b16 %v990
      %v1023 = vunpack.c.l.b16 %v991
      %v1024 = vunpack.c.l.b16 %v992
      %v1025 = vunpack.c.l.b16 %v993
      %v1026 = vpack.c.b16 %v1011, %v1010
      %v1027 = vpack.c.b16 %v1013, %v1012
      %v1028 = vpack.c.b16 %v1015, %v1014
      %v1029 = vpack.c.b16 %v1017, %v1016
      %v1030 = vpack.c.b16 %v1019, %v1018
      %v1031 = vpack.c.b16 %v1021, %v1020
      %v1032 = vpack.c.b16 %v1023, %v1022
      %v1033 = vpack.c.b16 %v1025, %v1024
      %1042 = vmatprep.subr.bf16.mxu0 0
      %1043 = vmatpush1.bf16.msra.mxu0 %v1026
      %1044 = vmatprep.subr.bf16.mxu0 0
      %1045 = vmatpush1.bf16.msra.mxu0 %v1027
      %1046 = vmatprep.subr.bf16.mxu0 0
      %1047 = vmatpush1.bf16.msra.mxu0 %v1028
      %1048 = vmatprep.subr.bf16.mxu0 0
      %1049 = vmatpush1.bf16.msra.mxu0 %v1029
      %1050 = vmatprep.subr.bf16.mxu0 0
      %1051 = vmatpush1.bf16.msra.mxu0 %v1030
      %1052 = vmatprep.subr.bf16.mxu0 0
      %1053 = vmatpush1.bf16.msra.mxu0 %v1031
      %1054 = vmatprep.subr.bf16.mxu0 0
      %1055 = vmatpush1.bf16.msra.mxu0 %v1032
      %1056 = vmatprep.subr.bf16.mxu0 0
      %1057 = vmatpush1.bf16.msra.mxu0 %v1033
      %1058 = vmatprep.subr.bf16.mxu0 0
      %1059 = vmatpush1.bf16.msra.mxu0 0
      %1060 = vmatprep.subr.bf16.mxu0 0
      %1061 = vmatpush1.bf16.msra.mxu0 0
      %1062 = vmatprep.subr.bf16.mxu0 0
      %1063 = vmatpush1.bf16.msra.mxu0 0
      %1064 = vmatprep.subr.bf16.mxu0 0
      %1065 = vmatpush1.bf16.msra.mxu0 0
      %1066 = vmatprep.subr.bf16.mxu0 0
      %1067 = vmatpush1.bf16.msra.mxu0 0
      %1068 = vmatprep.subr.bf16.mxu0 0
      %1069 = vmatpush1.bf16.msra.mxu0 0
      %1070 = vmatprep.subr.bf16.mxu0 0
      %1071 = vmatpush1.bf16.msra.mxu0 0
      %1072 = vmatprep.subr.bf16.mxu0 0
      %1073 = vmatpush1.bf16.msra.mxu0 0
      %1074 = vmatprep.mubr.bf16.mxu0 0
      %1075 = vmatmul.mubr.bf16.gmra.mrb[0].mxu0 %v973
      %v1076 = vpop.f32.mrb[0].mxu0
      %v1077 = vadd.f32 0.0, %v1076
      %v1078 = vpop.f32.mrb[0].mxu0
      %v1079 = vpop.f32.mrb[0].mxu0
      %v1080 = vadd.f32 0.0, %v1079
      %v1081 = vpop.f32.mrb[0].mxu0
      %1082 = vmatprep.mubr.bf16.mxu0 0
      %1083 = vmatmul.mubr.bf16.gmra.mrb[0].mxu0 %v974
      %v1084 = vpop.f32.mrb[0].mxu0
      %v1085 = vadd.f32 0.0, %v1084
      %v1086 = vpop.f32.mrb[0].mxu0
      %v1087 = vpop.f32.mrb[0].mxu0
      %v1088 = vadd.f32 0.0, %v1087
      %v1089 = vpop.f32.mrb[0].mxu0
      %1090 = vmatprep.mubr.bf16.mxu0 0
      %1091 = vmatmul.mubr.bf16.gmra.mrb[0].mxu0 %v975
      %v1092 = vpop.f32.mrb[0].mxu0
      %v1093 = vadd.f32 0.0, %v1092
      %v1094 = vpop.f32.mrb[0].mxu0
      %v1095 = vpop.f32.mrb[0].mxu0
      %v1096 = vadd.f32 0.0, %v1095
      %v1097 = vpop.f32.mrb[0].mxu0
      %1098 = vmatprep.mubr.bf16.mxu0 0
      %1099 = vmatmul.mubr.bf16.gmra.mrb[0].mxu0 %v976
      %v1100 = vpop.f32.mrb[0].mxu0
      %v1101 = vadd.f32 0.0, %v1100
      %v1102 = vpop.f32.mrb[0].mxu0
      %v1103 = vpop.f32.mrb[0].mxu0
      %v1104 = vadd.f32 0.0, %v1103
      %v1105 = vpop.f32.mrb[0].mxu0
      %1106 = vdwg.mxu0
      %v1107 = vadd.f32 %v957, %v1077
      %v1108 = vadd.f32 %v958, %v1080
      %v1109 = vadd.f32 %v959, %v1085
      %v1110 = vadd.f32 %v960, %v1088
      %v1111 = vadd.f32 %v961, %v1093
      %v1112 = vadd.f32 %v962, %v1096
      %v1113 = vadd.f32 %v963, %v1101
      %v1114 = vadd.f32 %v964, %v1104
      %s1115 = scalar_lea.vmem %s221, 16
      %v1116 = vld [vmem:[%s1115] sm:$0xff]
      %v1117 = vld [vmem:[%s1115 + $0x10] sm:$0xff]
      %v1118 = vld [vmem:[%s1115 + $0x20] sm:$0xff]
      %v1119 = vld [vmem:[%s1115 + $0x30] sm:$0xff]
      %v1120 = vld [vmem:[%s1115 + $0x40] sm:$0xff]
      %v1121 = vld [vmem:[%s1115 + $0x50] sm:$0xff]
      %v1122 = vld [vmem:[%s1115 + $0x60] sm:$0xff]
      %v1123 = vld [vmem:[%s1115 + $0x70] sm:$0xff]
      %v1124 = vpack.c.bf16 %v1117, %v1116
      %v1125 = vpack.c.bf16 %v1119, %v1118
      %v1126 = vpack.c.bf16 %v1121, %v1120
      %v1127 = vpack.c.bf16 %v1123, %v1122
      %s1128 = scalar_lea.vmem %s1, 384
      %v1129 = vld [vmem:[%s1128] sm:$0xf]
      %v1130 = vld [vmem:[%s1128 + $0x4] sm:$0xf]
      %v1131 = vld [vmem:[%s1128 + $0x8] sm:$0xf]
      %v1132 = vld [vmem:[%s1128 + $0xc] sm:$0xf]
      %v1133 = vld [vmem:[%s1128 + $0x10] sm:$0xf]
      %v1134 = vld [vmem:[%s1128 + $0x14] sm:$0xf]
      %v1135 = vld [vmem:[%s1128 + $0x18] sm:$0xf]
      %v1136 = vld [vmem:[%s1128 + $0x1c] sm:$0xf]
      %v1137 = vld [vmem:[%s1128 + $0x20] sm:$0xf]
      %v1138 = vld [vmem:[%s1128 + $0x24] sm:$0xf]
      %v1139 = vld [vmem:[%s1128 + $0x28] sm:$0xf]
      %v1140 = vld [vmem:[%s1128 + $0x2c] sm:$0xf]
      %v1141 = vld [vmem:[%s1128 + $0x30] sm:$0xf]
      %v1142 = vld [vmem:[%s1128 + $0x34] sm:$0xf]
      %v1143 = vld [vmem:[%s1128 + $0x38] sm:$0xf]
      %v1144 = vld [vmem:[%s1128 + $0x3c] sm:$0xf]
      %v1161 = vunpack.c.l.b16 %v1129
      %v1162 = vunpack.c.l.b16 %v1130
      %v1163 = vunpack.c.l.b16 %v1131
      %v1164 = vunpack.c.l.b16 %v1132
      %v1165 = vunpack.c.l.b16 %v1133
      %v1166 = vunpack.c.l.b16 %v1134
      %v1167 = vunpack.c.l.b16 %v1135
      %v1168 = vunpack.c.l.b16 %v1136
      %v1169 = vunpack.c.l.b16 %v1137
      %v1170 = vunpack.c.l.b16 %v1138
      %v1171 = vunpack.c.l.b16 %v1139
      %v1172 = vunpack.c.l.b16 %v1140
      %v1173 = vunpack.c.l.b16 %v1141
      %v1174 = vunpack.c.l.b16 %v1142
      %v1175 = vunpack.c.l.b16 %v1143
      %v1176 = vunpack.c.l.b16 %v1144
      %v1177 = vpack.c.b16 %v1162, %v1161
      %v1178 = vpack.c.b16 %v1164, %v1163
      %v1179 = vpack.c.b16 %v1166, %v1165
      %v1180 = vpack.c.b16 %v1168, %v1167
      %v1181 = vpack.c.b16 %v1170, %v1169
      %v1182 = vpack.c.b16 %v1172, %v1171
      %v1183 = vpack.c.b16 %v1174, %v1173
      %v1184 = vpack.c.b16 %v1176, %v1175
      %1193 = vmatprep.subr.bf16.mxu0 0
      %1194 = vmatpush1.bf16.msra.mxu0 %v1177
      %1195 = vmatprep.subr.bf16.mxu0 0
      %1196 = vmatpush1.bf16.msra.mxu0 %v1178
      %1197 = vmatprep.subr.bf16.mxu0 0
      %1198 = vmatpush1.bf16.msra.mxu0 %v1179
      %1199 = vmatprep.subr.bf16.mxu0 0
      %1200 = vmatpush1.bf16.msra.mxu0 %v1180
      %1201 = vmatprep.subr.bf16.mxu0 0
      %1202 = vmatpush1.bf16.msra.mxu0 %v1181
      %1203 = vmatprep.subr.bf16.mxu0 0
      %1204 = vmatpush1.bf16.msra.mxu0 %v1182
      %1205 = vmatprep.subr.bf16.mxu0 0
      %1206 = vmatpush1.bf16.msra.mxu0 %v1183
      %1207 = vmatprep.subr.bf16.mxu0 0
      %1208 = vmatpush1.bf16.msra.mxu0 %v1184
      %1209 = vmatprep.subr.bf16.mxu0 0
      %1210 = vmatpush1.bf16.msra.mxu0 0
      %1211 = vmatprep.subr.bf16.mxu0 0
      %1212 = vmatpush1.bf16.msra.mxu0 0
      %1213 = vmatprep.subr.bf16.mxu0 0
      %1214 = vmatpush1.bf16.msra.mxu0 0
      %1215 = vmatprep.subr.bf16.mxu0 0
      %1216 = vmatpush1.bf16.msra.mxu0 0
      %1217 = vmatprep.subr.bf16.mxu0 0
      %1218 = vmatpush1.bf16.msra.mxu0 0
      %1219 = vmatprep.subr.bf16.mxu0 0
      %1220 = vmatpush1.bf16.msra.mxu0 0
      %1221 = vmatprep.subr.bf16.mxu0 0
      %1222 = vmatpush1.bf16.msra.mxu0 0
      %1223 = vmatprep.subr.bf16.mxu0 0
      %1224 = vmatpush1.bf16.msra.mxu0 0
      %1225 = vmatprep.mubr.bf16.mxu0 0
      %1226 = vmatmul.mubr.bf16.gmra.mrb[0].mxu0 %v1124
      %v1227 = vpop.f32.mrb[0].mxu0
      %v1228 = vadd.f32 0.0, %v1227
      %v1229 = vpop.f32.mrb[0].mxu0
      %v1230 = vpop.f32.mrb[0].mxu0
      %v1231 = vadd.f32 0.0, %v1230
      %v1232 = vpop.f32.mrb[0].mxu0
      %1233 = vmatprep.mubr.bf16.mxu0 0
      %1234 = vmatmul.mubr.bf16.gmra.mrb[0].mxu0 %v1125
      %v1235 = vpop.f32.mrb[0].mxu0
      %v1236 = vadd.f32 0.0, %v1235
      %v1237 = vpop.f32.mrb[0].mxu0
      %v1238 = vpop.f32.mrb[0].mxu0
      %v1239 = vadd.f32 0.0, %v1238
      %v1240 = vpop.f32.mrb[0].mxu0
      %1241 = vmatprep.mubr.bf16.mxu0 0
      %1242 = vmatmul.mubr.bf16.gmra.mrb[0].mxu0 %v1126
      %v1243 = vpop.f32.mrb[0].mxu0
      %v1244 = vadd.f32 0.0, %v1243
      %v1245 = vpop.f32.mrb[0].mxu0
      %v1246 = vpop.f32.mrb[0].mxu0
      %v1247 = vadd.f32 0.0, %v1246
      %v1248 = vpop.f32.mrb[0].mxu0
      %1249 = vmatprep.mubr.bf16.mxu0 0
      %1250 = vmatmul.mubr.bf16.gmra.mrb[0].mxu0 %v1127
      %v1251 = vpop.f32.mrb[0].mxu0
      %v1252 = vadd.f32 0.0, %v1251
      %v1253 = vpop.f32.mrb[0].mxu0
      %v1254 = vpop.f32.mrb[0].mxu0
      %v1255 = vadd.f32 0.0, %v1254
      %v1256 = vpop.f32.mrb[0].mxu0
      %1257 = vdwg.mxu0
      %v1258 = vadd.f32 %v1107, %v1228
      %v1259 = vadd.f32 %v1108, %v1231
      %v1260 = vadd.f32 %v1109, %v1236
      %v1261 = vadd.f32 %v1110, %v1239
      %v1262 = vadd.f32 %v1111, %v1244
      %v1263 = vadd.f32 %v1112, %v1247
      %v1264 = vadd.f32 %v1113, %v1252
      %v1265 = vadd.f32 %v1114, %v1255
      %s1266 = scalar_lea.vmem %s221, 160
      %v1267 = vld [vmem:[%s1266] sm:$0xff]
      %v1268 = vld [vmem:[%s1266 + $0x10] sm:$0xff]
      %v1269 = vld [vmem:[%s1266 + $0x20] sm:$0xff]
      %v1270 = vld [vmem:[%s1266 + $0x30] sm:$0xff]
      %v1271 = vld [vmem:[%s1266 + $0x40] sm:$0xff]
      %v1272 = vld [vmem:[%s1266 + $0x50] sm:$0xff]
      %v1273 = vld [vmem:[%s1266 + $0x60] sm:$0xff]
      %v1274 = vld [vmem:[%s1266 + $0x70] sm:$0xff]
      %v1275 = vpack.c.bf16 %v1268, %v1267
      %v1276 = vpack.c.bf16 %v1270, %v1269
      %v1277 = vpack.c.bf16 %v1272, %v1271
      %v1278 = vpack.c.bf16 %v1274, %v1273
      %s1279 = scalar_lea.vmem %s1, 448
      %v1280 = vld [vmem:[%s1279] sm:$0xf]
      %v1281 = vld [vmem:[%s1279 + $0x4] sm:$0xf]
      %v1282 = vld [vmem:[%s1279 + $0x8] sm:$0xf]
      %v1283 = vld [vmem:[%s1279 + $0xc] sm:$0xf]
      %v1284 = vld [vmem:[%s1279 + $0x10] sm:$0xf]
      %v1285 = vld [vmem:[%s1279 + $0x14] sm:$0xf]
      %v1286 = vld [vmem:[%s1279 + $0x18] sm:$0xf]
      %v1287 = vld [vmem:[%s1279 + $0x1c] sm:$0xf]
      %v1288 = vld [vmem:[%s1279 + $0x20] sm:$0xf]
      %v1289 = vld [vmem:[%s1279 + $0x24] sm:$0xf]
      %v1290 = vld [vmem:[%s1279 + $0x28] sm:$0xf]
      %v1291 = vld [vmem:[%s1279 + $0x2c] sm:$0xf]
      %v1292 = vld [vmem:[%s1279 + $0x30] sm:$0xf]
      %v1293 = vld [vmem:[%s1279 + $0x34] sm:$0xf]
      %v1294 = vld [vmem:[%s1279 + $0x38] sm:$0xf]
      %v1295 = vld [vmem:[%s1279 + $0x3c] sm:$0xf]
      %v1312 = vunpack.c.l.b16 %v1280
      %v1313 = vunpack.c.l.b16 %v1281
      %v1314 = vunpack.c.l.b16 %v1282
      %v1315 = vunpack.c.l.b16 %v1283
      %v1316 = vunpack.c.l.b16 %v1284
      %v1317 = vunpack.c.l.b16 %v1285
      %v1318 = vunpack.c.l.b16 %v1286
      %v1319 = vunpack.c.l.b16 %v1287
      %v1320 = vunpack.c.l.b16 %v1288
      %v1321 = vunpack.c.l.b16 %v1289
      %v1322 = vunpack.c.l.b16 %v1290
      %v1323 = vunpack.c.l.b16 %v1291
      %v1324 = vunpack.c.l.b16 %v1292
      %v1325 = vunpack.c.l.b16 %v1293
      %v1326 = vunpack.c.l.b16 %v1294
      %v1327 = vunpack.c.l.b16 %v1295
      %v1328 = vpack.c.b16 %v1313, %v1312
      %v1329 = vpack.c.b16 %v1315, %v1314
      %v1330 = vpack.c.b16 %v1317, %v1316
      %v1331 = vpack.c.b16 %v1319, %v1318
      %v1332 = vpack.c.b16 %v1321, %v1320
      %v1333 = vpack.c.b16 %v1323, %v1322
      %v1334 = vpack.c.b16 %v1325, %v1324
      %v1335 = vpack.c.b16 %v1327, %v1326
      %1344 = vmatprep.subr.bf16.mxu0 0
      %1345 = vmatpush1.bf16.msra.mxu0 %v1328
      %1346 = vmatprep.subr.bf16.mxu0 0
      %1347 = vmatpush1.bf16.msra.mxu0 %v1329
      %1348 = vmatprep.subr.bf16.mxu0 0
      %1349 = vmatpush1.bf16.msra.mxu0 %v1330
      %1350 = vmatprep.subr.bf16.mxu0 0
      %1351 = vmatpush1.bf16.msra.mxu0 %v1331
      %1352 = vmatprep.subr.bf16.mxu0 0
      %1353 = vmatpush1.bf16.msra.mxu0 %v1332
      %1354 = vmatprep.subr.bf16.mxu0 0
      %1355 = vmatpush1.bf16.msra.mxu0 %v1333
      %1356 = vmatprep.subr.bf16.mxu0 0
      %1357 = vmatpush1.bf16.msra.mxu0 %v1334
      %1358 = vmatprep.subr.bf16.mxu0 0
      %1359 = vmatpush1.bf16.msra.mxu0 %v1335
      %1360 = vmatprep.subr.bf16.mxu0 0
      %1361 = vmatpush1.bf16.msra.mxu0 0
      %1362 = vmatprep.subr.bf16.mxu0 0
      %1363 = vmatpush1.bf16.msra.mxu0 0
      %1364 = vmatprep.subr.bf16.mxu0 0
      %1365 = vmatpush1.bf16.msra.mxu0 0
      %1366 = vmatprep.subr.bf16.mxu0 0
      %1367 = vmatpush1.bf16.msra.mxu0 0
      %1368 = vmatprep.subr.bf16.mxu0 0
      %1369 = vmatpush1.bf16.msra.mxu0 0
      %1370 = vmatprep.subr.bf16.mxu0 0
      %1371 = vmatpush1.bf16.msra.mxu0 0
      %1372 = vmatprep.subr.bf16.mxu0 0
      %1373 = vmatpush1.bf16.msra.mxu0 0
      %1374 = vmatprep.subr.bf16.mxu0 0
      %1375 = vmatpush1.bf16.msra.mxu0 0
      %1376 = vmatprep.mubr.bf16.mxu0 0
      %1377 = vmatmul.mubr.bf16.gmra.mrb[0].mxu0 %v1275
      %v1378 = vpop.f32.mrb[0].mxu0
      %v1379 = vadd.f32 0.0, %v1378
      %v1380 = vpop.f32.mrb[0].mxu0
      %v1381 = vpop.f32.mrb[0].mxu0
      %v1382 = vadd.f32 0.0, %v1381
      %v1383 = vpop.f32.mrb[0].mxu0
      %1384 = vmatprep.mubr.bf16.mxu0 0
      %1385 = vmatmul.mubr.bf16.gmra.mrb[0].mxu0 %v1276
      %v1386 = vpop.f32.mrb[0].mxu0
      %v1387 = vadd.f32 0.0, %v1386
      %v1388 = vpop.f32.mrb[0].mxu0
      %v1389 = vpop.f32.mrb[0].mxu0
      %v1390 = vadd.f32 0.0, %v1389
      %v1391 = vpop.f32.mrb[0].mxu0
      %1392 = vmatprep.mubr.bf16.mxu0 0
      %1393 = vmatmul.mubr.bf16.gmra.mrb[0].mxu0 %v1277
      %v1394 = vpop.f32.mrb[0].mxu0
      %v1395 = vadd.f32 0.0, %v1394
      %v1396 = vpop.f32.mrb[0].mxu0
      %v1397 = vpop.f32.mrb[0].mxu0
      %v1398 = vadd.f32 0.0, %v1397
      %v1399 = vpop.f32.mrb[0].mxu0
      %1400 = vmatprep.mubr.bf16.mxu0 0
      %1401 = vmatmul.mubr.bf16.gmra.mrb[0].mxu0 %v1278
      %v1402 = vpop.f32.mrb[0].mxu0
      %v1403 = vadd.f32 0.0, %v1402
      %v1404 = vpop.f32.mrb[0].mxu0
      %v1405 = vpop.f32.mrb[0].mxu0
      %v1406 = vadd.f32 0.0, %v1405
      %v1407 = vpop.f32.mrb[0].mxu0
      %1408 = vdwg.mxu0
      %v1409 = vadd.f32 %v1258, %v1379
      %v1410 = vadd.f32 %v1259, %v1382
      %v1411 = vadd.f32 %v1260, %v1387
      %v1412 = vadd.f32 %v1261, %v1390
      %v1413 = vadd.f32 %v1262, %v1395
      %v1414 = vadd.f32 %v1263, %v1398
      %v1415 = vadd.f32 %v1264, %v1403
      %v1416 = vadd.f32 %v1265, %v1406
      %v1417 = vld [vmem:[%s1115 + $0x1] sm:$0xff]
      %v1418 = vld [vmem:[%s1115 + $0x11] sm:$0xff]
      %v1419 = vld [vmem:[%s1115 + $0x21] sm:$0xff]
      %v1420 = vld [vmem:[%s1115 + $0x31] sm:$0xff]
      %v1421 = vld [vmem:[%s1115 + $0x41] sm:$0xff]
      %v1422 = vld [vmem:[%s1115 + $0x51] sm:$0xff]
      %v1423 = vld [vmem:[%s1115 + $0x61] sm:$0xff]
      %v1424 = vld [vmem:[%s1115 + $0x71] sm:$0xff]
      %v1425 = vpack.c.bf16 %v1418, %v1417
      %v1426 = vpack.c.bf16 %v1420, %v1419
      %v1427 = vpack.c.bf16 %v1422, %v1421
      %v1428 = vpack.c.bf16 %v1424, %v1423
      %s1429 = scalar_lea.vmem %s1, 512
      %v1430 = vld [vmem:[%s1429] sm:$0xf]
      %v1431 = vld [vmem:[%s1429 + $0x4] sm:$0xf]
      %v1432 = vld [vmem:[%s1429 + $0x8] sm:$0xf]
      %v1433 = vld [vmem:[%s1429 + $0xc] sm:$0xf]
      %v1434 = vld [vmem:[%s1429 + $0x10] sm:$0xf]
      %v1435 = vld [vmem:[%s1429 + $0x14] sm:$0xf]
      %v1436 = vld [vmem:[%s1429 + $0x18] sm:$0xf]
      %v1437 = vld [vmem:[%s1429 + $0x1c] sm:$0xf]
      %v1438 = vld [vmem:[%s1429 + $0x20] sm:$0xf]
      %v1439 = vld [vmem:[%s1429 + $0x24] sm:$0xf]
      %v1440 = vld [vmem:[%s1429 + $0x28] sm:$0xf]
      %v1441 = vld [vmem:[%s1429 + $0x2c] sm:$0xf]
      %v1442 = vld [vmem:[%s1429 + $0x30] sm:$0xf]
      %v1443 = vld [vmem:[%s1429 + $0x34] sm:$0xf]
      %v1444 = vld [vmem:[%s1429 + $0x38] sm:$0xf]
      %v1445 = vld [vmem:[%s1429 + $0x3c] sm:$0xf]
      %v1462 = vunpack.c.l.b16 %v1430
      %v1463 = vunpack.c.l.b16 %v1431
      %v1464 = vunpack.c.l.b16 %v1432
      %v1465 = vunpack.c.l.b16 %v1433
      %v1466 = vunpack.c.l.b16 %v1434
      %v1467 = vunpack.c.l.b16 %v1435
      %v1468 = vunpack.c.l.b16 %v1436
      %v1469 = vunpack.c.l.b16 %v1437
      %v1470 = vunpack.c.l.b16 %v1438
      %v1471 = vunpack.c.l.b16 %v1439
      %v1472 = vunpack.c.l.b16 %v1440
      %v1473 = vunpack.c.l.b16 %v1441
      %v1474 = vunpack.c.l.b16 %v1442
      %v1475 = vunpack.c.l.b16 %v1443
      %v1476 = vunpack.c.l.b16 %v1444
      %v1477 = vunpack.c.l.b16 %v1445
      %v1478 = vpack.c.b16 %v1463, %v1462
      %v1479 = vpack.c.b16 %v1465, %v1464
      %v1480 = vpack.c.b16 %v1467, %v1466
      %v1481 = vpack.c.b16 %v1469, %v1468
      %v1482 = vpack.c.b16 %v1471, %v1470
      %v1483 = vpack.c.b16 %v1473, %v1472
      %v1484 = vpack.c.b16 %v1475, %v1474
      %v1485 = vpack.c.b16 %v1477, %v1476
      %1494 = vmatprep.subr.bf16.mxu0 0
      %1495 = vmatpush1.bf16.msra.mxu0 %v1478
      %1496 = vmatprep.subr.bf16.mxu0 0
      %1497 = vmatpush1.bf16.msra.mxu0 %v1479
      %1498 = vmatprep.subr.bf16.mxu0 0
      %1499 = vmatpush1.bf16.msra.mxu0 %v1480
      %1500 = vmatprep.subr.bf16.mxu0 0
      %1501 = vmatpush1.bf16.msra.mxu0 %v1481
      %1502 = vmatprep.subr.bf16.mxu0 0
      %1503 = vmatpush1.bf16.msra.mxu0 %v1482
      %1504 = vmatprep.subr.bf16.mxu0 0
      %1505 = vmatpush1.bf16.msra.mxu0 %v1483
      %1506 = vmatprep.subr.bf16.mxu0 0
      %1507 = vmatpush1.bf16.msra.mxu0 %v1484
      %1508 = vmatprep.subr.bf16.mxu0 0
      %1509 = vmatpush1.bf16.msra.mxu0 %v1485
      %1510 = vmatprep.subr.bf16.mxu0 0
      %1511 = vmatpush1.bf16.msra.mxu0 0
      %1512 = vmatprep.subr.bf16.mxu0 0
      %1513 = vmatpush1.bf16.msra.mxu0 0
      %1514 = vmatprep.subr.bf16.mxu0 0
      %1515 = vmatpush1.bf16.msra.mxu0 0
      %1516 = vmatprep.subr.bf16.mxu0 0
      %1517 = vmatpush1.bf16.msra.mxu0 0
      %1518 = vmatprep.subr.bf16.mxu0 0
      %1519 = vmatpush1.bf16.msra.mxu0 0
      %1520 = vmatprep.subr.bf16.mxu0 0
      %1521 = vmatpush1.bf16.msra.mxu0 0
      %1522 = vmatprep.subr.bf16.mxu0 0
      %1523 = vmatpush1.bf16.msra.mxu0 0
      %1524 = vmatprep.subr.bf16.mxu0 0
      %1525 = vmatpush1.bf16.msra.mxu0 0
      %1526 = vmatprep.mubr.bf16.mxu0 0
      %1527 = vmatmul.mubr.bf16.gmra.mrb[0].mxu0 %v1425
      %v1528 = vpop.f32.mrb[0].mxu0
      %v1529 = vadd.f32 0.0, %v1528
      %v1530 = vpop.f32.mrb[0].mxu0
      %v1531 = vpop.f32.mrb[0].mxu0
      %v1532 = vadd.f32 0.0, %v1531
      %v1533 = vpop.f32.mrb[0].mxu0
      %1534 = vmatprep.mubr.bf16.mxu0 0
      %1535 = vmatmul.mubr.bf16.gmra.mrb[0].mxu0 %v1426
      %v1536 = vpop.f32.mrb[0].mxu0
      %v1537 = vadd.f32 0.0, %v1536
      %v1538 = vpop.f32.mrb[0].mxu0
      %v1539 = vpop.f32.mrb[0].mxu0
      %v1540 = vadd.f32 0.0, %v1539
      %v1541 = vpop.f32.mrb[0].mxu0
      %1542 = vmatprep.mubr.bf16.mxu0 0
      %1543 = vmatmul.mubr.bf16.gmra.mrb[0].mxu0 %v1427
      %v1544 = vpop.f32.mrb[0].mxu0
      %v1545 = vadd.f32 0.0, %v1544
      %v1546 = vpop.f32.mrb[0].mxu0
      %v1547 = vpop.f32.mrb[0].mxu0
      %v1548 = vadd.f32 0.0, %v1547
      %v1549 = vpop.f32.mrb[0].mxu0
      %1550 = vmatprep.mubr.bf16.mxu0 0
      %1551 = vmatmul.mubr.bf16.gmra.mrb[0].mxu0 %v1428
      %v1552 = vpop.f32.mrb[0].mxu0
      %v1553 = vadd.f32 0.0, %v1552
      %v1554 = vpop.f32.mrb[0].mxu0
      %v1555 = vpop.f32.mrb[0].mxu0
      %v1556 = vadd.f32 0.0, %v1555
      %v1557 = vpop.f32.mrb[0].mxu0
      %1558 = vdwg.mxu0
      %v1559 = vadd.f32 %v1409, %v1529
      %v1560 = vadd.f32 %v1410, %v1532
      %v1561 = vadd.f32 %v1411, %v1537
      %v1562 = vadd.f32 %v1412, %v1540
      %v1563 = vadd.f32 %v1413, %v1545
      %v1564 = vadd.f32 %v1414, %v1548
      %v1565 = vadd.f32 %v1415, %v1553
      %v1566 = vadd.f32 %v1416, %v1556
      %v1567 = vpack.c.bf16 %v1559, %v1559
      %v1568 = vpack.c.bf16 %v1560, %v1560
      %v1569 = vpack.c.bf16 %v1561, %v1561
      %v1570 = vpack.c.bf16 %v1562, %v1562
      %v1571 = vpack.c.bf16 %v1563, %v1563
      %v1572 = vpack.c.bf16 %v1564, %v1564
      %v1573 = vpack.c.bf16 %v1565, %v1565
      %v1574 = vpack.c.bf16 %v1566, %v1566
      %1575 = vst [vmem:[%s227] sm:$0xf] %v1567
      %1576 = vst [vmem:[%s227 + $0x4] sm:$0xf] %v1568
      %1577 = vst [vmem:[%s227 + $0x8] sm:$0xf] %v1569
      %1578 = vst [vmem:[%s227 + $0xc] sm:$0xf] %v1570
      %1579 = vst [vmem:[%s227 + $0x10] sm:$0xf] %v1571
      %1580 = vst [vmem:[%s227 + $0x14] sm:$0xf] %v1572
      %1581 = vst [vmem:[%s227 + $0x18] sm:$0xf] %v1573
      %1582 = vst [vmem:[%s227 + $0x1c] sm:$0xf] %v1574
      %p1583 = scmp.eq.s32.totalorder %s17, 0
      // Predicated region
      $region37: #{resblock_forward.3} parent=35 // pred_check
        %p1584 = pneg %p1583
      $region38: #{resblock_forward.3} parent=35 // pred_check_branch
        %1586 = sbr.rel (%p1584) target = $region40
      $region39: #{resblock_forward.3} parent=35 // pred_region
        %1587 = vst [vmem:[%s5] sm:$0x3] 0.0
      $region40: #{resblock_forward.3} parent=35 // pred_fallthru
        _
      %v1588 = vld [vmem:[%s5] sm:$0x1]
      %v1589 = vadd.f32 %v1559, %v1560
      %v1590 = vadd.f32 %v1589, %v1561
      %v1591 = vadd.f32 %v1590, %v1562
      %v1592 = vadd.f32 %v1591, %v1563
      %v1593 = vadd.f32 %v1592, %v1564
      %v1594 = vadd.f32 %v1593, %v1565
      %v1595 = vadd.f32 %v1594, %v1566
      %v1596 = vrot.slane %v1595, 4
      %v1597 = vadd.f32 %v1595, %v1596
      %v1598 = vrot.slane %v1597, 2
      %v1599 = vadd.f32 %v1597, %v1598
      %v1600 = vrot.slane %v1599, 1
      %v1601 = vadd.f32 %v1599, %v1600
      %v1602 = vadd.f32 %v1588, %v1601
      %1603 = vst [vmem:[%s5] sm:$0x1] %v1602
      %v1604 = vld [vmem:[%s5 + $0x1] sm:$0x1]
      %v1605 = vmul.f32 %v1559, %v1559
      %v1606 = vmul.f32 %v1560, %v1560
      %v1607 = vmul.f32 %v1561, %v1561
      %v1608 = vmul.f32 %v1562, %v1562
      %v1609 = vmul.f32 %v1563, %v1563
      %v1610 = vmul.f32 %v1564, %v1564
      %v1611 = vmul.f32 %v1565, %v1565
      %v1612 = vmul.f32 %v1566, %v1566
      %v1613 = vadd.f32 %v1605, %v1606
      %v1614 = vadd.f32 %v1613, %v1607
      %v1615 = vadd.f32 %v1614, %v1608
      %v1616 = vadd.f32 %v1615, %v1609
      %v1617 = vadd.f32 %v1616, %v1610
      %v1618 = vadd.f32 %v1617, %v1611
      %v1619 = vadd.f32 %v1618, %v1612
      %v1620 = vrot.slane %v1619, 4
      %v1621 = vadd.f32 %v1619, %v1620
      %v1622 = vrot.slane %v1621, 2
      %v1623 = vadd.f32 %v1621, %v1622
      %v1624 = vrot.slane %v1623, 1
      %v1625 = vadd.f32 %v1623, %v1624
      %v1626 = vadd.f32 %v1604, %v1625
      %1627 = vst [vmem:[%s5 + $0x1] sm:$0x1] %v1626
      %p1628 = scmp.eq.s32.totalorder %s17, 1
      // Predicated region
      $region41: #{resblock_forward.3} parent=35 // pred_check
        %p1629 = pneg %p1628
      $region42: #{resblock_forward.3} parent=35 // pred_check_branch
        %1631 = sbr.rel (%p1629) target = $region44
      $region43: #{resblock_forward.3} parent=35 // pred_region
        %v1632 = vld [vmem:[%s5] sm:$0x1]
        %v1633 = vmul.f32 %v1632, 0.0078125
        %v1634 = vld [vmem:[%s5 + $0x1] sm:$0x1]
        %v1635 = vmul.f32 %v1634, 0.0078125
        %v1636 = vmul.f32 %v1633, %v1633
        %v1637 = vsub.f32 %v1635, %v1636
        %v1638 = vld [vmem:[%s2] sm:$0x1]
        %v1639 = vadd.f32 %v1637, 1e-05
        %v1640 = vrsqrt.pop %v1639
        %v1641 = vmul.f32 %v1638, %v1640
        %1642 = vst [vmem:[%s5] sm:$0x1] %v1641
        %v1643 = vld [vmem:[%s3] sm:$0x1]
        %v1644 = vmul.f32 %v1633, %v1641
        %v1645 = vsub.f32 %v1643, %v1644
        %1646 = vst [vmem:[%s5 + $0x1] sm:$0x1] %v1645
      $region44: #{resblock_forward.3} parent=35 // pred_fallthru
        _
      %p1647 = scmp.lt.s32.totalorder %s17, 1
      %s1648 = scalar_select %p1647, %s17, 1
      %s1649 = smul.addr %s1648, 8
      %s1650 = smul.addr %s1649, 4
      %s1651 = scalar_lea.vmem %s4, %s1650
      // Predicated region
      $region45: #{resblock_forward.3} parent=35 // pred_check
        %p1652 = pneg %p124
      $region46: #{resblock_forward.3} parent=35 // pred_check_branch
        %1654 = sbr.rel (%p1652) target = $region48
      $region47: #{resblock_forward.3} parent=35 // pred_region
        _
      $region48: #{resblock_forward.3} parent=35 // pred_fallthru
        _
      // Predicated region
      $region49: #{resblock_forward.3} parent=35 // pred_check
        %p1655 = pneg %p145
      $region50: #{resblock_forward.3} parent=35 // pred_check_branch
        %1657 = sbr.rel (%p1655) target = $region52
      $region51: #{resblock_forward.3} parent=35 // pred_region
        _
      $region52: #{resblock_forward.3} parent=35 // pred_fallthru
        _
      // Predicated region
      $region53: #{resblock_forward.3} parent=35 // pred_check
        %p1658 = pneg %p145
      $region54: #{resblock_forward.3} parent=35 // pred_check_branch
        %1660 = sbr.rel (%p1658) target = $region56
      $region55: #{resblock_forward.3} parent=35 // pred_region
        _
      $region56: #{resblock_forward.3} parent=35 // pred_fallthru
        _
    $region36: #{resblock_forward.3} parent=5 // pred_fallthru
      _
    %p1661 = scmp.le.s32.totalorder 2, %s12
    // Predicated region
    $region57: #{resblock_forward.3} parent=5 // pred_check
      %p1662 = pneg %p1661
    $region58: #{resblock_forward.3} parent=5 // pred_check_branch
      %1664 = sbr.rel (%p1662) target = $region60
    $region59: #{resblock_forward.3} parent=5 // pred_region
      %s1665 = ssub.s32 %s12, 2
      // Predicated region
      $region61: #{resblock_forward.3} parent=59 // pred_check
        %p1666 = pneg %p130
      $region62: #{resblock_forward.3} parent=59 // pred_check_branch
        %1668 = sbr.rel (%p1666) target = $region64
      $region63: #{resblock_forward.3} parent=59 // pred_region
        %p1669 = scmp.lt.s32.totalorder %s18, 1
        %s1670 = scalar_select %p1669, %s18, 1
        %s1671 = smul.addr %s1670, 8
        %s1672 = smul.addr %s1671, 4
        %s1673 = scalar_lea.vmem %s4, %s1672
      $region64: #{resblock_forward.3} parent=59 // pred_fallthru
        _
    $region60: #{resblock_forward.3} parent=5 // pred_fallthru
      _
  $region6: #{resblock_forward.3} parent=0 // loop_footer
    %s16 = sadd.s32 1, %s12
  $region7: #{resblock_forward.3} parent=0 // loop_footer_branch
    %11 = sbr.rel target = $region3
  $region8: #{resblock_forward.3} parent=0 // loop_exit
    _

// kernel: resblock_forward.4
$region0: #{resblock_forward.4}
  #allocation0 [shape = 'u32[]', space=smem, size = 0x4, offset = 0x4, fixed_abs, tag = 'smem constant byte address 0x4 - core index']
  #allocation1 [shape = 'u32[144,128]{1,0:T(1,128)}', space=vmem, size = 0x12000, scoped, tag = 'internal scratch']
  #allocation2 [shape = 'f32[10,10,128]{2,1,0:T(8,128)}', space=vmem, size = 0x14000, scoped, tag = 'scratch operand']
  %s0 = inlined_call_operand.vmem [shape: bf16[2,8,8,128], index: 0, kind: input, shape index: {}]
  %s1 = inlined_call_operand.vmem [shape: f32[2,128], index: 1, kind: input, shape index: {}]
  %s2 = inlined_call_operand.vmem [shape: bf16[9,128,128], index: 2, kind: input, shape index: {}]
  %s3 = inlined_call_operand.vmem [shape: f32[1,128], index: 3, kind: input, shape index: {}]
  %s4 = inlined_call_operand.vmem [shape: f32[1,128], index: 4, kind: input, shape index: {}]
  %s5 = inlined_call_operand.vmem [shape: bf16[2,8,8,128], index: 5, kind: output, shape index: {0}]
  %s6 = inlined_call_operand.vmem [shape: f32[2,128], index: 6, kind: output, shape index: {1}]
  %7 = xla_tuple %s5, %s6
  %s8 = sld [smem:[#allocation0]]
  $region73: #{resblock_forward.4} parent=0
    _
  %s10 = ssub.s32 1, %s8
  %s11 = scalar_select 0, %s10, %s8
  loop: start=0, step=1, limit=4
  $region2: #{resblock_forward.4} parent=0 // loop_pre_header
    _
  $region3: #{resblock_forward.4} parent=0 // loop_header
    %s13 = sphi 0, %s17
    %p14 = scmp.ge.s32.totalorder %s13, 4
    %s23 = sphi 0, %s25
    %s26 = sphi 0, %s23
    %s27 = sphi 0, %s26
    %s43 = sphi 0, %s27
    %s47 = sphi 0, %s47
    %s49 = sphi 0, %s47
    %s50 = sphi 0, %s49
    %s64 = sphi 0, %s50
    %s68 = sphi 0, %s68
    %s70 = sphi 0, %s68
    %s71 = sphi 0, %s70
    %s85 = sphi 0, %s71
    %s89 = sphi 0, %s89
    %s91 = sphi 0, %s89
    %s92 = sphi 0, %s91
    %s106 = sphi 0, %s92
    %s110 = sphi 0, %s110
    %s112 = sphi 0, %s110
    %s113 = sphi 0, %s112
    %s127 = sphi 0, %s113
    %s133 = sphi 0, %s135
    %s136 = sphi 0, %s133
    %s137 = sphi 0, %s136
    %s153 = sphi 0, %s137
    %s157 = sphi 0, %s157
    %s159 = sphi 0, %s157
    %s160 = sphi 0, %s159
    %s174 = sphi 0, %s160
  $region4: #{resblock_forward.4} parent=0 // loop_header_branch
    %16 = sbr.rel (%p14) target = $region8
  $region5: #{resblock_forward.4} parent=0 // loop_body
    %s18 = ssub.s32 %s13, 1
    %s19 = ssub.s32 %s13, 2
    %s20 = sadd.s32 %s13, 1
    %s21 = ssub.s32 %s13, %s20
    %p22 = scmp.eq.s32.totalorder %s21, 0
    %s24 = sadd.s32 %s23, 1
    %s25 = scalar_select %p22, %s23, %s24
    %p28 = pneg %p22
    %p29 = scmp.eq.s32.totalorder %s13, 1
    %p30 = por %p28, %p29
    %p31 = scmp.ne.s32.totalorder %s23, %s26
    %p32 = scmp.eq.s32.totalorder %s13, 0
    %p33 = por %p31, %p32
    %p34 = scmp.ne.s32.totalorder %s23, %s26
    %p35 = scmp.eq.s32.totalorder %s18, 1
    %p36 = por %p34, %p35
    %p37 = scmp.ne.s32.totalorder %s26, %s27
    %p38 = scmp.eq.s32.totalorder %s18, 0
    %p39 = por %p37, %p38
    %p40 = scmp.ne.s32.totalorder %s26, %s27
    %p41 = scmp.eq.s32.totalorder %s19, 1
    %p42 = por %p40, %p41
    %p44 = scmp.ne.s32.totalorder %s27, %s43
    %p45 = scmp.eq.s32.totalorder %s19, 0
    %p46 = por %p44, %p45
    %s48 = sadd.s32 %s47, 1
    %p51 = scmp.eq.s32.totalorder %s13, 1
    %p52 = scmp.ne.s32.totalorder %s47, %s49
    %p53 = scmp.eq.s32.totalorder %s13, 0
    %p54 = por %p52, %p53
    %p55 = scmp.ne.s32.totalorder %s47, %s49
    %p56 = scmp.eq.s32.totalorder %s18, 1
    %p57 = por %p55, %p56
    %p58 = scmp.ne.s32.totalorder %s49, %s50
    %p59 = scmp.eq.s32.totalorder %s18, 0
    %p60 = por %p58, %p59
    %p61 = scmp.ne.s32.totalorder %s49, %s50
    %p62 = scmp.eq.s32.totalorder %s19, 1
    %p63 = por %p61, %p62
    %p65 = scmp.ne.s32.totalorder %s50, %s64
    %p66 = scmp.eq.s32.totalorder %s19, 0
    %p67 = por %p65, %p66
    %s69 = sadd.s32 %s68, 1
    %p72 = scmp.eq.s32.totalorder %s13, 1
    %p73 = scmp.ne.s32.totalorder %s68, %s70
    %p74 = scmp.eq.s32.totalorder %s13, 0
    %p75 = por %p73, %p74
    %p76 = scmp.ne.s32.totalorder %s68, %s70
    %p77 = scmp.eq.s32.totalorder %s18, 1
    %p78 = por %p76, %p77
    %p79 = scmp.ne.s32.totalorder %s70, %s71
    %p80 = scmp.eq.s32.totalorder %s18, 0
    %p81 = por %p79, %p80
    %p82 = scmp.ne.s32.totalorder %s70, %s71
    %p83 = scmp.eq.s32.totalorder %s19, 1
    %p84 = por %p82, %p83
    %p86 = scmp.ne.s32.totalorder %s71, %s85
    %p87 = scmp.eq.s32.totalorder %s19, 0
    %p88 = por %p86, %p87
    %s90 = sadd.s32 %s89, 1
    %p93 = scmp.eq.s32.totalorder %s13, 1
    %p94 = scmp.ne.s32.totalorder %s89, %s91
    %p95 = scmp.eq.s32.totalorder %s13, 0
    %p96 = por %p94, %p95
    %p97 = scmp.ne.s32.totalorder %s89, %s91
    %p98 = scmp.eq.s32.totalorder %s18, 1
    %p99 = por %p97, %p98
    %p100 = scmp.ne.s32.totalorder %s91, %s92
    %p101 = scmp.eq.s32.totalorder %s18, 0
    %p102 = por %p100, %p101
    %p103 = scmp.ne.s32.totalorder %s91, %s92
    %p104 = scmp.eq.s32.totalorder %s19, 1
    %p105 = por %p103, %p104
    %p107 = scmp.ne.s32.totalorder %s92, %s106
    %p108 = scmp.eq.s32.totalorder %s19, 0
    %p109 = por %p107, %p108
    %s111 = sadd.s32 %s110, 1
    %p114 = scmp.eq.s32.totalorder %s13, 1
    %p115 = scmp.ne.s32.totalorder %s110, %s112
    %p116 = scmp.eq.s32.totalorder %s13, 0
    %p117 = por %p115, %p116
    %p118 = scmp.ne.s32.totalorder %s110, %s112
    %p119 = scmp.eq.s32.totalorder %s18, 1
    %p120 = por %p118, %p119
    %p121 = scmp.ne.s32.totalorder %s112, %s113
    %p122 = scmp.eq.s32.totalorder %s18, 0
    %p123 = por %p121, %p122
    %p124 = scmp.ne.s32.totalorder %s112, %s113
    %p125 = scmp.eq.s32.totalorder %s19, 1
    %p126 = por %p124, %p125
    %p128 = scmp.ne.s32.totalorder %s113, %s127
    %p129 = scmp.eq.s32.totalorder %s19, 0
    %p130 = por %p128, %p129
    %s131 = ssub.s32 %s13, %s20
    %p132 = scmp.eq.s32.totalorder %s131, 0
    %s134 = sadd.s32 %s133, 1
    %s135 = scalar_select %p132, %s133, %s134
    %p138 = pneg %p132
    %p139 = scmp.eq.s32.totalorder %s13, 1
    %p140 = por %p138, %p139
    %p141 = scmp.ne.s32.totalorder %s133, %s136
    %p142 = scmp.eq.s32.totalorder %s13, 0
    %p143 = por %p141, %p142
    %p144 = scmp.ne.s32.totalorder %s133, %s136
    %p145 = scmp.eq.s32.totalorder %s18, 1
    %p146 = por %p144, %p145
    %p147 = scmp.ne.s32.totalorder %s136, %s137
    %p148 = scmp.eq.s32.totalorder %s18, 0
    %p149 = por %p147, %p148
    %p150 = scmp.ne.s32.totalorder %s136, %s137
    %p151 = scmp.eq.s32.totalorder %s19, 1
    %p152 = por %p150, %p151
    %p154 = scmp.ne.s32.totalorder %s137, %s153
    %p155 = scmp.eq.s32.totalorder %s19, 0
    %p156 = por %p154, %p155
    %s158 = sadd.s32 %s157, 1
    %p161 = scmp.eq.s32.totalorder %s13, 1
    %p162 = scmp.ne.s32.totalorder %s157, %s159
    %p163 = scmp.eq.s32.totalorder %s13, 0
    %p164 = por %p162, %p163
    %p165 = scmp.ne.s32.totalorder %s157, %s159
    %p166 = scmp.eq.s32.totalorder %s18, 1
    %p167 = por %p165, %p166
    %p168 = scmp.ne.s32.totalorder %s159, %s160
    %p169 = scmp.eq.s32.totalorder %s18, 0
    %p170 = por %p168, %p169
    %p171 = scmp.ne.s32.totalorder %s159, %s160
    %p172 = scmp.eq.s32.totalorder %s19, 1
    %p173 = por %p171, %p172
    %p175 = scmp.ne.s32.totalorder %s160, %s174
    %p176 = scmp.eq.s32.totalorder %s19, 0
    %p177 = por %p175, %p176
    %p178 = scmp.le.s32.totalorder 1, %s13
    %p179 = scmp.lt.s32.totalorder %s13, 3
    %p180 = pnand %p178, %p179
    %p181 = pneg %p180
    // Predicated region
    $region9: #{resblock_forward.4} parent=5 // pred_check
      _
    $region10: #{resblock_forward.4} parent=5 // pred_check_branch
      %183 = sbr.rel (%p180) target = $region12
    $region11: #{resblock_forward.4} parent=5 // pred_region
      %s184 = ssub.s32 %s13, 1
      // Predicated region
      $region13: #{resblock_forward.4} parent=11 // pred_check
        %p185 = pneg %p60
      $region14: #{resblock_forward.4} parent=11 // pred_check_branch
        %187 = sbr.rel (%p185) target = $region16
      $region15: #{resblock_forward.4} parent=11 // pred_region
        _
      $region16: #{resblock_forward.4} parent=11 // pred_fallthru
        _
      // Predicated region
      $region17: #{resblock_forward.4} parent=11 // pred_check
        %p188 = pneg %p81
      $region18: #{resblock_forward.4} parent=11 // pred_check_branch
        %190 = sbr.rel (%p188) target = $region20
      $region19: #{resblock_forward.4} parent=11 // pred_region
        _
      $region20: #{resblock_forward.4} parent=11 // pred_fallthru
        _
      // Predicated region
      $region21: #{resblock_forward.4} parent=11 // pred_check
        %p191 = pneg %p102
      $region22: #{resblock_forward.4} parent=11 // pred_check_branch
        %193 = sbr.rel (%p191) target = $region24
      $region23: #{resblock_forward.4} parent=11 // pred_region
        _
      $region24: #{resblock_forward.4} parent=11 // pred_fallthru
        _
      // Predicated region
      $region25: #{resblock_forward.4} parent=11 // pred_check
        %p194 = pneg %p123
      $region26: #{resblock_forward.4} parent=11 // pred_check_branch
        %196 = sbr.rel (%p194) target = $region28
      $region27: #{resblock_forward.4} parent=11 // pred_region
        _
      $region28: #{resblock_forward.4} parent=11 // pred_fallthru
        _
    $region12: #{resblock_forward.4} parent=5 // pred_fallthru
      _
    %p197 = scmp.lt.s32.totalorder %s13, 2
    // Predicated region
    $region29: #{resblock_forward.4} parent=5 // pred_check
      %p198 = pneg %p197
    $region30: #{resblock_forward.4} parent=5 // pred_check_branch
      %200 = sbr.rel (%p198) target = $region32
    $region31: #{resblock_forward.4} parent=5 // pred_region
      // Predicated region
      $region33: #{resblock_forward.4} parent=31 // pred_check
        %p201 = pneg %p33
      $region34: #{resblock_forward.4} parent=31 // pred_check_branch
        %203 = sbr.rel (%p201) target = $region36
      $region35: #{resblock_forward.4} parent=31 // pred_region
        %p204 = scmp.lt.s32.totalorder %s13, 1
        %s205 = scalar_select %p204, %s13, 1
        %s206 = smul.addr %s205, 8
        %s207 = smul.addr %s206, 4
        %s208 = scalar_lea.vmem %s0, %s207
      $region36: #{resblock_forward.4} parent=31 // pred_fallthru
        _
    $region32: #{resblock_forward.4} parent=5 // pred_fallthru
      _
    %p209 = scmp.le.s32.totalorder 1, %s13
    %p210 = scmp.lt.s32.totalorder %s13, 3
    %p211 = pnand %p209, %p210
    %p212 = pneg %p211
    // Predicated region
    $region37: #{resblock_forward.4} parent=5 // pred_check
      _
    $region38: #{resblock_forward.4} parent=5 // pred_check_branch
      %214 = sbr.rel (%p211) target = $region40
    $region39: #{resblock_forward.4} parent=5 // pred_region
      %s215 = ssub.s32 %s13, 1
      %p216 = scmp.lt.s32.totalorder %s18, 1
      %s217 = scalar_select %p216, %s18, 1
      %s218 = smul.addr %s217, 8
      %s219 = smul.addr %s218, 4
      %s220 = scalar_lea.vmem %s0, %s219
      %p221 = pneg %p39
      %p222 = pneg %p36
      %p223 = pneg %p60
      %p224 = pneg %p57
      %p225 = pneg %p81
      %p226 = pneg %p78
      %p227 = pneg %p102
      %p228 = pneg %p99
      %p229 = pneg %p123
      %p230 = pneg %p120
      %p231 = pneg %p149
      %p232 = pneg %p146
      %p233 = scmp.lt.s32.totalorder %s18, 1
      %s234 = scalar_select %p233, %s18, 1
      %s235 = smul.addr %s234, 8
      %s236 = smul.addr %s235, 4
      %s237 = scalar_lea.vmem %s5, %s236
      %p238 = pneg %p170
      %p239 = pneg %p167
      %p240 = scmp.lt.s32.totalorder %s18, 1
      %s241 = scalar_select %p240, %s18, 1
      %s242 = smul.addr %s241, 8
      %s243 = smul.addr %s242, 4
      %s244 = scalar_lea.vmem %s0, %s243
      %p245 = scmp.lt.s32.totalorder %s18, 1
      %s246 = scalar_select %p245, %s18, 1
      %s247 = smul.addr %s246, 8
      %s248 = smul.addr %s247, 4
      %s249 = scalar_lea.vmem %s5, %s248
      %p251 = scmp.eq.s32.totalorder %s18, 0
      // Predicated region
      $region41: #{resblock_forward.4} parent=39 // pred_check
        %p252 = pneg %p251
      $region42: #{resblock_forward.4} parent=39 // pred_check_branch
        %254 = sbr.rel (%p252) target = $region44
      $region43: #{resblock_forward.4} parent=39 // pred_region
        %255 = vst [vmem:[#allocation2] sm:$0xff] 0.0
        %256 = vst [vmem:[#allocation2 + $0x8] sm:$0x3] 0.0
        %257 = vst [vmem:[#allocation2 + $0x10] sm:$0xff] 0.0
        %258 = vst [vmem:[#allocation2 + $0x18] sm:$0x3] 0.0
        %259 = vst [vmem:[#allocation2 + $0x20] sm:$0xff] 0.0
        %260 = vst [vmem:[#allocation2 + $0x28] sm:$0x3] 0.0
        %261 = vst [vmem:[#allocation2 + $0x30] sm:$0xff] 0.0
        %262 = vst [vmem:[#allocation2 + $0x38] sm:$0x3] 0.0
        %263 = vst [vmem:[#allocation2 + $0x40] sm:$0xff] 0.0
        %264 = vst [vmem:[#allocation2 + $0x48] sm:$0x3] 0.0
        %265 = vst [vmem:[#allocation2 + $0x50] sm:$0xff] 0.0
        %266 = vst [vmem:[#allocation2 + $0x58] sm:$0x3] 0.0
        %267 = vst [vmem:[#allocation2 + $0x60] sm:$0xff] 0.0
        %268 = vst [vmem:[#allocation2 + $0x68] sm:$0x3] 0.0
        %269 = vst [vmem:[#allocation2 + $0x70] sm:$0xff] 0.0
        %270 = vst [vmem:[#allocation2 + $0x78] sm:$0x3] 0.0
        %271 = vst [vmem:[#allocation2 + $0x80] sm:$0xff] 0.0
        %272 = vst [vmem:[#allocation2 + $0x88] sm:$0x3] 0.0
        %273 = vst [vmem:[#allocation2 + $0x90] sm:$0xff] 0.0
        %274 = vst [vmem:[#allocation2 + $0x98] sm:$0x3] 0.0
      $region44: #{resblock_forward.4} parent=39 // pred_fallthru
        _
      %v275 = vld [vmem:[%s1] sm:$0x1]
      %v276 = vld [vmem:[%s1 + $0x1] sm:$0x1]
      %v277 = vld [vmem:[%s244] sm:$0xf]
      %v278 = vld [vmem:[%s244 + $0x4] sm:$0xf]
      %v279 = vld [vmem:[%s244 + $0x8] sm:$0xf]
      %v280 = vld [vmem:[%s244 + $0xc] sm:$0xf]
      %v281 = vld [vmem:[%s244 + $0x10] sm:$0xf]
      %v282 = vld [vmem:[%s244 + $0x14] sm:$0xf]
      %v283 = vld [vmem:[%s244 + $0x18] sm:$0xf]
      %v284 = vld [vmem:[%s244 + $0x1c] sm:$0xf]
      %v285 = vunpack.c.l.bf16 %v277
      %v286 = vunpack.c.l.bf16 %v278
      %v287 = vunpack.c.l.bf16 %v279
      %v288 = vunpack.c.l.bf16 %v280
      %v289 = vunpack.c.l.bf16 %v281
      %v290 = vunpack.c.l.bf16 %v282
      %v291 = vunpack.c.l.bf16 %v283
      %v292 = vunpack.c.l.bf16 %v284
      %v293 = vlaneseq
      %v294 = vshrl.u32 %v293, 7
      %v295 = vsub.s32 0, %v294
      %v296 = vrot.slane %v275, %v295
      %v297 = vmul.f32 %v285, %v296
      %v298 = vmul.f32 %v286, %v296
      %v299 = vmul.f32 %v287, %v296
      %v300 = vmul.f32 %v288, %v296
      %v301 = vmul.f32 %v289, %v296
      %v302 = vmul.f32 %v290, %v296
      %v303 = vmul.f32 %v291, %v296
      %v304 = vmul.f32 %v292, %v296
      %v305 = vlaneseq
      %v306 = vshrl.u32 %v305, 7
      %v307 = vsub.s32 0, %v306
      %v308 = vrot.slane %v276, %v307
      %v309 = vadd.f32 %v297, %v308
      %v310 = vadd.f32 %v298, %v308
      %v311 = vadd.f32 %v299, %v308
      %v312 = vadd.f32 %v300, %v308
      %v313 = vadd.f32 %v301, %v308
      %v314 = vadd.f32 %v302, %v308
      %v315 = vadd.f32 %v303, %v308
      %v316 = vadd.f32 %v304, %v308
      %v317 = vmax.f32 %v309, 0.0
      %v318 = vmax.f32 %v310, 0.0
      %v319 = vmax.f32 %v311, 0.0
      %v320 = vmax.f32 %v312, 0.0
      %v321 = vmax.f32 %v313, 0.0
      %v322 = vmax.f32 %v314, 0.0
      %v323 = vmax.f32 %v315, 0.0
      %v324 = vmax.f32 %v316, 0.0
      %s325 = scalar_lea.vmem [#allocation2], 16
      %326 = vst [vmem:[%s325 + $0x1] sm:$0xff] %v317
      %327 = vst [vmem:[%s325 + $0x11] sm:$0xff] %v318
      %328 = vst [vmem:[%s325 + $0x21] sm:$0xff] %v319
      %329 = vst [vmem:[%s325 + $0x31] sm:$0xff] %v320
      %330 = vst [vmem:[%s325 + $0x41] sm:$0xff] %v321
      %331 = vst [vmem:[%s325 + $0x51] sm:$0xff] %v322
      %332 = vst [vmem:[%s325 + $0x61] sm:$0xff] %v323
      %333 = vst [vmem:[%s325 + $0x71] sm:$0xff] %v324
      %v334 = vld [vmem:[#allocation2] sm:$0xff]
      %v335 = vld [vmem:[#allocation2 + $0x10] sm:$0xff]
      %v336 = vld [vmem:[#allocation2 + $0x20] sm:$0xff]
      %v337 = vld [vmem:[#allocation2 + $0x30] sm:$0xff]
      %v338 = vld [vmem:[#allocation2 + $0x40] sm:$0xff]
      %v339 = vld [vmem:[#allocation2 + $0x50] sm:$0xff]
      %v340 = vld [vmem:[#allocation2 + $0x60] sm:$0xff]
      %v341 = vld [vmem:[#allocation2 + $0x70] sm:$0xff]
      %v342 = vpack.c.bf16 %v335, %v334
      %v343 = vpack.c.bf16 %v337, %v336
      %v344 = vpack.c.bf16 %v339, %v338
      %v345 = vpack.c.bf16 %v341, %v340
      %v346 = vld [vmem:[%s2] sm:$0xf]
      %v347 = vld [vmem:[%s2 + $0x4] sm:$0xf]
      %v348 = vld [vmem:[%s2 + $0x8] sm:$0xf]
      %v349 = vld [vmem:[%s2 + $0xc] sm:$0xf]
      %v350 = vld [vmem:[%s2 + $0x10] sm:$0xf]
      %v351 = vld [vmem:[%s2 + $0x14] sm:$0xf]
      %v352 = vld [vmem:[%s2 + $0x18] sm:$0xf]
      %v353 = vld [vmem:[%s2 + $0x1c] sm:$0xf]
      %v354 = vld [vmem:[%s2 + $0x20] sm:$0xf]
      %v355 = vld [vmem:[%s2 + $0x24] sm:$0xf]
      %v356 = vld [vmem:[%s2 + $0x28] sm:$0xf]
      %v357 = vld [vmem:[%s2 + $0x2c] sm:$0xf]
      %v358 = vld [vmem:[%s2 + $0x30] sm:$0xf]
      %v359 = vld [vmem:[%s2 + $0x34] sm:$0xf]
      %v360 = vld [vmem:[%s2 + $0x38] sm:$0xf]
      %v361 = vld [vmem:[%s2 + $0x3c] sm:$0xf]
      %v362 = vld [vmem:[#allocation2 + $0x1] sm:$0xff]
      %v363 = vld [vmem:[#allocation2 + $0x11] sm:$0xff]
      %v364 = vld [vmem:[#allocation2 + $0x21] sm:$0xff]
      %v365 = vld [vmem:[#allocation2 + $0x31] sm:$0xff]
      %v366 = vld [vmem:[#allocation2 + $0x41] sm:$0xff]
      %v367 = vld [vmem:[#allocation2 + $0x51] sm:$0xff]
      %v368 = vld [vmem:[#allocation2 + $0x61] sm:$0xff]
      %v369 = vld [vmem:[#allocation2 + $0x71] sm:$0xff]
      %v370 = vpack.c.bf16 %v363, %v362
      %v371 = vpack.c.bf16 %v365, %v364
      %v372 = vpack.c.bf16 %v367, %v366
      %v373 = vpack.c.bf16 %v369, %v368
      %s374 = scalar_lea.vmem %s2, 64
      %v375 = vld [vmem:[%s374] sm:$0xf]
      %v376 = vld [vmem:[%s374 + $0x4] sm:$0xf]
      %v377 = vld [vmem:[%s374 + $0x8] sm:$0xf]
      %v378 = vld [vmem:[%s374 + $0xc] sm:$0xf]
      %v379 = vld [vmem:[%s374 + $0x10] sm:$0xf]
      %v380 = vld [vmem:[%s374 + $0x14] sm:$0xf]
      %v381 = vld [vmem:[%s374 + $0x18] sm:$0xf]
      %v382 = vld [vmem:[%s374 + $0x1c] sm:$0xf]
      %v383 = vld [vmem:[%s374 + $0x20] sm:$0xf]
      %v384 = vld [vmem:[%s374 + $0x24] sm:$0xf]
      %v385 = vld [vmem:[%s374 + $0x28] sm:$0xf]
      %v386 = vld [vmem:[%s374 + $0x2c] sm:$0xf]
      %v387 = vld [vmem:[%s374 + $0x30] sm:$0xf]
      %v388 = vld [vmem:[%s374 + $0x34] sm:$0xf]
      %v389 = vld [vmem:[%s374 + $0x38] sm:$0xf]
      %v390 = vld [vmem:[%s374 + $0x3c] sm:$0xf]
      %v407 = vunpack.c.l.b16 %v375
      %v408 = vunpack.c.l.b16 %v376
      %v409 = vunpack.c.l.b16 %v377
      %v410 = vunpack.c.l.b16 %v378
      %v411 = vunpack.c.l.b16 %v379
      %v412 = vunpack.c.l.b16 %v380
      %v413 = vunpack.c.l.b16 %v381
      %v414 = vunpack.c.l.b16 %v382
      %v415 = vunpack.c.l.b16 %v383
      %v416 = vunpack.c.l.b16 %v384
      %v417 = vunpack.c.l.b16 %v385
      %v418 = vunpack.c.l.b16 %v386
      %v419 = vunpack.c.l.b16 %v387
      %v420 = vunpack.c.l.b16 %v388
      %v421 = vunpack.c.l.b16 %v389
      %v422 = vunpack.c.l.b16 %v390
      %v423 = vpack.c.b16 %v408, %v407
      %v424 = vpack.c.b16 %v410, %v409
      %v425 = vpack.c.b16 %v412, %v411
      %v426 = vpack.c.b16 %v414, %v413
      %v427 = vpack.c.b16 %v416, %v415
      %v428 = vpack.c.b16 %v418, %v417
      %v429 = vpack.c.b16 %v420, %v419
      %v430 = vpack.c.b16 %v422, %v421
      %439 = vmatprep.subr.bf16.mxu0 0
      %440 = vmatpush1.bf16.msra.mxu0 %v423
      %441 = vmatprep.subr.bf16.mxu0 0
      %442 = vmatpush1.bf16.msra.mxu0 %v424
      %443 = vmatprep.subr.bf16.mxu0 0
      %444 = vmatpush1.bf16.msra.mxu0 %v425
      %445 = vmatprep.subr.bf16.mxu0 0
      %446 = vmatpush1.bf16.msra.mxu0 %v426
      %447 = vmatprep.subr.bf16.mxu0 0
      %448 = vmatpush1.bf16.msra.mxu0 %v427
      %449 = vmatprep.subr.bf16.mxu0 0
      %450 = vmatpush1.bf16.msra.mxu0 %v428
      %451 = vmatprep.subr.bf16.mxu0 0
      %452 = vmatpush1.bf16.msra.mxu0 %v429
      %453 = vmatprep.subr.bf16.mxu0 0
      %454 = vmatpush1.bf16.msra.mxu0 %v430
      %455 = vmatprep.subr.bf16.mxu0 0
      %456 = vmatpush1.bf16.msra.mxu0 0
      %457 = vmatprep.subr.bf16.mxu0 0
      %458 = vmatpush1.bf16.msra.mxu0 0
      %459 = vmatprep.subr.bf16.mxu0 0
      %460 = vmatpush1.bf16.msra.mxu0 0
      %461 = vmatprep.subr.bf16.mxu0 0
      %462 = vmatpush1.bf16.msra.mxu0 0
      %463 = vmatprep.subr.bf16.mxu0 0
      %464 = vmatpush1.bf16.msra.mxu0 0
      %465 = vmatprep.subr.bf16.mxu0 0
      %466 = vmatpush1.bf16.msra.mxu0 0
      %467 = vmatprep.subr.bf16.mxu0 0
      %468 = vmatpush1.bf16.msra.mxu0 0
      %469 = vmatprep.subr.bf16.mxu0 0
      %470 = vmatpush1.bf16.msra.mxu0 0
      %471 = vmatprep.mubr.bf16.mxu0 0
      %472 = vmatmul.mubr.bf16.gmra.mrb[0].mxu0 %v370
      %v473 = vpop.f32.mrb[0].mxu0
      %v474 = vadd.f32 0.0, %v473
      %v475 = vpop.f32.mrb[0].mxu0
      %v476 = vpop.f32.mrb[0].mxu0
      %v477 = vadd.f32 0.0, %v476
      %v478 = vpop.f32.mrb[0].mxu0
      %479 = vmatprep.mubr.bf16.mxu0 0
      %480 = vmatmul.mubr.bf16.gmra.mrb[0].mxu0 %v371
      %v481 = vpop.f32.mrb[0].mxu0
      %v482 = vadd.f32 0.0, %v481
      %v483 = vpop.f32.mrb[0].mxu0
      %v484 = vpop.f32.mrb[0].mxu0
      %v485 = vadd.f32 0.0, %v484
      %v486 = vpop.f32.mrb[0].mxu0
      %487 = vmatprep.mubr.bf16.mxu0 0
      %488 = vmatmul.mubr.bf16.gmra.mrb[0].mxu0 %v372
      %v489 = vpop.f32.mrb[0].mxu0
      %v490 = vadd.f32 0.0, %v489
      %v491 = vpop.f32.mrb[0].mxu0
      %v492 = vpop.f32.mrb[0].mxu0
      %v493 = vadd.f32 0.0, %v492
      %v494 = vpop.f32.mrb[0].mxu0
      %495 = vmatprep.mubr.bf16.mxu0 0
      %496 = vmatmul.mubr.bf16.gmra.mrb[0].mxu0 %v373
      %v497 = vpop.f32.mrb[0].mxu0
      %v498 = vadd.f32 0.0, %v497
      %v499 = vpop.f32.mrb[0].mxu0
      %v500 = vpop.f32.mrb[0].mxu0
      %v501 = vadd.f32 0.0, %v500
      %v502 = vpop.f32.mrb[0].mxu0
      %503 = vdwg.mxu0
      %v520 = vunpack.c.l.b16 %v346
      %v521 = vunpack.c.l.b16 %v347
      %v522 = vunpack.c.l.b16 %v348
      %v523 = vunpack.c.l.b16 %v349
      %v524 = vunpack.c.l.b16 %v350
      %v525 = vunpack.c.l.b16 %v351
      %v526 = vunpack.c.l.b16 %v352
      %v527 = vunpack.c.l.b16 %v353
      %v528 = vunpack.c.l.b16 %v354
      %v529 = vunpack.c.l.b16 %v355
      %v530 = vunpack.c.l.b16 %v356
      %v531 = vunpack.c.l.b16 %v357
      %v532 = vunpack.c.l.b16 %v358
      %v533 = vunpack.c.l.b16 %v359
      %v534 = vunpack.c.l.b16 %v360
      %v535 = vunpack.c.l.b16 %v361
      %v536 = vpack.c.b16 %v521, %v520
      %v537 = vpack.c.b16 %v523, %v522
      %v538 = vpack.c.b16 %v525, %v524
      %v539 = vpack.c.b16 %v527, %v526
      %v540 = vpack.c.b16 %v529, %v528
      %v541 = vpack.c.b16 %v531, %v530
      %v542 = vpack.c.b16 %v533, %v532
      %v543 = vpack.c.b16 %v535, %v534
      %552 = vmatprep.subr.bf16.mxu0 0
      %553 = vmatpush1.bf16.msra.mxu0 %v536
      %554 = vmatprep.subr.bf16.mxu0 0
      %555 = vmatpush1.bf16.msra.mxu0 %v537
      %556 = vmatprep.subr.bf16.mxu0 0
      %557 = vmatpush1.bf16.msra.mxu0 %v538
      %558 = vmatprep.subr.bf16.mxu0 0
      %559 = vmatpush1.bf16.msra.mxu0 %v539
      %560 = vmatprep.subr.bf16.mxu0 0
      %561 = vmatpush1.bf16.msra.mxu0 %v540
      %562 = vmatprep.subr.bf16.mxu0 0
      %563 = vmatpush1.bf16.msra.mxu0 %v541
      %564 = vmatprep.subr.bf16.mxu0 0
      %565 = vmatpush1.bf16.msra.mxu0 %v542
      %566 = vmatprep.subr.bf16.mxu0 0
      %567 = vmatpush1.bf16.msra.mxu0 %v543
      %568 = vmatprep.subr.bf16.mxu0 0
      %569 = vmatpush1.bf16.msra.mxu0 0
      %570 = vmatprep.subr.bf16.mxu0 0
      %571 = vmatpush1.bf16.msra.mxu0 0
      %572 = vmatprep.subr.bf16.mxu0 0
      %573 = vmatpush1.bf16.msra.mxu0 0
      %574 = vmatprep.subr.bf16.mxu0 0
      %575 = vmatpush1.bf16.msra.mxu0 0
      %576 = vmatprep.subr.bf16.mxu0 0
      %577 = vmatpush1.bf16.msra.mxu0 0
      %578 = vmatprep.subr.bf16.mxu0 0
      %579 = vmatpush1.bf16.msra.mxu0 0
      %580 = vmatprep.subr.bf16.mxu0 0
      %581 = vmatpush1.bf16.msra.mxu0 0
      %582 = vmatprep.subr.bf16.mxu0 0
      %583 = vmatpush1.bf16.msra.mxu0 0
      %584 = vmatprep.mubr.bf16.mxu0 0
      %585 = vmatmul.mubr.bf16.gmra.mrb[0].mxu0 %v342
      %v586 = vpop.f32.mrb[0].mxu0
      %v587 = vadd.f32 %v474, %v586
      %v588 = vpop.f32.mrb[0].mxu0
      %v589 = vpop.f32.mrb[0].mxu0
      %v590 = vadd.f32 %v477, %v589
      %v591 = vpop.f32.mrb[0].mxu0
      %592 = vmatprep.mubr.bf16.mxu0 0
      %593 = vmatmul.mubr.bf16.gmra.mrb[0].mxu0 %v343
      %v594 = vpop.f32.mrb[0].mxu0
      %v595 = vadd.f32 %v482, %v594
      %v596 = vpop.f32.mrb[0].mxu0
      %v597 = vpop.f32.mrb[0].mxu0
      %v598 = vadd.f32 %v485, %v597
      %v599 = vpop.f32.mrb[0].mxu0
      %600 = vmatprep.mubr.bf16.mxu0 0
      %601 = vmatmul.mubr.bf16.gmra.mrb[0].mxu0 %v344
      %v602 = vpop.f32.mrb[0].mxu0
      %v603 = vadd.f32 %v490, %v602
      %v604 = vpop.f32.mrb[0].mxu0
      %v605 = vpop.f32.mrb[0].mxu0
      %v606 = vadd.f32 %v493, %v605
      %v607 = vpop.f32.mrb[0].mxu0
      %608 = vmatprep.mubr.bf16.mxu0 0
      %609 = vmatmul.mubr.bf16.gmra.mrb[0].mxu0 %v345
      %v610 = vpop.f32.mrb[0].mxu0
      %v611 = vadd.f32 %v498, %v610
      %v612 = vpop.f32.mrb[0].mxu0
      %v613 = vpop.f32.mrb[0].mxu0
      %v614 = vadd.f32 %v501, %v613
      %v615 = vpop.f32.mrb[0].mxu0
      %616 = vdwg.mxu0
      %v617 = vld [vmem:[#allocation2 + $0x2] sm:$0xff]
      %v618 = vld [vmem:[#allocation2 + $0x12] sm:$0xff]
      %v619 = vld [vmem:[#allocation2 + $0x22] sm:$0xff]
      %v620 = vld [vmem:[#allocation2 + $0x32] sm:$0xff]
      %v621 = vld [vmem:[#allocation2 + $0x42] sm:$0xff]
      %v622 = vld [vmem:[#allocation2 + $0x52] sm:$0xff]
      %v623 = vld [vmem:[#allocation2 + $0x62] sm:$0xff]
      %v624 = vld [vmem:[#allocation2 + $0x72] sm:$0xff]
      %v625 = vpack.c.bf16 %v618, %v617
      %v626 = vpack.c.bf16 %v620, %v619
      %v627 = vpack.c.bf16 %v622, %v621
      %v628 = vpack.c.bf16 %v624, %v623
      %s629 = scalar_lea.vmem %s2, 128
      %v630 = vld [vmem:[%s629] sm:$0xf]
      %v631 = vld [vmem:[%s629 + $0x4] sm:$0xf]
      %v632 = vld [vmem:[%s629 + $0x8] sm:$0xf]
      %v633 = vld [vmem:[%s629 + $0xc] sm:$0xf]
      %v634 = vld [vmem:[%s629 + $0x10] sm:$0xf]
      %v635 = vld [vmem:[%s629 + $0x14] sm:$0xf]
      %v636 = vld [vmem:[%s629 + $0x18] sm:$0xf]
      %v637 = vld [vmem:[%s629 + $0x1c] sm:$0xf]
      %v638 = vld [vmem:[%s629 + $0x20] sm:$0xf]
      %v639 = vld [vmem:[%s629 + $0x24] sm:$0xf]
      %v640 = vld [vmem:[%s629 + $0x28] sm:$0xf]
      %v641 = vld [vmem:[%s629 + $0x2c] sm:$0xf]
      %v642 = vld [vmem:[%s629 + $0x30] sm:$0xf]
      %v643 = vld [vmem:[%s629 + $0x34] sm:$0xf]
      %v644 = vld [vmem:[%s629 + $0x38] sm:$0xf]
      %v645 = vld [vmem:[%s629 + $0x3c] sm:$0xf]
      %v662 = vunpack.c.l.b16 %v630
      %v663 = vunpack.c.l.b16 %v631
      %v664 = vunpack.c.l.b16 %v632
      %v665 = vunpack.c.l.b16 %v633
      %v666 = vunpack.c.l.b16 %v634
      %v667 = vunpack.c.l.b16 %v635
      %v668 = vunpack.c.l.b16 %v636
      %v669 = vunpack.c.l.b16 %v637
      %v670 = vunpack.c.l.b16 %v638
      %v671 = vunpack.c.l.b16 %v639
      %v672 = vunpack.c.l.b16 %v640
      %v673 = vunpack.c.l.b16 %v641
      %v674 = vunpack.c.l.b16 %v642
      %v675 = vunpack.c.l.b16 %v643
      %v676 = vunpack.c.l.b16 %v644
      %v677 = vunpack.c.l.b16 %v645
      %v678 = vpack.c.b16 %v663, %v662
      %v679 = vpack.c.b16 %v665, %v664
      %v680 = vpack.c.b16 %v667, %v666
      %v681 = vpack.c.b16 %v669, %v668
      %v682 = vpack.c.b16 %v671, %v670
      %v683 = vpack.c.b16 %v673, %v672
      %v684 = vpack.c.b16 %v675, %v674
      %v685 = vpack.c.b16 %v677, %v676
      %694 = vmatprep.subr.bf16.mxu0 0
      %695 = vmatpush1.bf16.msra.mxu0 %v678
      %696 = vmatprep.subr.bf16.mxu0 0
      %697 = vmatpush1.bf16.msra.mxu0 %v679
      %698 = vmatprep.subr.bf16.mxu0 0
      %699 = vmatpush1.bf16.msra.mxu0 %v680
      %700 = vmatprep.subr.bf16.mxu0 0
      %701 = vmatpush1.bf16.msra.mxu0 %v681
      %702 = vmatprep.subr.bf16.mxu0 0
      %703 = vmatpush1.bf16.msra.mxu0 %v682
      %704 = vmatprep.subr.bf16.mxu0 0
      %705 = vmatpush1.bf16.msra.mxu0 %v683
      %706 = vmatprep.subr.bf16.mxu0 0
      %707 = vmatpush1.bf16.msra.mxu0 %v684
      %708 = vmatprep.subr.bf16.mxu0 0
      %709 = vmatpush1.bf16.msra.mxu0 %v685
      %710 = vmatprep.subr.bf16.mxu0 0
      %711 = vmatpush1.bf16.msra.mxu0 0
      %712 = vmatprep.subr.bf16.mxu0 0
      %713 = vmatpush1.bf16.msra.mxu0 0
      %714 = vmatprep.subr.bf16.mxu0 0
      %715 = vmatpush1.bf16.msra.mxu0 0
      %716 = vmatprep.subr.bf16.mxu0 0
      %717 = vmatpush1.bf16.msra.mxu0 0
      %718 = vmatprep.subr.bf16.mxu0 0
      %719 = vmatpush1.bf16.msra.mxu0 0
      %720 = vmatprep.subr.bf16.mxu0 0
      %721 = vmatpush1.bf16.msra.mxu0 0
      %722 = vmatprep.subr.bf16.mxu0 0
      %723 = vmatpush1.bf16.msra.mxu0 0
      %724 = vmatprep.subr.bf16.mxu0 0
      %725 = vmatpush1.bf16.msra.mxu0 0
      %726 = vmatprep.mubr.bf16.mxu0 0
      %727 = vmatmul.mubr.bf16.gmra.mrb[0].mxu0 %v625
      %v728 = vpop.f32.mrb[0].mxu0
      %v729 = vadd.f32 0.0, %v728
      %v730 = vpop.f32.mrb[0].mxu0
      %v731 = vpop.f32.mrb[0].mxu0
      %v732 = vadd.f32 0.0, %v731
      %v733 = vpop.f32.mrb[0].mxu0
      %734 = vmatprep.mubr.bf16.mxu0 0
      %735 = vmatmul.mubr.bf16.gmra.mrb[0].mxu0 %v626
      %v736 = vpop.f32.mrb[0].mxu0
      %v737 = vadd.f32 0.0, %v736
      %v738 = vpop.f32.mrb[0].mxu0
      %v739 = vpop.f32.mrb[0].mxu0
      %v740 = vadd.f32 0.0, %v739
      %v741 = vpop.f32.mrb[0].mxu0
      %742 = vmatprep.mubr.bf16.mxu0 0
      %743 = vmatmul.mubr.bf16.gmra.mrb[0].mxu0 %v627
      %v744 = vpop.f32.mrb[0].mxu0
      %v745 = vadd.f32 0.0, %v744
      %v746 = vpop.f32.mrb[0].mxu0
      %v747 = vpop.f32.mrb[0].mxu0
      %v748 = vadd.f32 0.0, %v747
      %v749 = vpop.f32.mrb[0].mxu0
      %750 = vmatprep.mubr.bf16.mxu0 0
      %751 = vmatmul.mubr.bf16.gmra.mrb[0].mxu0 %v628
      %v752 = vpop.f32.mrb[0].mxu0
      %v753 = vadd.f32 0.0, %v752
      %v754 = vpop.f32.mrb[0].mxu0
      %v755 = vpop.f32.mrb[0].mxu0
      %v756 = vadd.f32 0.0, %v755
      %v757 = vpop.f32.mrb[0].mxu0
      %758 = vdwg.mxu0
      %v759 = vadd.f32 %v587, %v729
      %v760 = vadd.f32 %v590, %v732
      %v761 = vadd.f32 %v595, %v737
      %v762 = vadd.f32 %v598, %v740
      %v763 = vadd.f32 %v603, %v745
      %v764 = vadd.f32 %v606, %v748
      %v765 = vadd.f32 %v611, %v753
      %v766 = vadd.f32 %v614, %v756
      %v767 = vld [vmem:[%s325] sm:$0xff]
      %v768 = vld [vmem:[%s325 + $0x10] sm:$0xff]
      %v769 = vld [vmem:[%s325 + $0x20] sm:$0xff]
      %v770 = vld [vmem:[%s325 + $0x30] sm:$0xff]
      %v771 = vld [vmem:[%s325 + $0x40] sm:$0xff]
      %v772 = vld [vmem:[%s325 + $0x50] sm:$0xff]
      %v773 = vld [vmem:[%s325 + $0x60] sm:$0xff]
      %v774 = vld [vmem:[%s325 + $0x70] sm:$0xff]
      %v775 = vpack.c.bf16 %v768, %v767
      %v776 = vpack.c.bf16 %v770, %v769
      %v777 = vpack.c.bf16 %v772, %v771
      %v778 = vpack.c.bf16 %v774, %v773
      %s779 = scalar_lea.vmem %s2, 192
      %v780 = vld [vmem:[%s779] sm:$0xf]
      %v781 = vld [vmem:[%s779 + $0x4] sm:$0xf]
      %v782 = vld [vmem:[%s779 + $0x8] sm:$0xf]
      %v783 = vld [vmem:[%s779 + $0xc] sm:$0xf]
      %v784 = vld [vmem:[%s779 + $0x10] sm:$0xf]
      %v785 = vld [vmem:[%s779 + $0x14] sm:$0xf]
      %v786 = vld [vmem:[%s779 + $0x18] sm:$0xf]
      %v787 = vld [vmem:[%s779 + $0x1c] sm:$0xf]
      %v788 = vld [vmem:[%s779 + $0x20] sm:$0xf]
      %v789 = vld [vmem:[%s779 + $0x24] sm:$0xf]
      %v790 = vld [vmem:[%s779 + $0x28] sm:$0xf]
      %v791 = vld [vmem:[%s779 + $0x2c] sm:$0xf]
      %v792 = vld [vmem:[%s779 + $0x30] sm:$0xf]
      %v793 = vld [vmem:[%s779 + $0x34] sm:$0xf]
      %v794 = vld [vmem:[%s779 + $0x38] sm:$0xf]
      %v795 = vld [vmem:[%s779 + $0x3c] sm:$0xf]
      %v812 = vunpack.c.l.b16 %v780
      %v813 = vunpack.c.l.b16 %v781
      %v814 = vunpack.c.l.b16 %v782
      %v815 = vunpack.c.l.b16 %v783
      %v816 = vunpack.c.l.b16 %v784
      %v817 = vunpack.c.l.b16 %v785
      %v818 = vunpack.c.l.b16 %v786
      %v819 = vunpack.c.l.b16 %v787
      %v820 = vunpack.c.l.b16 %v788
      %v821 = vunpack.c.l.b16 %v789
      %v822 = vunpack.c.l.b16 %v790
      %v823 = vunpack.c.l.b16 %v791
      %v824 = vunpack.c.l.b16 %v792
      %v825 = vunpack.c.l.b16 %v793
      %v826 = vunpack.c.l.b16 %v794
      %v827 = vunpack.c.l.b16 %v795
      %v828 = vpack.c.b16 %v813, %v812
      %v829 = vpack.c.b16 %v815, %v814
      %v830 = vpack.c.b16 %v817, %v816
      %v831 = vpack.c.b16 %v819, %v818
      %v832 = vpack.c.b16 %v821, %v820
      %v833 = vpack.c.b16 %v823, %v822
      %v834 = vpack.c.b16 %v825, %v824
      %v835 = vpack.c.b16 %v827, %v826
      %844 = vmatprep.subr.bf16.mxu0 0
      %845 = vmatpush1.bf16.msra.mxu0 %v828
      %846 = vmatprep.subr.bf16.mxu0 0
      %847 = vmatpush1.bf16.msra.mxu0 %v829
      %848 = vmatprep.subr.bf16.mxu0 0
      %849 = vmatpush1.bf16.msra.mxu0 %v830
      %850 = vmatprep.subr.bf16.mxu0 0
      %851 = vmatpush1.bf16.msra.mxu0 %v831
      %852 = vmatprep.subr.bf16.mxu0 0
      %853 = vmatpush1.bf16.msra.mxu0 %v832
      %854 = vmatprep.subr.bf16.mxu0 0
      %855 = vmatpush1.bf16.msra.mxu0 %v833
      %856 = vmatprep.subr.bf16.mxu0 0
      %857 = vmatpush1.bf16.msra.mxu0 %v834
      %858 = vmatprep.subr.bf16.mxu0 0
      %859 = vmatpush1.bf16.msra.mxu0 %v835
      %860 = vmatprep.subr.bf16.mxu0 0
      %861 = vmatpush1.bf16.msra.mxu0 0
      %862 = vmatprep.subr.bf16.mxu0 0
      %863 = vmatpush1.bf16.msra.mxu0 0
      %864 = vmatprep.subr.bf16.mxu0 0
      %865 = vmatpush1.bf16.msra.mxu0 0
      %866 = vmatprep.subr.bf16.mxu0 0
      %867 = vmatpush1.bf16.msra.mxu0 0
      %868 = vmatprep.subr.bf16.mxu0 0
      %869 = vmatpush1.bf16.msra.mxu0 0
      %870 = vmatprep.subr.bf16.mxu0 0
      %871 = vmatpush1.bf16.msra.mxu0 0
      %872 = vmatprep.subr.bf16.mxu0 0
      %873 = vmatpush1.bf16.msra.mxu0 0
      %874 = vmatprep.subr.bf16.mxu0 0
      %875 = vmatpush1.bf16.msra.mxu0 0
      %876 = vmatprep.mubr.bf16.mxu0 0
      %877 = vmatmul.mubr.bf16.gmra.mrb[0].mxu0 %v775
      %v878 = vpop.f32.mrb[0].mxu0
      %v879 = vadd.f32 0.0, %v878
      %v880 = vpop.f32.mrb[0].mxu0
      %v881 = vpop.f32.mrb[0].mxu0
      %v882 = vadd.f32 0.0, %v881
      %v883 = vpop.f32.mrb[0].mxu0
      %884 = vmatprep.mubr.bf16.mxu0 0
      %885 = vmatmul.mubr.bf16.gmra.mrb[0].mxu0 %v776
      %v886 = vpop.f32.mrb[0].mxu0
      %v887 = vadd.f32 0.0, %v886
      %v888 = vpop.f32.mrb[0].mxu0
      %v889 = vpop.f32.mrb[0].mxu0
      %v890 = vadd.f32 0.0, %v889
      %v891 = vpop.f32.mrb[0].mxu0
      %892 = vmatprep.mubr.bf16.mxu0 0
      %893 = vmatmul.mubr.bf16.gmra.mrb[0].mxu0 %v777
      %v894 = vpop.f32.mrb[0].mxu0
      %v895 = vadd.f32 0.0, %v894
      %v896 = vpop.f32.mrb[0].mxu0
      %v897 = vpop.f32.mrb[0].mxu0
      %v898 = vadd.f32 0.0, %v897
      %v899 = vpop.f32.mrb[0].mxu0
      %900 = vmatprep.mubr.bf16.mxu0 0
      %901 = vmatmul.mubr.bf16.gmra.mrb[0].mxu0 %v778
      %v902 = vpop.f32.mrb[0].mxu0
      %v903 = vadd.f32 0.0, %v902
      %v904 = vpop.f32.mrb[0].mxu0
      %v905 = vpop.f32.mrb[0].mxu0
      %v906 = vadd.f32 0.0, %v905
      %v907 = vpop.f32.mrb[0].mxu0
      %908 = vdwg.mxu0
      %v909 = vadd.f32 %v759, %v879
      %v910 = vadd.f32 %v760, %v882
      %v911 = vadd.f32 %v761, %v887
      %v912 = vadd.f32 %v762, %v890
      %v913 = vadd.f32 %v763, %v895
      %v914 = vadd.f32 %v764, %v898
      %v915 = vadd.f32 %v765, %v903
      %v916 = vadd.f32 %v766, %v906
      %v917 = vld [vmem:[%s325 + $0x1] sm:$0xff]
      %v918 = vld [vmem:[%s325 + $0x11] sm:$0xff]
      %v919 = vld [vmem:[%s325 + $0x21] sm:$0xff]
      %v920 = vld [vmem:[%s325 + $0x31] sm:$0xff]
      %v921 = vld [vmem:[%s325 + $0x41] sm:$0xff]
      %v922 = vld [vmem:[%s325 + $0x51] sm:$0xff]
      %v923 = vld [vmem:[%s325 + $0x61] sm:$0xff]
      %v924 = vld [vmem:[%s325 + $0x71] sm:$0xff]
      %v925 = vpack.c.bf16 %v918, %v917
      %v926 = vpack.c.bf16 %v920, %v919
      %v927 = vpack.c.bf16 %v922, %v921
      %v928 = vpack.c.bf16 %v924, %v923
      %s929 = scalar_lea.vmem %s2, 256
      %v930 = vld [vmem:[%s929] sm:$0xf]
      %v931 = vld [vmem:[%s929 + $0x4] sm:$0xf]
      %v932 = vld [vmem:[%s929 + $0x8] sm:$0xf]
      %v933 = vld [vmem:[%s929 + $0xc] sm:$0xf]
      %v934 = vld [vmem:[%s929 + $0x10] sm:$0xf]
      %v935 = vld [vmem:[%s929 + $0x14] sm:$0xf]
      %v936 = vld [vmem:[%s929 + $0x18] sm:$0xf]
      %v937 = vld [vmem:[%s929 + $0x1c] sm:$0xf]
      %v938 = vld [vmem:[%s929 + $0x20] sm:$0xf]
      %v939 = vld [vmem:[%s929 + $0x24] sm:$0xf]
      %v940 = vld [vmem:[%s929 + $0x28] sm:$0xf]
      %v941 = vld [vmem:[%s929 + $0x2c] sm:$0xf]
      %v942 = vld [vmem:[%s929 + $0x30] sm:$0xf]
      %v943 = vld [vmem:[%s929 + $0x34] sm:$0xf]
      %v944 = vld [vmem:[%s929 + $0x38] sm:$0xf]
      %v945 = vld [vmem:[%s929 + $0x3c] sm:$0xf]
      %v962 = vunpack.c.l.b16 %v930
      %v963 = vunpack.c.l.b16 %v931
      %v964 = vunpack.c.l.b16 %v932
      %v965 = vunpack.c.l.b16 %v933
      %v966 = vunpack.c.l.b16 %v934
      %v967 = vunpack.c.l.b16 %v935
      %v968 = vunpack.c.l.b16 %v936
      %v969 = vunpack.c.l.b16 %v937
      %v970 = vunpack.c.l.b16 %v938
      %v971 = vunpack.c.l.b16 %v939
      %v972 = vunpack.c.l.b16 %v940
      %v973 = vunpack.c.l.b16 %v941
      %v974 = vunpack.c.l.b16 %v942
      %v975 = vunpack.c.l.b16 %v943
      %v976 = vunpack.c.l.b16 %v944
      %v977 = vunpack.c.l.b16 %v945
      %v978 = vpack.c.b16 %v963, %v962
      %v979 = vpack.c.b16 %v965, %v964
      %v980 = vpack.c.b16 %v967, %v966
      %v981 = vpack.c.b16 %v969, %v968
      %v982 = vpack.c.b16 %v971, %v970
      %v983 = vpack.c.b16 %v973, %v972
      %v984 = vpack.c.b16 %v975, %v974
      %v985 = vpack.c.b16 %v977, %v976
      %994 = vmatprep.subr.bf16.mxu0 0
      %995 = vmatpush1.bf16.msra.mxu0 %v978
      %996 = vmatprep.subr.bf16.mxu0 0
      %997 = vmatpush1.bf16.msra.mxu0 %v979
      %998 = vmatprep.subr.bf16.mxu0 0
      %999 = vmatpush1.bf16.msra.mxu0 %v980
      %1000 = vmatprep.subr.bf16.mxu0 0
      %1001 = vmatpush1.bf16.msra.mxu0 %v981
      %1002 = vmatprep.subr.bf16.mxu0 0
      %1003 = vmatpush1.bf16.msra.mxu0 %v982
      %1004 = vmatprep.subr.bf16.mxu0 0
      %1005 = vmatpush1.bf16.msra.mxu0 %v983
      %1006 = vmatprep.subr.bf16.mxu0 0
      %1007 = vmatpush1.bf16.msra.mxu0 %v984
      %1008 = vmatprep.subr.bf16.mxu0 0
      %1009 = vmatpush1.bf16.msra.mxu0 %v985
      %1010 = vmatprep.subr.bf16.mxu0 0
      %1011 = vmatpush1.bf16.msra.mxu0 0
      %1012 = vmatprep.subr.bf16.mxu0 0
      %1013 = vmatpush1.bf16.msra.mxu0 0
      %1014 = vmatprep.subr.bf16.mxu0 0
      %1015 = vmatpush1.bf16.msra.mxu0 0
      %1016 = vmatprep.subr.bf16.mxu0 0
      %1017 = vmatpush1.bf16.msra.mxu0 0
      %1018 = vmatprep.subr.bf16.mxu0 0
      %1019 = vmatpush1.bf16.msra.mxu0 0
      %1020 = vmatprep.subr.bf16.mxu0 0
      %1021 = vmatpush1.bf16.msra.mxu0 0
      %1022 = vmatprep.subr.bf16.mxu0 0
      %1023 = vmatpush1.bf16.msra.mxu0 0
      %1024 = vmatprep.subr.bf16.mxu0 0
      %1025 = vmatpush1.bf16.msra.mxu0 0
      %1026 = vmatprep.mubr.bf16.mxu0 0
      %1027 = vmatmul.mubr.bf16.gmra.mrb[0].mxu0 %v925
      %v1028 = vpop.f32.mrb[0].mxu0
      %v1029 = vadd.f32 0.0, %v1028
      %v1030 = vpop.f32.mrb[0].mxu0
      %v1031 = vpop.f32.mrb[0].mxu0
      %v1032 = vadd.f32 0.0, %v1031
      %v1033 = vpop.f32.mrb[0].mxu0
      %1034 = vmatprep.mubr.bf16.mxu0 0
      %1035 = vmatmul.mubr.bf16.gmra.mrb[0].mxu0 %v926
      %v1036 = vpop.f32.mrb[0].mxu0
      %v1037 = vadd.f32 0.0, %v1036
      %v1038 = vpop.f32.mrb[0].mxu0
      %v1039 = vpop.f32.mrb[0].mxu0
      %v1040 = vadd.f32 0.0, %v1039
      %v1041 = vpop.f32.mrb[0].mxu0
      %1042 = vmatprep.mubr.bf16.mxu0 0
      %1043 = vmatmul.mubr.bf16.gmra.mrb[0].mxu0 %v927
      %v1044 = vpop.f32.mrb[0].mxu0
      %v1045 = vadd.f32 0.0, %v1044
      %v1046 = vpop.f32.mrb[0].mxu0
      %v1047 = vpop.f32.mrb[0].mxu0
      %v1048 = vadd.f32 0.0, %v1047
      %v1049 = vpop.f32.mrb[0].mxu0
      %1050 = vmatprep.mubr.bf16.mxu0 0
      %1051 = vmatmul.mubr.bf16.gmra.mrb[0].mxu0 %v928
      %v1052 = vpop.f32.mrb[0].mxu0
      %v1053 = vadd.f32 0.0, %v1052
      %v1054 = vpop.f32.mrb[0].mxu0
      %v1055 = vpop.f32.mrb[0].mxu0
      %v1056 = vadd.f32 0.0, %v1055
      %v1057 = vpop.f32.mrb[0].mxu0
      %1058 = vdwg.mxu0
      %v1059 = vadd.f32 %v909, %v1029
      %v1060 = vadd.f32 %v910, %v1032
      %v1061 = vadd.f32 %v911, %v1037
      %v1062 = vadd.f32 %v912, %v1040
      %v1063 = vadd.f32 %v913, %v1045
      %v1064 = vadd.f32 %v914, %v1048
      %v1065 = vadd.f32 %v915, %v1053
      %v1066 = vadd.f32 %v916, %v1056
      %v1067 = vld [vmem:[%s325 + $0x2] sm:$0xff]
      %v1068 = vld [vmem:[%s325 + $0x12] sm:$0xff]
      %v1069 = vld [vmem:[%s325 + $0x22] sm:$0xff]
      %v1070 = vld [vmem:[%s325 + $0x32] sm:$0xff]
      %v1071 = vld [vmem:[%s325 + $0x42] sm:$0xff]
      %v1072 = vld [vmem:[%s325 + $0x52] sm:$0xff]
      %v1073 = vld [vmem:[%s325 + $0x62] sm:$0xff]
      %v1074 = vld [vmem:[%s325 + $0x72] sm:$0xff]
      %v1075 = vpack.c.bf16 %v1068, %v1067
      %v1076 = vpack.c.bf16 %v1070, %v1069
      %v1077 = vpack.c.bf16 %v1072, %v1071
      %v1078 = vpack.c.bf16 %v1074, %v1073
      %s1079 = scalar_lea.vmem %s2, 320
      %v1080 = vld [vmem:[%s1079] sm:$0xf]
      %v1081 = vld [vmem:[%s1079 + $0x4] sm:$0xf]
      %v1082 = vld [vmem:[%s1079 + $0x8] sm:$0xf]
      %v1083 = vld [vmem:[%s1079 + $0xc] sm:$0xf]
      %v1084 = vld [vmem:[%s1079 + $0x10] sm:$0xf]
      %v1085 = vld [vmem:[%s1079 + $0x14] sm:$0xf]
      %v1086 = vld [vmem:[%s1079 + $0x18] sm:$0xf]
      %v1087 = vld [vmem:[%s1079 + $0x1c] sm:$0xf]
      %v1088 = vld [vmem:[%s1079 + $0x20] sm:$0xf]
      %v1089 = vld [vmem:[%s1079 + $0x24] sm:$0xf]
      %v1090 = vld [vmem:[%s1079 + $0x28] sm:$0xf]
      %v1091 = vld [vmem:[%s1079 + $0x2c] sm:$0xf]
      %v1092 = vld [vmem:[%s1079 + $0x30] sm:$0xf]
      %v1093 = vld [vmem:[%s1079 + $0x34] sm:$0xf]
      %v1094 = vld [vmem:[%s1079 + $0x38] sm:$0xf]
      %v1095 = vld [vmem:[%s1079 + $0x3c] sm:$0xf]
      %v1112 = vunpack.c.l.b16 %v1080
      %v1113 = vunpack.c.l.b16 %v1081
      %v1114 = vunpack.c.l.b16 %v1082
      %v1115 = vunpack.c.l.b16 %v1083
      %v1116 = vunpack.c.l.b16 %v1084
      %v1117 = vunpack.c.l.b16 %v1085
      %v1118 = vunpack.c.l.b16 %v1086
      %v1119 = vunpack.c.l.b16 %v1087
      %v1120 = vunpack.c.l.b16 %v1088
      %v1121 = vunpack.c.l.b16 %v1089
      %v1122 = vunpack.c.l.b16 %v1090
      %v1123 = vunpack.c.l.b16 %v1091
      %v1124 = vunpack.c.l.b16 %v1092
      %v1125 = vunpack.c.l.b16 %v1093
      %v1126 = vunpack.c.l.b16 %v1094
      %v1127 = vunpack.c.l.b16 %v1095
      %v1128 = vpack.c.b16 %v1113, %v1112
      %v1129 = vpack.c.b16 %v1115, %v1114
      %v1130 = vpack.c.b16 %v1117, %v1116
      %v1131 = vpack.c.b16 %v1119, %v1118
      %v1132 = vpack.c.b16 %v1121, %v1120
      %v1133 = vpack.c.b16 %v1123, %v1122
      %v1134 = vpack.c.b16 %v1125, %v1124
      %v1135 = vpack.c.b16 %v1127, %v1126
      %1144 = vmatprep.subr.bf16.mxu0 0
      %1145 = vmatpush1.bf16.msra.mxu0 %v1128
      %1146 = vmatprep.subr.bf16.mxu0 0
      %1147 = vmatpush1.bf16.msra.mxu0 %v1129
      %1148 = vmatprep.subr.bf16.mxu0 0
      %1149 = vmatpush1.bf16.msra.mxu0 %v1130
      %1150 = vmatprep.subr.bf16.mxu0 0
      %1151 = vmatpush1.bf16.msra.mxu0 %v1131
      %1152 = vmatprep.subr.bf16.mxu0 0
      %1153 = vmatpush1.bf16.msra.mxu0 %v1132
      %1154 = vmatprep.subr.bf16.mxu0 0
      %1155 = vmatpush1.bf16.msra.mxu0 %v1133
      %1156 = vmatprep.subr.bf16.mxu0 0
      %1157 = vmatpush1.bf16.msra.mxu0 %v1134
      %1158 = vmatprep.subr.bf16.mxu0 0
      %1159 = vmatpush1.bf16.msra.mxu0 %v1135
      %1160 = vmatprep.subr.bf16.mxu0 0
      %1161 = vmatpush1.bf16.msra.mxu0 0
      %1162 = vmatprep.subr.bf16.mxu0 0
      %1163 = vmatpush1.bf16.msra.mxu0 0
      %1164 = vmatprep.subr.bf16.mxu0 0
      %1165 = vmatpush1.bf16.msra.mxu0 0
      %1166 = vmatprep.subr.bf16.mxu0 0
      %1167 = vmatpush1.bf16.msra.mxu0 0
      %1168 = vmatprep.subr.bf16.mxu0 0
      %1169 = vmatpush1.bf16.msra.mxu0 0
      %1170 = vmatprep.subr.bf16.mxu0 0
      %1171 = vmatpush1.bf16.msra.mxu0 0
      %1172 = vmatprep.subr.bf16.mxu0 0
      %1173 = vmatpush1.bf16.msra.mxu0 0
      %1174 = vmatprep.subr.bf16.mxu0 0
      %1175 = vmatpush1.bf16.msra.mxu0 0
      %1176 = vmatprep.mubr.bf16.mxu0 0
      %1177 = vmatmul.mubr.bf16.gmra.mrb[0].mxu0 %v1075
      %v1178 = vpop.f32.mrb[0].mxu0
      %v1179 = vadd.f32 0.0, %v1178
      %v1180 = vpop.f32.mrb[0].mxu0
      %v1181 = vpop.f32.mrb[0].mxu0
      %v1182 = vadd.f32 0.0, %v1181
      %v1183 = vpop.f32.mrb[0].mxu0
      %1184 = vmatprep.mubr.bf16.mxu0 0
      %1185 = vmatmul.mubr.bf16.gmra.mrb[0].mxu0 %v1076
      %v1186 = vpop.f32.mrb[0].mxu0
      %v1187 = vadd.f32 0.0, %v1186
      %v1188 = vpop.f32.mrb[0].mxu0
      %v1189 = vpop.f32.mrb[0].mxu0
      %v1190 = vadd.f32 0.0, %v1189
      %v1191 = vpop.f32.mrb[0].mxu0
      %1192 = vmatprep.mubr.bf16.mxu0 0
      %1193 = vmatmul.mubr.bf16.gmra.mrb[0].mxu0 %v1077
      %v1194 = vpop.f32.mrb[0].mxu0
      %v1195 = vadd.f32 0.0, %v1194
      %v1196 = vpop.f32.mrb[0].mxu0
      %v1197 = vpop.f32.mrb[0].mxu0
      %v1198 = vadd.f32 0.0, %v1197
      %v1199 = vpop.f32.mrb[0].mxu0
      %1200 = vmatprep.mubr.bf16.mxu0 0
      %1201 = vmatmul.mubr.bf16.gmra.mrb[0].mxu0 %v1078
      %v1202 = vpop.f32.mrb[0].mxu0
      %v1203 = vadd.f32 0.0, %v1202
      %v1204 = vpop.f32.mrb[0].mxu0
      %v1205 = vpop.f32.mrb[0].mxu0
      %v1206 = vadd.f32 0.0, %v1205
      %v1207 = vpop.f32.mrb[0].mxu0
      %1208 = vdwg.mxu0
      %v1209 = vadd.f32 %v1059, %v1179
      %v1210 = vadd.f32 %v1060, %v1182
      %v1211 = vadd.f32 %v1061, %v1187
      %v1212 = vadd.f32 %v1062, %v1190
      %v1213 = vadd.f32 %v1063, %v1195
      %v1214 = vadd.f32 %v1064, %v1198
      %v1215 = vadd.f32 %v1065, %v1203
      %v1216 = vadd.f32 %v1066, %v1206
      %s1217 = scalar_lea.vmem [#allocation2], 32
      %v1218 = vld [vmem:[%s1217] sm:$0xff]
      %v1219 = vld [vmem:[%s1217 + $0x10] sm:$0xff]
      %v1220 = vld [vmem:[%s1217 + $0x20] sm:$0xff]
      %v1221 = vld [vmem:[%s1217 + $0x30] sm:$0xff]
      %v1222 = vld [vmem:[%s1217 + $0x40] sm:$0xff]
      %v1223 = vld [vmem:[%s1217 + $0x50] sm:$0xff]
      %v1224 = vld [vmem:[%s1217 + $0x60] sm:$0xff]
      %v1225 = vld [vmem:[%s1217 + $0x70] sm:$0xff]
      %v1226 = vpack.c.bf16 %v1219, %v1218
      %v1227 = vpack.c.bf16 %v1221, %v1220
      %v1228 = vpack.c.bf16 %v1223, %v1222
      %v1229 = vpack.c.bf16 %v1225, %v1224
      %s1230 = scalar_lea.vmem %s2, 384
      %v1231 = vld [vmem:[%s1230] sm:$0xf]
      %v1232 = vld [vmem:[%s1230 + $0x4] sm:$0xf]
      %v1233 = vld [vmem:[%s1230 + $0x8] sm:$0xf]
      %v1234 = vld [vmem:[%s1230 + $0xc] sm:$0xf]
      %v1235 = vld [vmem:[%s1230 + $0x10] sm:$0xf]
      %v1236 = vld [vmem:[%s1230 + $0x14] sm:$0xf]
      %v1237 = vld [vmem:[%s1230 + $0x18] sm:$0xf]
      %v1238 = vld [vmem:[%s1230 + $0x1c] sm:$0xf]
      %v1239 = vld [vmem:[%s1230 + $0x20] sm:$0xf]
      %v1240 = vld [vmem:[%s1230 + $0x24] sm:$0xf]
      %v1241 = vld [vmem:[%s1230 + $0x28] sm:$0xf]
      %v1242 = vld [vmem:[%s1230 + $0x2c] sm:$0xf]
      %v1243 = vld [vmem:[%s1230 + $0x30] sm:$0xf]
      %v1244 = vld [vmem:[%s1230 + $0x34] sm:$0xf]
      %v1245 = vld [vmem:[%s1230 + $0x38] sm:$0xf]
      %v1246 = vld [vmem:[%s1230 + $0x3c] sm:$0xf]
      %v1263 = vunpack.c.l.b16 %v1231
      %v1264 = vunpack.c.l.b16 %v1232
      %v1265 = vunpack.c.l.b16 %v1233
      %v1266 = vunpack.c.l.b16 %v1234
      %v1267 = vunpack.c.l.b16 %v1235
      %v1268 = vunpack.c.l.b16 %v1236
      %v1269 = vunpack.c.l.b16 %v1237
      %v1270 = vunpack.c.l.b16 %v1238
      %v1271 = vunpack.c.l.b16 %v1239
      %v1272 = vunpack.c.l.b16 %v1240
      %v1273 = vunpack.c.l.b16 %v1241
      %v1274 = vunpack.c.l.b16 %v1242
      %v1275 = vunpack.c.l.b16 %v1243
      %v1276 = vunpack.c.l.b16 %v1244
      %v1277 = vunpack.c.l.b16 %v1245
      %v1278 = vunpack.c.l.b16 %v1246
      %v1279 = vpack.c.b16 %v1264, %v1263
      %v1280 = vpack.c.b16 %v1266, %v1265
      %v1281 = vpack.c.b16 %v1268, %v1267
      %v1282 = vpack.c.b16 %v1270, %v1269
      %v1283 = vpack.c.b16 %v1272, %v1271
      %v1284 = vpack.c.b16 %v1274, %v1273
      %v1285 = vpack.c.b16 %v1276, %v1275
      %v1286 = vpack.c.b16 %v1278, %v1277
      %1295 = vmatprep.subr.bf16.mxu0 0
      %1296 = vmatpush1.bf16.msra.mxu0 %v1279
      %1297 = vmatprep.subr.bf16.mxu0 0
      %1298 = vmatpush1.bf16.msra.mxu0 %v1280
      %1299 = vmatprep.subr.bf16.mxu0 0
      %1300 = vmatpush1.bf16.msra.mxu0 %v1281
      %1301 = vmatprep.subr.bf16.mxu0 0
      %1302 = vmatpush1.bf16.msra.mxu0 %v1282
      %1303 = vmatprep.subr.bf16.mxu0 0
      %1304 = vmatpush1.bf16.msra.mxu0 %v1283
      %1305 = vmatprep.subr.bf16.mxu0 0
      %1306 = vmatpush1.bf16.msra.mxu0 %v1284
      %1307 = vmatprep.subr.bf16.mxu0 0
      %1308 = vmatpush1.bf16.msra.mxu0 %v1285
      %1309 = vmatprep.subr.bf16.mxu0 0
      %1310 = vmatpush1.bf16.msra.mxu0 %v1286
      %1311 = vmatprep.subr.bf16.mxu0 0
      %1312 = vmatpush1.bf16.msra.mxu0 0
      %1313 = vmatprep.subr.bf16.mxu0 0
      %1314 = vmatpush1.bf16.msra.mxu0 0
      %1315 = vmatprep.subr.bf16.mxu0 0
      %1316 = vmatpush1.bf16.msra.mxu0 0
      %1317 = vmatprep.subr.bf16.mxu0 0
      %1318 = vmatpush1.bf16.msra.mxu0 0
      %1319 = vmatprep.subr.bf16.mxu0 0
      %1320 = vmatpush1.bf16.msra.mxu0 0
      %1321 = vmatprep.subr.bf16.mxu0 0
      %1322 = vmatpush1.bf16.msra.mxu0 0
      %1323 = vmatprep.subr.bf16.mxu0 0
      %1324 = vmatpush1.bf16.msra.mxu0 0
      %1325 = vmatprep.subr.bf16.mxu0 0
      %1326 = vmatpush1.bf16.msra.mxu0 0
      %1327 = vmatprep.mubr.bf16.mxu0 0
      %1328 = vmatmul.mubr.bf16.gmra.mrb[0].mxu0 %v1226
      %v1329 = vpop.f32.mrb[0].mxu0
      %v1330 = vadd.f32 0.0, %v1329
      %v1331 = vpop.f32.mrb[0].mxu0
      %v1332 = vpop.f32.mrb[0].mxu0
      %v1333 = vadd.f32 0.0, %v1332
      %v1334 = vpop.f32.mrb[0].mxu0
      %1335 = vmatprep.mubr.bf16.mxu0 0
      %1336 = vmatmul.mubr.bf16.gmra.mrb[0].mxu0 %v1227
      %v1337 = vpop.f32.mrb[0].mxu0
      %v1338 = vadd.f32 0.0, %v1337
      %v1339 = vpop.f32.mrb[0].mxu0
      %v1340 = vpop.f32.mrb[0].mxu0
      %v1341 = vadd.f32 0.0, %v1340
      %v1342 = vpop.f32.mrb[0].mxu0
      %1343 = vmatprep.mubr.bf16.mxu0 0
      %1344 = vmatmul.mubr.bf16.gmra.mrb[0].mxu0 %v1228
      %v1345 = vpop.f32.mrb[0].mxu0
      %v1346 = vadd.f32 0.0, %v1345
      %v1347 = vpop.f32.mrb[0].mxu0
      %v1348 = vpop.f32.mrb[0].mxu0
      %v1349 = vadd.f32 0.0, %v1348
      %v1350 = vpop.f32.mrb[0].mxu0
      %1351 = vmatprep.mubr.bf16.mxu0 0
      %1352 = vmatmul.mubr.bf16.gmra.mrb[0].mxu0 %v1229
      %v1353 = vpop.f32.mrb[0].mxu0
      %v1354 = vadd.f32 0.0, %v1353
      %v1355 = vpop.f32.mrb[0].mxu0
      %v1356 = vpop.f32.mrb[0].mxu0
      %v1357 = vadd.f32 0.0, %v1356
      %v1358 = vpop.f32.mrb[0].mxu0
      %1359 = vdwg.mxu0
      %v1360 = vadd.f32 %v1209, %v1330
      %v1361 = vadd.f32 %v1210, %v1333
      %v1362 = vadd.f32 %v1211, %v1338
      %v1363 = vadd.f32 %v1212, %v1341
      %v1364 = vadd.f32 %v1213, %v1346
      %v1365 = vadd.f32 %v1214, %v1349
      %v1366 = vadd.f32 %v1215, %v1354
      %v1367 = vadd.f32 %v1216, %v1357
      %v1368 = vld [vmem:[%s1217 + $0x1] sm:$0xff]
      %v1369 = vld [vmem:[%s1217 + $0x11] sm:$0xff]
      %v1370 = vld [vmem:[%s1217 + $0x21] sm:$0xff]
      %v1371 = vld [vmem:[%s1217 + $0x31] sm:$0xff]
      %v1372 = vld [vmem:[%s1217 + $0x41] sm:$0xff]
      %v1373 = vld [vmem:[%s1217 + $0x51] sm:$0xff]
      %v1374 = vld [vmem:[%s1217 + $0x61] sm:$0xff]
      %v1375 = vld [vmem:[%s1217 + $0x71] sm:$0xff]
      %v1376 = vpack.c.bf16 %v1369, %v1368
      %v1377 = vpack.c.bf16 %v1371, %v1370
      %v1378 = vpack.c.bf16 %v1373, %v1372
      %v1379 = vpack.c.bf16 %v1375, %v1374
      %s1380 = scalar_lea.vmem %s2, 448
      %v1381 = vld [vmem:[%s1380] sm:$0xf]
      %v1382 = vld [vmem:[%s1380 + $0x4] sm:$0xf]
      %v1383 = vld [vmem:[%s1380 + $0x8] sm:$0xf]
      %v1384 = vld [vmem:[%s1380 + $0xc] sm:$0xf]
      %v1385 = vld [vmem:[%s1380 + $0x10] sm:$0xf]
      %v1386 = vld [vmem:[%s1380 + $0x14] sm:$0xf]
      %v1387 = vld [vmem:[%s1380 + $0x18] sm:$0xf]
      %v1388 = vld [vmem:[%s1380 + $0x1c] sm:$0xf]
      %v1389 = vld [vmem:[%s1380 + $0x20] sm:$0xf]
      %v1390 = vld [vmem:[%s1380 + $0x24] sm:$0xf]
      %v1391 = vld [vmem:[%s1380 + $0x28] sm:$0xf]
      %v1392 = vld [vmem:[%s1380 + $0x2c] sm:$0xf]
      %v1393 = vld [vmem:[%s1380 + $0x30] sm:$0xf]
      %v1394 = vld [vmem:[%s1380 + $0x34] sm:$0xf]
      %v1395 = vld [vmem:[%s1380 + $0x38] sm:$0xf]
      %v1396 = vld [vmem:[%s1380 + $0x3c] sm:$0xf]
      %v1413 = vunpack.c.l.b16 %v1381
      %v1414 = vunpack.c.l.b16 %v1382
      %v1415 = vunpack.c.l.b16 %v1383
      %v1416 = vunpack.c.l.b16 %v1384
      %v1417 = vunpack.c.l.b16 %v1385
      %v1418 = vunpack.c.l.b16 %v1386
      %v1419 = vunpack.c.l.b16 %v1387
      %v1420 = vunpack.c.l.b16 %v1388
      %v1421 = vunpack.c.l.b16 %v1389
      %v1422 = vunpack.c.l.b16 %v1390
      %v1423 = vunpack.c.l.b16 %v1391
      %v1424 = vunpack.c.l.b16 %v1392
      %v1425 = vunpack.c.l.b16 %v1393
      %v1426 = vunpack.c.l.b16 %v1394
      %v1427 = vunpack.c.l.b16 %v1395
      %v1428 = vunpack.c.l.b16 %v1396
      %v1429 = vpack.c.b16 %v1414, %v1413
      %v1430 = vpack.c.b16 %v1416, %v1415
      %v1431 = vpack.c.b16 %v1418, %v1417
      %v1432 = vpack.c.b16 %v1420, %v1419
      %v1433 = vpack.c.b16 %v1422, %v1421
      %v1434 = vpack.c.b16 %v1424, %v1423
      %v1435 = vpack.c.b16 %v1426, %v1425
      %v1436 = vpack.c.b16 %v1428, %v1427
      %1445 = vmatprep.subr.bf16.mxu0 0
      %1446 = vmatpush1.bf16.msra.mxu0 %v1429
      %1447 = vmatprep.subr.bf16.mxu0 0
      %1448 = vmatpush1.bf16.msra.mxu0 %v1430
      %1449 = vmatprep.subr.bf16.mxu0 0
      %1450 = vmatpush1.bf16.msra.mxu0 %v1431
      %1451 = vmatprep.subr.bf16.mxu0 0
      %1452 = vmatpush1.bf16.msra.mxu0 %v1432
      %1453 = vmatprep.subr.bf16.mxu0 0
      %1454 = vmatpush1.bf16.msra.mxu0 %v1433
      %1455 = vmatprep.subr.bf16.mxu0 0
      %1456 = vmatpush1.bf16.msra.mxu0 %v1434
      %1457 = vmatprep.subr.bf16.mxu0 0
      %1458 = vmatpush1.bf16.msra.mxu0 %v1435
      %1459 = vmatprep.subr.bf16.mxu0 0
      %1460 = vmatpush1.bf16.msra.mxu0 %v1436
      %1461 = vmatprep.subr.bf16.mxu0 0
      %1462 = vmatpush1.bf16.msra.mxu0 0
      %1463 = vmatprep.subr.bf16.mxu0 0
      %1464 = vmatpush1.bf16.msra.mxu0 0
      %1465 = vmatprep.subr.bf16.mxu0 0
      %1466 = vmatpush1.bf16.msra.mxu0 0
      %1467 = vmatprep.subr.bf16.mxu0 0
      %1468 = vmatpush1.bf16.msra.mxu0 0
      %1469 = vmatprep.subr.bf16.mxu0 0
      %1470 = vmatpush1.bf16.msra.mxu0 0
      %1471 = vmatprep.subr.bf16.mxu0 0
      %1472 = vmatpush1.bf16.msra.mxu0 0
      %1473 = vmatprep.subr.bf16.mxu0 0
      %1474 = vmatpush1.bf16.msra.mxu0 0
      %1475 = vmatprep.subr.bf16.mxu0 0
      %1476 = vmatpush1.bf16.msra.mxu0 0
      %1477 = vmatprep.mubr.bf16.mxu0 0
      %1478 = vmatmul.mubr.bf16.gmra.mrb[0].mxu0 %v1376
      %v1479 = vpop.f32.mrb[0].mxu0
      %v1480 = vadd.f32 0.0, %v1479
      %v1481 = vpop.f32.mrb[0].mxu0
      %v1482 = vpop.f32.mrb[0].mxu0
      %v1483 = vadd.f32 0.0, %v1482
      %v1484 = vpop.f32.mrb[0].mxu0
      %1485 = vmatprep.mubr.bf16.mxu0 0
      %1486 = vmatmul.mubr.bf16.gmra.mrb[0].mxu0 %v1377
      %v1487 = vpop.f32.mrb[0].mxu0
      %v1488 = vadd.f32 0.0, %v1487
      %v1489 = vpop.f32.mrb[0].mxu0
      %v1490 = vpop.f32.mrb[0].mxu0
      %v1491 = vadd.f32 0.0, %v1490
      %v1492 = vpop.f32.mrb[0].mxu0
      %1493 = vmatprep.mubr.bf16.mxu0 0
      %1494 = vmatmul.mubr.bf16.gmra.mrb[0].mxu0 %v1378
      %v1495 = vpop.f32.mrb[0].mxu0
      %v1496 = vadd.f32 0.0, %v1495
      %v1497 = vpop.f32.mrb[0].mxu0
      %v1498 = vpop.f32.mrb[0].mxu0
      %v1499 = vadd.f32 0.0, %v1498
      %v1500 = vpop.f32.mrb[0].mxu0
      %1501 = vmatprep.mubr.bf16.mxu0 0
      %1502 = vmatmul.mubr.bf16.gmra.mrb[0].mxu0 %v1379
      %v1503 = vpop.f32.mrb[0].mxu0
      %v1504 = vadd.f32 0.0, %v1503
      %v1505 = vpop.f32.mrb[0].mxu0
      %v1506 = vpop.f32.mrb[0].mxu0
      %v1507 = vadd.f32 0.0, %v1506
      %v1508 = vpop.f32.mrb[0].mxu0
      %1509 = vdwg.mxu0
      %v1510 = vadd.f32 %v1360, %v1480
      %v1511 = vadd.f32 %v1361, %v1483
      %v1512 = vadd.f32 %v1362, %v1488
      %v1513 = vadd.f32 %v1363, %v1491
      %v1514 = vadd.f32 %v1364, %v1496
      %v1515 = vadd.f32 %v1365, %v1499
      %v1516 = vadd.f32 %v1366, %v1504
      %v1517 = vadd.f32 %v1367, %v1507
      %v1518 = vld [vmem:[%s1217 + $0x2] sm:$0xff]
      %v1519 = vld [vmem:[%s1217 + $0x12] sm:$0xff]
      %v1520 = vld [vmem:[%s1217 + $0x22] sm:$0xff]
      %v1521 = vld [vmem:[%s1217 + $0x32] sm:$0xff]
      %v1522 = vld [vmem:[%s1217 + $0x42] sm:$0xff]
      %v1523 = vld [vmem:[%s1217 + $0x52] sm:$0xff]
      %v1524 = vld [vmem:[%s1217 + $0x62] sm:$0xff]
      %v1525 = vld [vmem:[%s1217 + $0x72] sm:$0xff]
      %v1526 = vpack.c.bf16 %v1519, %v1518
      %v1527 = vpack.c.bf16 %v1521, %v1520
      %v1528 = vpack.c.bf16 %v1523, %v1522
      %v1529 = vpack.c.bf16 %v1525, %v1524
      %s1530 = scalar_lea.vmem %s2, 512
      %v1531 = vld [vmem:[%s1530] sm:$0xf]
      %v1532 = vld [vmem:[%s1530 + $0x4] sm:$0xf]
      %v1533 = vld [vmem:[%s1530 + $0x8] sm:$0xf]
      %v1534 = vld [vmem:[%s1530 + $0xc] sm:$0xf]
      %v1535 = vld [vmem:[%s1530 + $0x10] sm:$0xf]
      %v1536 = vld [vmem:[%s1530 + $0x14] sm:$0xf]
      %v1537 = vld [vmem:[%s1530 + $0x18] sm:$0xf]
      %v1538 = vld [vmem:[%s1530 + $0x1c] sm:$0xf]
      %v1539 = vld [vmem:[%s1530 + $0x20] sm:$0xf]
      %v1540 = vld [vmem:[%s1530 + $0x24] sm:$0xf]
      %v1541 = vld [vmem:[%s1530 + $0x28] sm:$0xf]
      %v1542 = vld [vmem:[%s1530 + $0x2c] sm:$0xf]
      %v1543 = vld [vmem:[%s1530 + $0x30] sm:$0xf]
      %v1544 = vld [vmem:[%s1530 + $0x34] sm:$0xf]
      %v1545 = vld [vmem:[%s1530 + $0x38] sm:$0xf]
      %v1546 = vld [vmem:[%s1530 + $0x3c] sm:$0xf]
      %v1563 = vunpack.c.l.b16 %v1531
      %v1564 = vunpack.c.l.b16 %v1532
      %v1565 = vunpack.c.l.b16 %v1533
      %v1566 = vunpack.c.l.b16 %v1534
      %v1567 = vunpack.c.l.b16 %v1535
      %v1568 = vunpack.c.l.b16 %v1536
      %v1569 = vunpack.c.l.b16 %v1537
      %v1570 = vunpack.c.l.b16 %v1538
      %v1571 = vunpack.c.l.b16 %v1539
      %v1572 = vunpack.c.l.b16 %v1540
      %v1573 = vunpack.c.l.b16 %v1541
      %v1574 = vunpack.c.l.b16 %v1542
      %v1575 = vunpack.c.l.b16 %v1543
      %v1576 = vunpack.c.l.b16 %v1544
      %v1577 = vunpack.c.l.b16 %v1545
      %v1578 = vunpack.c.l.b16 %v1546
      %v1579 = vpack.c.b16 %v1564, %v1563
      %v1580 = vpack.c.b16 %v1566, %v1565
      %v1581 = vpack.c.b16 %v1568, %v1567
      %v1582 = vpack.c.b16 %v1570, %v1569
      %v1583 = vpack.c.b16 %v1572, %v1571
      %v1584 = vpack.c.b16 %v1574, %v1573
      %v1585 = vpack.c.b16 %v1576, %v1575
      %v1586 = vpack.c.b16 %v1578, %v1577
      %1595 = vmatprep.subr.bf16.mxu0 0
      %1596 = vmatpush1.bf16.msra.mxu0 %v1579
      %1597 = vmatprep.subr.bf16.mxu0 0
      %1598 = vmatpush1.bf16.msra.mxu0 %v1580
      %1599 = vmatprep.subr.bf16.mxu0 0
      %1600 = vmatpush1.bf16.msra.mxu0 %v1581
      %1601 = vmatprep.subr.bf16.mxu0 0
      %1602 = vmatpush1.bf16.msra.mxu0 %v1582
      %1603 = vmatprep.subr.bf16.mxu0 0
      %1604 = vmatpush1.bf16.msra.mxu0 %v1583
      %1605 = vmatprep.subr.bf16.mxu0 0
      %1606 = vmatpush1.bf16.msra.mxu0 %v1584
      %1607 = vmatprep.subr.bf16.mxu0 0
      %1608 = vmatpush1.bf16.msra.mxu0 %v1585
      %1609 = vmatprep.subr.bf16.mxu0 0
      %1610 = vmatpush1.bf16.msra.mxu0 %v1586
      %1611 = vmatprep.subr.bf16.mxu0 0
      %1612 = vmatpush1.bf16.msra.mxu0 0
      %1613 = vmatprep.subr.bf16.mxu0 0
      %1614 = vmatpush1.bf16.msra.mxu0 0
      %1615 = vmatprep.subr.bf16.mxu0 0
      %1616 = vmatpush1.bf16.msra.mxu0 0
      %1617 = vmatprep.subr.bf16.mxu0 0
      %1618 = vmatpush1.bf16.msra.mxu0 0
      %1619 = vmatprep.subr.bf16.mxu0 0
      %1620 = vmatpush1.bf16.msra.mxu0 0
      %1621 = vmatprep.subr.bf16.mxu0 0
      %1622 = vmatpush1.bf16.msra.mxu0 0
      %1623 = vmatprep.subr.bf16.mxu0 0
      %1624 = vmatpush1.bf16.msra.mxu0 0
      %1625 = vmatprep.subr.bf16.mxu0 0
      %1626 = vmatpush1.bf16.msra.mxu0 0
      %1627 = vmatprep.mubr.bf16.mxu0 0
      %1628 = vmatmul.mubr.bf16.gmra.mrb[0].mxu0 %v1526
      %v1629 = vpop.f32.mrb[0].mxu0
      %v1630 = vadd.f32 0.0, %v1629
      %v1631 = vpop.f32.mrb[0].mxu0
      %v1632 = vpop.f32.mrb[0].mxu0
      %v1633 = vadd.f32 0.0, %v1632
      %v1634 = vpop.f32.mrb[0].mxu0
      %1635 = vmatprep.mubr.bf16.mxu0 0
      %1636 = vmatmul.mubr.bf16.gmra.mrb[0].mxu0 %v1527
      %v1637 = vpop.f32.mrb[0].mxu0
      %v1638 = vadd.f32 0.0, %v1637
      %v1639 = vpop.f32.mrb[0].mxu0
      %v1640 = vpop.f32.mrb[0].mxu0
      %v1641 = vadd.f32 0.0, %v1640
      %v1642 = vpop.f32.mrb[0].mxu0
      %1643 = vmatprep.mubr.bf16.mxu0 0
      %1644 = vmatmul.mubr.bf16.gmra.mrb[0].mxu0 %v1528
      %v1645 = vpop.f32.mrb[0].mxu0
      %v1646 = vadd.f32 0.0, %v1645
      %v1647 = vpop.f32.mrb[0].mxu0
      %v1648 = vpop.f32.mrb[0].mxu0
      %v1649 = vadd.f32 0.0, %v1648
      %v1650 = vpop.f32.mrb[0].mxu0
      %1651 = vmatprep.mubr.bf16.mxu0 0
      %1652 = vmatmul.mubr.bf16.gmra.mrb[0].mxu0 %v1529
      %v1653 = vpop.f32.mrb[0].mxu0
      %v1654 = vadd.f32 0.0, %v1653
      %v1655 = vpop.f32.mrb[0].mxu0
      %v1656 = vpop.f32.mrb[0].mxu0
      %v1657 = vadd.f32 0.0, %v1656
      %v1658 = vpop.f32.mrb[0].mxu0
      %1659 = vdwg.mxu0
      %v1660 = vadd.f32 %v1510, %v1630
      %v1661 = vadd.f32 %v1511, %v1633
      %v1662 = vadd.f32 %v1512, %v1638
      %v1663 = vadd.f32 %v1513, %v1641
      %v1664 = vadd.f32 %v1514, %v1646
      %v1665 = vadd.f32 %v1515, %v1649
      %v1666 = vadd.f32 %v1516, %v1654
      %v1667 = vadd.f32 %v1517, %v1657
      %v1668 = vpack.c.bf16 %v1660, %v1660
      %v1669 = vpack.c.bf16 %v1661, %v1661
      %v1670 = vpack.c.bf16 %v1662, %v1662
      %v1671 = vpack.c.bf16 %v1663, %v1663
      %v1672 = vpack.c.bf16 %v1664, %v1664
      %v1673 = vpack.c.bf16 %v1665, %v1665
      %v1674 = vpack.c.bf16 %v1666, %v1666
      %v1675 = vpack.c.bf16 %v1667, %v1667
      %1676 = vst [vmem:[%s249] sm:$0xf] %v1668
      %1677 = vst [vmem:[%s249 + $0x4] sm:$0xf] %v1669
      %1678 = vst [vmem:[%s249 + $0x8] sm:$0xf] %v1670
      %1679 = vst [vmem:[%s249 + $0xc] sm:$0xf] %v1671
      %1680 = vst [vmem:[%s249 + $0x10] sm:$0xf] %v1672
      %1681 = vst [vmem:[%s249 + $0x14] sm:$0xf] %v1673
      %1682 = vst [vmem:[%s249 + $0x18] sm:$0xf] %v1674
      %1683 = vst [vmem:[%s249 + $0x1c] sm:$0xf] %v1675
      // Predicated region
      $region45: #{resblock_forward.4} parent=39 // pred_check
        %p1684 = pneg %p251
      $region46: #{resblock_forward.4} parent=39 // pred_check_branch
        %1686 = sbr.rel (%p1684) target = $region48
      $region47: #{resblock_forward.4} parent=39 // pred_region
        %1687 = vst [vmem:[%s6] sm:$0x3] 0.0
      $region48: #{resblock_forward.4} parent=39 // pred_fallthru
        _
      %v1688 = vld [vmem:[%s6] sm:$0x1]
      %v1689 = vadd.f32 %v1660, %v1661
      %v1690 = vadd.f32 %v1689, %v1662
      %v1691 = vadd.f32 %v1690, %v1663
      %v1692 = vadd.f32 %v1691, %v1664
      %v1693 = vadd.f32 %v1692, %v1665
      %v1694 = vadd.f32 %v1693, %v1666
      %v1695 = vadd.f32 %v1694, %v1667
      %v1696 = vrot.slane %v1695, 4
      %v1697 = vadd.f32 %v1695, %v1696
      %v1698 = vrot.slane %v1697, 2
      %v1699 = vadd.f32 %v1697, %v1698
      %v1700 = vrot.slane %v1699, 1
      %v1701 = vadd.f32 %v1699, %v1700
      %v1702 = vadd.f32 %v1688, %v1701
      %1703 = vst [vmem:[%s6] sm:$0x1] %v1702
      %v1704 = vld [vmem:[%s6 + $0x1] sm:$0x1]
      %v1705 = vmul.f32 %v1660, %v1660
      %v1706 = vmul.f32 %v1661, %v1661
      %v1707 = vmul.f32 %v1662, %v1662
      %v1708 = vmul.f32 %v1663, %v1663
      %v1709 = vmul.f32 %v1664, %v1664
      %v1710 = vmul.f32 %v1665, %v1665
      %v1711 = vmul.f32 %v1666, %v1666
      %v1712 = vmul.f32 %v1667, %v1667
      %v1713 = vadd.f32 %v1705, %v1706
      %v1714 = vadd.f32 %v1713, %v1707
      %v1715 = vadd.f32 %v1714, %v1708
      %v1716 = vadd.f32 %v1715, %v1709
      %v1717 = vadd.f32 %v1716, %v1710
      %v1718 = vadd.f32 %v1717, %v1711
      %v1719 = vadd.f32 %v1718, %v1712
      %v1720 = vrot.slane %v1719, 4
      %v1721 = vadd.f32 %v1719, %v1720
      %v1722 = vrot.slane %v1721, 2
      %v1723 = vadd.f32 %v1721, %v1722
      %v1724 = vrot.slane %v1723, 1
      %v1725 = vadd.f32 %v1723, %v1724
      %v1726 = vadd.f32 %v1704, %v1725
      %1727 = vst [vmem:[%s6 + $0x1] sm:$0x1] %v1726
      %p1728 = scmp.eq.s32.totalorder %s18, 1
      // Predicated region
      $region49: #{resblock_forward.4} parent=39 // pred_check
        %p1729 = pneg %p1728
      $region50: #{resblock_forward.4} parent=39 // pred_check_branch
        %1731 = sbr.rel (%p1729) target = $region52
      $region51: #{resblock_forward.4} parent=39 // pred_region
        %v1732 = vld [vmem:[%s6] sm:$0x1]
        %v1733 = vmul.f32 %v1732, 0.0078125
        %v1734 = vld [vmem:[%s6 + $0x1] sm:$0x1]
        %v1735 = vmul.f32 %v1734, 0.0078125
        %v1736 = vmul.f32 %v1733, %v1733
        %v1737 = vsub.f32 %v1735, %v1736
        %v1738 = vld [vmem:[%s3] sm:$0x1]
        %v1739 = vadd.f32 %v1737, 1e-05
        %v1740 = vrsqrt.pop %v1739
        %v1741 = vmul.f32 %v1738, %v1740
        %1742 = vst [vmem:[%s6] sm:$0x1] %v1741
        %v1743 = vld [vmem:[%s4] sm:$0x1]
        %v1744 = vmul.f32 %v1733, %v1741
        %v1745 = vsub.f32 %v1743, %v1744
        %1746 = vst [vmem:[%s6 + $0x1] sm:$0x1] %v1745
      $region52: #{resblock_forward.4} parent=39 // pred_fallthru
        _
      %p1747 = scmp.lt.s32.totalorder %s18, 1
      %s1748 = scalar_select %p1747, %s18, 1
      %s1749 = smul.addr %s1748, 8
      %s1750 = smul.addr %s1749, 4
      %s1751 = scalar_lea.vmem %s5, %s1750
      // Predicated region
      $region53: #{resblock_forward.4} parent=39 // pred_check
        %p1752 = pneg %p146
      $region54: #{resblock_forward.4} parent=39 // pred_check_branch
        %1754 = sbr.rel (%p1752) target = $region56
      $region55: #{resblock_forward.4} parent=39 // pred_region
        _
      $region56: #{resblock_forward.4} parent=39 // pred_fallthru
        _
      // Predicated region
      $region57: #{resblock_forward.4} parent=39 // pred_check
        %p1755 = pneg %p167
      $region58: #{resblock_forward.4} parent=39 // pred_check_branch
        %1757 = sbr.rel (%p1755) target = $region60
      $region59: #{resblock_forward.4} parent=39 // pred_region
        _
      $region60: #{resblock_forward.4} parent=39 // pred_fallthru
        _
      // Predicated region
      $region61: #{resblock_forward.4} parent=39 // pred_check
        %p1758 = pneg %p167
      $region62: #{resblock_forward.4} parent=39 // pred_check_branch
        %1760 = sbr.rel (%p1758) target = $region64
      $region63: #{resblock_forward.4} parent=39 // pred_region
        _
      $region64: #{resblock_forward.4} parent=39 // pred_fallthru
        _
    $region40: #{resblock_forward.4} parent=5 // pred_fallthru
      _
    %p1761 = scmp.le.s32.totalorder 2, %s13
    // Predicated region
    $region65: #{resblock_forward.4} parent=5 // pred_check
      %p1762 = pneg %p1761
    $region66: #{resblock_forward.4} parent=5 // pred_check_branch
      %1764 = sbr.rel (%p1762) target = $region68
    $region67: #{resblock_forward.4} parent=5 // pred_region
      %s1765 = ssub.s32 %s13, 2
      // Predicated region
      $region69: #{resblock_forward.4} parent=67 // pred_check
        %p1766 = pneg %p152
      $region70: #{resblock_forward.4} parent=67 // pred_check_branch
        %1768 = sbr.rel (%p1766) target = $region72
      $region71: #{resblock_forward.4} parent=67 // pred_region
        %p1769 = scmp.lt.s32.totalorder %s19, 1
        %s1770 = scalar_select %p1769, %s19, 1
        %s1771 = smul.addr %s1770, 8
        %s1772 = smul.addr %s1771, 4
        %s1773 = scalar_lea.vmem %s5, %s1772
      $region72: #{resblock_forward.4} parent=67 // pred_fallthru
        _
    $region68: #{resblock_forward.4} parent=5 // pred_fallthru
      _
  $region6: #{resblock_forward.4} parent=0 // loop_footer
    %s17 = sadd.s32 1, %s13
  $region7: #{resblock_forward.4} parent=0 // loop_footer_branch
    %12 = sbr.rel target = $region3
  $region8: #{resblock_forward.4} parent=0 // loop_exit
    _

</llo_original>
